<compile_context>
chip_gen: v7x
topology: tpu7x:2x2x1
jax: 0.10.0
libtpu: 0.0.40
codegen_flags: <defaults>
</compile_context>

<pallas_src>
import functools

import jax
import jax.numpy as jnp
from jax.experimental import pallas as pl
from jax.experimental.pallas import tpu as pltpu

_SQRT1_2 = 0.7071067811865476


def _vmem_limit_bytes():
    """Per-generation scoped-VMEM budget (v5e/v6e: 96 MiB, v7x: 48 MiB)."""
    try:
        cap = int(pltpu.get_tpu_info().vmem_capacity_bytes)
        return max(32 * 1024 * 1024, min(cap * 3 // 4, 96 * 1024 * 1024))
    except Exception:
        return 48 * 1024 * 1024  # safe on every generation


VMEM_LIMIT = _vmem_limit_bytes()


# ----------------------------- helpers -------------------------------------

def _pick_tile(dim, candidates):
    """Largest candidate tile that evenly divides `dim`, else the full dim."""
    for c in candidates:
        if c <= dim and dim % c == 0:
            return c
    return dim


def _choose_row_tile(rows, fixed_bytes, per_row_bytes):
    """Largest row tile dividing `rows` whose resident VMEM footprint fits."""
    for tm in (512, 256, 128, 64, 32, 16, 8):
        if tm <= rows and rows % tm == 0 and fixed_bytes + tm * per_row_bytes <= VMEM_LIMIT:
            return tm
    if fixed_bytes + rows * per_row_bytes <= VMEM_LIMIT:
        return rows
    return None  # caller falls back to the (M,N,K)-tiled path


def _gelu(y):
    # exact (erf-based) GELU, matching torch.nn.GELU default
    return 0.5 * y * (1.0 + jax.lax.erf(y * _SQRT1_2))


def _layernorm_math(x, g, b, eps):
    mu = jnp.mean(x, axis=-1, keepdims=True)
    var = jnp.mean((x - mu) ** 2, axis=-1, keepdims=True)
    return (x - mu) * jax.lax.rsqrt(var + eps) * g + b


# --------------------- resident-weight linear (main path) -------------------

def _matmul_res_kernel(*refs, has_residual, act):
    if has_residual:
        x_ref, w_ref, b_ref, r_ref, o_ref = refs
    else:
        x_ref, w_ref, b_ref, o_ref = refs
        r_ref = None
    y = jnp.dot(x_ref[...], w_ref[...],
                preferred_element_type=jnp.float32) + b_ref[...]
    if r_ref is not None:
        y = y + r_ref[...].astype(jnp.float32)
    if act == "gelu":
        y = _gelu(y)
    o_ref[...] = y.astype(o_ref.dtype)


def _matmul_tiled_kernel(*refs, has_residual, act):
    # fallback only (weights that do not fit the VMEM budget)
    if has_residual:
        x_ref, w_ref, b_ref, r_ref, o_ref, acc_ref = refs
    else:
        x_ref, w_ref, b_ref, o_ref, acc_ref = refs
        r_ref = None
    k = pl.program_id(2)

    @pl.when(k == 0)
    def _():
        acc_ref[...] = jnp.zeros_like(acc_ref)

    acc_ref[...] += jnp.dot(x_ref[...], w_ref[...],
                            preferred_element_type=jnp.float32)

    @pl.when(k == pl.num_programs(2) - 1)
    def _():
        y = acc_ref[...] + b_ref[...]
        if r_ref is not None:
            y = y + r_ref[...].astype(jnp.float32)
        if act == "gelu":
            y = _gelu(y)
        o_ref[...] = y.astype(o_ref.dtype)


def matmul(x, w, b=None, residual=None, act=None, out_dtype=jnp.bfloat16):
    """y = act(x @ w + b [+ residual]).

    Main path: grid over row tiles only; the full (K, N) weight stays VMEM
    resident (constant index_map -> DMA'd once), no K-axis accumulator RMW.
    `residual` may have fewer rows than x (e.g. (N, D) pos_embed vs (B*N, D) x):
    it is picked up with a modulo index_map instead of materializing the
    broadcast through HBM.
    """
    M, K = x.shape
    N = w.shape[1]
    if b is None:
        b = jnp.zeros((N,), jnp.float32)
    b2 = b.reshape(1, N).astype(jnp.float32)

    res_rows = residual.shape[0] if residual is not None else M
    assert M % res_rows == 0

    # resident footprint: weight (count x2 for safety) + double-buffered row tiles
    fixed = 2 * K * N * 2 + 2 * N * 4
    per_row = 2 * K * 2 + 2 * N * 2 + N * 4 + (2 * N * 2 if residual is not None else 0)
    tm = _choose_row_tile(res_rows, fixed, per_row)

    if tm is not None:
        in_specs = [
            pl.BlockSpec((tm, K), lambda i: (i, 0)),
            pl.BlockSpec((K, N), lambda i: (0, 0)),   # resident weight
            pl.BlockSpec((1, N), lambda i: (0, 0)),
        ]
        args = [x, w, b2]
        if residual is not None:
            res_blocks = res_rows // tm
            r_idx = (lambda i: (0, 0)) if res_blocks == 1 else \
                    (lambda i: (i % res_blocks, 0))
            in_specs.append(pl.BlockSpec((tm, N), r_idx))
            args.append(residual)
        return pl.pallas_call(
            functools.partial(_matmul_res_kernel,
                              has_residual=residual is not None, act=act),
            grid=(M // tm,),
            in_specs=in_specs,
            out_specs=pl.BlockSpec((tm, N), lambda i: (i, 0)),
            out_shape=jax.ShapeDtypeStruct((M, N), out_dtype),
            compiler_params=pltpu.CompilerParams(
                dimension_semantics=("parallel",),
                vmem_limit_bytes=VMEM_LIMIT),
        )(*args)

    # ---- fallback: (M, N, K)-tiled with f32 accumulator (huge weights only) ----
    tm = _pick_tile(res_rows, (256, 128, 64, 32, 16, 8))
    tn = _pick_tile(N, (512, 256, 128))
    tk = _pick_tile(K, (1024, 768, 512, 256, 128))
    res_blocks = res_rows // tm
    in_specs = [
        pl.BlockSpec((tm, tk), lambda i, j, k: (i, k)),
        pl.BlockSpec((tk, tn), lambda i, j, k: (k, j)),
        pl.BlockSpec((1, tn), lambda i, j, k: (0, j)),
    ]
    args = [x, w, b2]
    if residual is not None:
        in_specs.append(pl.BlockSpec((tm, tn),
                                     lambda i, j, k: (i % res_blocks, j)))
        args.append(residual)
    return pl.pallas_call(
        functools.partial(_matmul_tiled_kernel,
                          has_residual=residual is not None, act=act),
        grid=(M // tm, N // tn, K // tk),
        in_specs=in_specs,
        out_specs=pl.BlockSpec((tm, tn), lambda i, j, k: (i, j)),
        out_shape=jax.ShapeDtypeStruct((M, N), out_dtype),
        scratch_shapes=[pltpu.VMEM((tm, tn), jnp.float32)],
        compiler_params=pltpu.CompilerParams(
            dimension_semantics=("parallel", "parallel", "arbitrary"),
            vmem_limit_bytes=VMEM_LIMIT),
    )(*args)


# --------------------- fused LayerNorm + matmul kernels ----------------------

def _ln_matmul_kernel(x_ref, g_ref, beta_ref, w_ref, b_ref, o_ref, *, eps, act):
    xn = _layernorm_math(x_ref[...].astype(jnp.float32),
                         g_ref[...], beta_ref[...], eps)
    y = jnp.dot(xn.astype(jnp.bfloat16), w_ref[...],
                preferred_element_type=jnp.float32) + b_ref[...]
    if act == "gelu":
        y = _gelu(y)
    o_ref[...] = y.astype(o_ref.dtype)


def ln_matmul(x, g, beta, w, b, *, eps=1e-5, act=None, out_dtype=jnp.bfloat16):
    """y = act(LayerNorm(x) @ w + b).

    Grid over rows only: LN is computed exactly once per row tile and the full
    weight stays VMEM-resident.
    """
    M, K = x.shape
    N = w.shape[1]
    fixed = 2 * K * N * 2 + 2 * N * 4 + 4 * K * 4
    per_row = 2 * K * 2 + 2 * N * 2 + N * 4 + K * 4
    tm = _choose_row_tile(M, fixed, per_row)
    if tm is None:
        # huge-model fallback: LN standalone, then tiled matmul
        return matmul(layernorm(x, g, beta, eps=eps), w, b, act=act,
                      out_dtype=out_dtype)
    return pl.pallas_call(
        functools.partial(_ln_matmul_kernel, eps=eps, act=act),
        grid=(M // tm,),
        in_specs=[
            pl.BlockSpec((tm, K), lambda i: (i, 0)),
            pl.BlockSpec((1, K), lambda i: (0, 0)),
            pl.BlockSpec((1, K), lambda i: (0, 0)),
            pl.BlockSpec((K, N), lambda i: (0, 0)),   # resident weight
            pl.BlockSpec((1, N), lambda i: (0, 0)),
        ],
        out_specs=pl.BlockSpec((tm, N), lambda i: (i, 0)),
        out_shape=jax.ShapeDtypeStruct((M, N), out_dtype),
        compiler_params=pltpu.CompilerParams(
            dimension_semantics=("parallel",),
            vmem_limit_bytes=VMEM_LIMIT),
    )(x, g.reshape(1, K).astype(jnp.float32),
      beta.reshape(1, K).astype(jnp.float32),
      w, b.reshape(1, N).astype(jnp.float32))


def _ln_qkv_kernel(x_ref, g_ref, beta_ref, wq_ref, wk_ref, wv_ref,
                   bq_ref, bk_ref, bv_ref, q_ref, k_ref, v_ref, *, eps):
    xn = _layernorm_math(x_ref[...].astype(jnp.float32),
                         g_ref[...], beta_ref[...], eps)
    xb = xn.astype(jnp.bfloat16)
    q_ref[...] = (jnp.dot(xb, wq_ref[...], preferred_element_type=jnp.float32)
                  + bq_ref[...]).astype(q_ref.dtype)
    k_ref[...] = (jnp.dot(xb, wk_ref[...], preferred_element_type=jnp.float32)
                  + bk_ref[...]).astype(k_ref.dtype)
    v_ref[...] = (jnp.dot(xb, wv_ref[...], preferred_element_type=jnp.float32)
                  + bv_ref[...]).astype(v_ref.dtype)


def ln_qkv(x, g, beta, wq, wk, wv, bq, bk, bv, *, eps=1e-5):
    """q, k, v = LayerNorm(x) @ {wq,wk,wv} + bias; x read once, LN once.

    Grid over rows only; all three (D, D) weights stay VMEM-resident.
    """
    M, D = x.shape
    fixed = 3 * 2 * D * D * 2 + 3 * 2 * D * 4 + 4 * D * 4
    per_row = 2 * D * 2 + 3 * 2 * D * 2 + 3 * D * 4 + D * 4
    tm = _choose_row_tile(M, fixed, per_row)
    if tm is None:
        xn = layernorm(x, g, beta, eps=eps)
        return (matmul(xn, wq, bq), matmul(xn, wk, bk), matmul(xn, wv, bv))
    vec = lambda a: a.reshape(1, -1).astype(jnp.float32)
    x_spec = pl.BlockSpec((tm, D), lambda i: (i, 0))
    ln_spec = pl.BlockSpec((1, D), lambda i: (0, 0))
    w_spec = pl.BlockSpec((D, D), lambda i: (0, 0))   # resident weights
    b_spec = pl.BlockSpec((1, D), lambda i: (0, 0))
    o_spec = pl.BlockSpec((tm, D), lambda i: (i, 0))
    o_shape = jax.ShapeDtypeStruct((M, D), jnp.bfloat16)
    return pl.pallas_call(
        functools.partial(_ln_qkv_kernel, eps=eps),
        grid=(M // tm,),
        in_specs=[x_spec, ln_spec, ln_spec, w_spec, w_spec, w_spec,
                  b_spec, b_spec, b_spec],
        out_specs=(o_spec, o_spec, o_spec),
        out_shape=(o_shape, o_shape, o_shape),
        compiler_params=pltpu.CompilerParams(
            dimension_semantics=("parallel",),
            vmem_limit_bytes=VMEM_LIMIT),
    )(x, vec(g), vec(beta), wq, wk, wv, vec(bq), vec(bk), vec(bv))


# ----------------------------- standalone LayerNorm --------------------------

def _layernorm_kernel(x_ref, g_ref, b_ref, o_ref, *, eps):
    o_ref[...] = _layernorm_math(x_ref[...].astype(jnp.float32),
                                 g_ref[...], b_ref[...], eps).astype(o_ref.dtype)


def layernorm(x, g, b, *, eps, out_dtype=jnp.bfloat16):
    M, C = x.shape
    tm = _pick_tile(M, (512, 256, 128, 64, 32, 16, 8))
    return pl.pallas_call(
        functools.partial(_layernorm_kernel, eps=eps),
        grid=(M // tm,),
        in_specs=[pl.BlockSpec((tm, C), lambda i: (i, 0)),
                  pl.BlockSpec((1, C), lambda i: (0, 0)),
                  pl.BlockSpec((1, C), lambda i: (0, 0))],
        out_specs=pl.BlockSpec((tm, C), lambda i: (i, 0)),
        out_shape=jax.ShapeDtypeStruct((M, C), out_dtype),
        compiler_params=pltpu.CompilerParams(
            dimension_semantics=("parallel",),
            vmem_limit_bytes=VMEM_LIMIT),
    )(x, g.reshape(1, C).astype(jnp.float32), b.reshape(1, C).astype(jnp.float32))


# ----------------------------- flash attention -------------------------------
#
# Softmax scale is folded into wq/bq by the caller (no per-step score scaling).

def _flash_attn_kernel(q_ref, k_ref, v_ref, o_ref, m_ref, l_ref, acc_ref,
                       *, dh, hg):
    ki = pl.program_id(3)

    @pl.when(ki == 0)
    def _():
        m_ref[...] = jnp.full_like(m_ref, -jnp.inf)
        l_ref[...] = jnp.zeros_like(l_ref)
        acc_ref[...] = jnp.zeros_like(acc_ref)

    q = q_ref[0]   # (TQ,  hg*dh) bf16 (already scaled)
    k = k_ref[0]   # (TKV, hg*dh) bf16
    v = v_ref[0]   # (TKV, hg*dh) bf16
    tq = q.shape[0]

    m_cols, l_cols, alpha_cols, pv_cols = [], [], [], []
    for h in range(hg):                      # static unroll over heads in group
        sl = slice(h * dh, (h + 1) * dh)
        # contract over the head_dim axis directly (no explicit k.T / XLU work)
        s = jax.lax.dot_general(q[:, sl], k[:, sl],
                                (((1,), (1,)), ((), ())),
                                preferred_element_type=jnp.float32)
        m_prev = m_ref[:, h:h + 1]
        m_new = jnp.maximum(m_prev, jnp.max(s, axis=-1, keepdims=True))
        alpha = jnp.exp(m_prev - m_new)
        p = jnp.exp(s - m_new)
        l_new = alpha * l_ref[:, h:h + 1] + jnp.sum(p, axis=-1, keepdims=True)
        pv = jnp.dot(p.astype(v.dtype), v[:, sl],
                     preferred_element_type=jnp.float32)
        m_cols.append(m_new)
        l_cols.append(l_new)
        alpha_cols.append(jnp.broadcast_to(alpha, (tq, dh)))
        pv_cols.append(pv)

    # full-width (lane-dense) state updates instead of per-head 64-lane RMWs
    m_ref[...] = jnp.concatenate(m_cols, axis=-1)
    l_ref[...] = jnp.concatenate(l_cols, axis=-1)
    alpha_full = jnp.concatenate(alpha_cols, axis=-1)
    acc_ref[...] = alpha_full * acc_ref[...] + jnp.concatenate(pv_cols, axis=-1)

    @pl.when(ki == pl.num_programs(3) - 1)
    def _():
        inv = 1.0 / l_ref[...]     # exact normalization (matches torch softmax)
        inv_full = jnp.concatenate(
            [jnp.broadcast_to(inv[:, h:h + 1], (tq, dh)) for h in range(hg)],
            axis=-1)
        o_ref[0] = (acc_ref[...] * inv_full).astype(o_ref.dtype)  # single dense store


def _head_group_width(d, dh):
    """Head-group lane width: prefer 256 (v6e/v7x MXU width), then 128, else D."""
    for gw in (256, 128):
        if gw % dh == 0 and d % gw == 0:
            return gw
    if dh % 128 == 0 and d % dh == 0:
        return dh
    return d


def attention(q, k, v, *, num_heads):
    B, N, D = q.shape
    dh = D // num_heads
    gw = _head_group_width(D, dh)
    hg = gw // dh                # heads processed per grid step
    ngrp = D // gw               # head groups

    tkv = _pick_tile(N, (512, 256, 128, 64, 32, 16, 8))
    tq = _pick_tile(N, (1024, 512, 256, 128, 64, 32, 16, 8))

    def _attn_bytes(t):
        return (2 * t * gw * 2        # q (double-buffered, bf16)
                + 2 * t * gw * 2      # out
                + 4 * tkv * gw * 2    # k + v (double-buffered)
                + t * gw * 4          # f32 acc scratch
                + 3 * t * tkv * 4)    # f32 score temporaries (rough)

    while tq > 8 and tq % 2 == 0 and _attn_bytes(tq) > VMEM_LIMIT:
        tq //= 2

    q_spec = pl.BlockSpec((1, tq, gw), lambda b, g, qi, ki: (b, qi, g))
    kv_spec = pl.BlockSpec((1, tkv, gw), lambda b, g, qi, ki: (b, ki, g))
    o_spec = pl.BlockSpec((1, tq, gw), lambda b, g, qi, ki: (b, qi, g))

    return pl.pallas_call(
        functools.partial(_flash_attn_kernel, dh=dh, hg=hg),
        grid=(B, ngrp, N // tq, N // tkv),
        in_specs=[q_spec, kv_spec, kv_spec],
        out_specs=o_spec,
        out_shape=jax.ShapeDtypeStruct((B, N, D), jnp.bfloat16),
        scratch_shapes=[pltpu.VMEM((tq, hg), jnp.float32),
                        pltpu.VMEM((tq, hg), jnp.float32),
                        pltpu.VMEM((tq, gw), jnp.float32)],
        compiler_params=pltpu.CompilerParams(
            dimension_semantics=("parallel", "parallel", "parallel", "arbitrary"),
            vmem_limit_bytes=VMEM_LIMIT),
    )(q, k, v)


# ----------------------------- neck 3x3 conv ---------------------------------

def _neck_conv3x3_kernel(x_ref, w_ref, o_ref, *, hp, wp):
    c = x_ref.shape[-1]
    acc = None
    for kh in range(3):
        for kw in range(3):
            xs = x_ref[0, kh:kh + hp, kw:kw + wp, :].reshape(hp * wp, c)
            y = jnp.dot(xs, w_ref[kh, kw], preferred_element_type=jnp.float32)
            acc = y if acc is None else acc + y
    o_ref[0] = acc.astype(o_ref.dtype)


def neck_conv3x3(x_padded, w):
    """3x3 conv (padding already applied) as 9 accumulated taps; no im2col."""
    # TODO(synk): taps could move to an "arbitrary" grid axis with element-offset
    #             index_maps to avoid the in-VMEM strided-slice copies; the neck
    #             is a small fraction of total cost so this is left simple.
    B, hpad, wpad, C = x_padded.shape
    hp, wp = hpad - 2, wpad - 2
    O = w.shape[-1]
    return pl.pallas_call(
        functools.partial(_neck_conv3x3_kernel, hp=hp, wp=wp),
        grid=(B,),
        in_specs=[pl.BlockSpec((1, hpad, wpad, C), lambda b: (b, 0, 0, 0)),
                  pl.BlockSpec((3, 3, C, O), lambda b: (0, 0, 0, 0))],
        out_specs=pl.BlockSpec((1, hp * wp, O), lambda b: (b, 0, 0)),
        out_shape=jax.ShapeDtypeStruct((B, hp * wp, O), jnp.bfloat16),
        compiler_params=pltpu.CompilerParams(
            dimension_semantics=("parallel",),
            vmem_limit_bytes=VMEM_LIMIT),
    )(x_padded, w)


# ----------------------------- model forward ---------------------------------

def image_encoder_vit(x_nchw, params, cfg):
    B, C, H, W = x_nchw.shape
    p = cfg["patch_size"]
    Hp, Wp = H // p, W // p
    D = cfg["embed_dim"]
    nh = cfg["num_heads"]
    N = Hp * Wp
    O = cfg["out_chans"]
    M = B * N
    scale = (D // nh) ** -0.5

    # ---- patch embed: Conv2d(k=p, stride=p) == patch flatten (XLA layout op)
    #      + resident-weight matmul; abs pos_embed (N, D) added via a modulo
    #      residual index_map (never broadcast/materialized to (B*N, D)).
    xp = (x_nchw.reshape(B, C, Hp, p, Wp, p)
          .transpose(0, 2, 4, 1, 3, 5)
          .reshape(M, C * p * p)).astype(jnp.bfloat16)
    pos = params["pos_embed"].reshape(N, D).astype(jnp.bfloat16)
    x = matmul(xp, params["patch_w"], params["patch_b"], residual=pos)  # (M, D)

    # ---- transformer blocks (global attention, no rel-pos) ----
    for blk in params["blocks"]:
        # fold the softmax scale into wq / bq (free: (D,D) elementwise at trace)
        wq_s = (blk["wq"].astype(jnp.float32) * scale).astype(jnp.bfloat16)
        bq_s = blk["bq"] * scale
        q, k, v = ln_qkv(x, blk["ln1_g"], blk["ln1_b"],
                         wq_s, blk["wk"], blk["wv"],
                         bq_s, blk["bk"], blk["bv"])
        o = attention(q.reshape(B, N, D), k.reshape(B, N, D),
                      v.reshape(B, N, D), num_heads=nh).reshape(M, D)
        x = matmul(o, blk["proj_w"], blk["proj_b"], residual=x)      # proj+skip
        h1 = ln_matmul(x, blk["ln2_g"], blk["ln2_b"],
                       blk["mlp1_w"], blk["mlp1_b"], act="gelu")     # LN2+MLP1
        x = matmul(h1, blk["mlp2_w"], blk["mlp2_b"], residual=x)     # MLP2+skip

    # ---- neck ----
    y = matmul(x, params["neck_w1"])                 # 1x1 conv, bias=False
    y = layernorm(y, params["neck_ln1_g"], params["neck_ln1_b"], eps=1e-6)
    # 3x3 conv, padding=1: zero pad in XLA (pure data movement), then a 9-tap
    # accumulated matmul inside one Pallas kernel (no im2col blow-up).
    yp = jnp.pad(y.reshape(B, Hp, Wp, O), ((0, 0), (1, 1), (1, 1), (0, 0)))
    y = neck_conv3x3(yp, params["neck_w2"]).reshape(M, O)
    y = layernorm(y, params["neck_ln2_g"], params["neck_ln2_b"], eps=1e-6,
                  out_dtype=jnp.float32)

    # back to NCHW like the PyTorch module output
    return y.reshape(B, Hp, Wp, O).transpose(0, 3, 1, 2)


# ----------------------------- parameter init --------------------------------

def init_params(key, cfg):
    C, p, D = cfg["in_chans"], cfg["patch_size"], cfg["embed_dim"]
    O, depth = cfg["out_chans"], cfg["depth"]
    mlp = int(cfg["mlp_ratio"] * D)
    Hp = cfg["img_size"] // p

    keys = iter(jax.random.split(key, 8 + 16 * depth))

    def w(shape, s=0.02, dtype=jnp.bfloat16):
        return (jax.random.normal(next(keys), shape, jnp.float32) * s).astype(dtype)

    params = {
        # PyTorch Conv2d(C, D, k=p, stride=p): weight (D, C, p, p), bias (D,)
        # stored flattened/transposed to (C*p*p, D); matmul weights in bf16.
        "patch_w": w((C * p * p, D)),
        "patch_b": w((D,), dtype=jnp.float32),
        "pos_embed": w((1, Hp, Hp, D), dtype=jnp.float32),
        "blocks": [],
        # neck conv1 (O, D, 1, 1) -> (D, O); conv2 (O, O, 3, 3) -> (3, 3, O, O)
        "neck_w1": w((D, O)),
        "neck_ln1_g": jnp.ones((O,), jnp.float32),
        "neck_ln1_b": jnp.zeros((O,), jnp.float32),
        "neck_w2": w((3, 3, O, O)),
        "neck_ln2_g": jnp.ones((O,), jnp.float32),
        "neck_ln2_b": jnp.zeros((O,), jnp.float32),
    }
    for _ in range(depth):
        params["blocks"].append({
            "ln1_g": jnp.ones((D,), jnp.float32),
            "ln1_b": jnp.zeros((D,), jnp.float32),
            # torch qkv Linear weight (3D, D) split/transposed into 3 x (D, D)
            "wq": w((D, D)), "wk": w((D, D)), "wv": w((D, D)),
            "bq": w((D,), dtype=jnp.float32),
            "bk": w((D,), dtype=jnp.float32),
            "bv": w((D,), dtype=jnp.float32),
            "proj_w": w((D, D)),
            "proj_b": w((D,), dtype=jnp.float32),
            "ln2_g": jnp.ones((D,), jnp.float32),
            "ln2_b": jnp.zeros((D,), jnp.float32),
            "mlp1_w": w((D, mlp)),
            "mlp1_b": w((mlp,), dtype=jnp.float32),
            "mlp2_w": w((mlp, D)),
            "mlp2_b": w((D,), dtype=jnp.float32),
        })
    return params


# ----------------------------- main ------------------------------------------

if __name__ == "__main__":
    cfg = dict(
        img_size=16,
        patch_size=4,
        in_chans=3,
        embed_dim=32,
        depth=2,
        num_heads=4,
        mlp_ratio=4.0,
        out_chans=32,
    )
    key = jax.random.PRNGKey(0)
    kx, kp = jax.random.split(key)
    x = jax.random.normal(
        kx, (2, cfg["in_chans"], cfg["img_size"], cfg["img_size"]), jnp.float32
    )
    params = init_params(kp, cfg)

    fwd = jax.jit(functools.partial(image_encoder_vit, cfg=cfg))
    out = jax.block_until_ready(fwd(x, params))

    hp = cfg["img_size"] // cfg["patch_size"]
    assert out.shape == (2, cfg["out_chans"], hp, hp), out.shape
    assert out.dtype == jnp.float32
    assert bool(jnp.all(jnp.isfinite(out)))
    print("KERNEL_OK")
</pallas_src>

<mosaic_0001>
module attributes {stable_mosaic.version = 11 : i64} {
  func.func @_ln_qkv_kernel(%arg0: i32, %arg1: memref<32x32xbf16, #tpu.memory_space<vmem>>, %arg2: memref<1x32xf32, #tpu.memory_space<vmem>>, %arg3: memref<1x32xf32, #tpu.memory_space<vmem>>, %arg4: memref<32x32xbf16, #tpu.memory_space<vmem>>, %arg5: memref<32x32xbf16, #tpu.memory_space<vmem>>, %arg6: memref<32x32xbf16, #tpu.memory_space<vmem>>, %arg7: memref<1x32xf32, #tpu.memory_space<vmem>>, %arg8: memref<1x32xf32, #tpu.memory_space<vmem>>, %arg9: memref<1x32xf32, #tpu.memory_space<vmem>>, %arg10: memref<32x32xbf16, #tpu.memory_space<vmem>>, %arg11: memref<32x32xbf16, #tpu.memory_space<vmem>>, %arg12: memref<32x32xbf16, #tpu.memory_space<vmem>>) attributes {dimension_semantics = [#tpu.dimension_semantics<parallel>], iteration_bounds = array<i64: 1>, scalar_prefetch = 0 : i64, scratch_operands = 0 : i64, tpu.core_type = #tpu.core_type<tc>, window_params = [{transform_indices = @transform_0, window_bounds = array<i64: 32, 32>}, {pipeline_mode = #tpu.pipeline_mode<synchronous>, transform_indices = @transform_1, window_bounds = array<i64: 1, 32>}, {pipeline_mode = #tpu.pipeline_mode<synchronous>, transform_indices = @transform_2, window_bounds = array<i64: 1, 32>}, {pipeline_mode = #tpu.pipeline_mode<synchronous>, transform_indices = @transform_3, window_bounds = array<i64: 32, 32>}, {pipeline_mode = #tpu.pipeline_mode<synchronous>, transform_indices = @transform_4, window_bounds = array<i64: 32, 32>}, {pipeline_mode = #tpu.pipeline_mode<synchronous>, transform_indices = @transform_5, window_bounds = array<i64: 32, 32>}, {pipeline_mode = #tpu.pipeline_mode<synchronous>, transform_indices = @transform_6, window_bounds = array<i64: 1, 32>}, {pipeline_mode = #tpu.pipeline_mode<synchronous>, transform_indices = @transform_7, window_bounds = array<i64: 1, 32>}, {pipeline_mode = #tpu.pipeline_mode<synchronous>, transform_indices = @transform_8, window_bounds = array<i64: 1, 32>}, {transform_indices = @transform_9, window_bounds = array<i64: 32, 32>}, {transform_indices = @transform_10, window_bounds = array<i64: 32, 32>}, {transform_indices = @transform_11, window_bounds = array<i64: 32, 32>}]} {
    %c0 = arith.constant 0 : index
    %c0_0 = arith.constant 0 : index
    %0 = vector.load %arg1[%c0, %c0_0] : memref<32x32xbf16, #tpu.memory_space<vmem>>, vector<32x32xbf16>
    %1 = arith.extf %0 : vector<32x32xbf16> to vector<32x32xf32>
    %c0_1 = arith.constant 0 : index
    %c0_2 = arith.constant 0 : index
    %2 = vector.load %arg2[%c0_1, %c0_2] : memref<1x32xf32, #tpu.memory_space<vmem>>, vector<1x32xf32>
    %c0_3 = arith.constant 0 : index
    %c0_4 = arith.constant 0 : index
    %3 = vector.load %arg3[%c0_3, %c0_4] : memref<1x32xf32, #tpu.memory_space<vmem>>, vector<1x32xf32>
    %cst = arith.constant dense<0.000000e+00> : vector<32xf32>
    %4 = vector.multi_reduction <add>, %1, %cst [1] : vector<32x32xf32> to vector<32xf32>
    %5 = vector.shape_cast %4 : vector<32xf32> to vector<32x1xf32>
    %cst_5 = arith.constant 3.200000e+01 : f32
    %6 = vector.broadcast %cst_5 : f32 to vector<32x1xf32>
    %7 = arith.divf %5, %6 : vector<32x1xf32>
    %8 = vector.broadcast %7 : vector<32x1xf32> to vector<32x32xf32>
    %9 = arith.subf %1, %8 : vector<32x32xf32>
    %10 = arith.mulf %9, %9 : vector<32x32xf32>
    %cst_6 = arith.constant dense<0.000000e+00> : vector<32xf32>
    %11 = vector.multi_reduction <add>, %10, %cst_6 [1] : vector<32x32xf32> to vector<32xf32>
    %12 = vector.shape_cast %11 : vector<32xf32> to vector<32x1xf32>
    %cst_7 = arith.constant 3.200000e+01 : f32
    %13 = vector.broadcast %cst_7 : f32 to vector<32x1xf32>
    %14 = arith.divf %12, %13 : vector<32x1xf32>
    %15 = vector.broadcast %7 : vector<32x1xf32> to vector<32x32xf32>
    %16 = arith.subf %1, %15 : vector<32x32xf32>
    %cst_8 = arith.constant 9.99999974E-6 : f32
    %17 = vector.broadcast %cst_8 : f32 to vector<32x1xf32>
    %18 = arith.addf %14, %17 : vector<32x1xf32>
    %19 = math.rsqrt %18 : vector<32x1xf32>
    %20 = vector.broadcast %19 : vector<32x1xf32> to vector<32x32xf32>
    %21 = arith.mulf %16, %20 : vector<32x32xf32>
    %22 = vector.broadcast %2 : vector<1x32xf32> to vector<32x32xf32>
    %23 = arith.mulf %21, %22 : vector<32x32xf32>
    %24 = vector.broadcast %3 : vector<1x32xf32> to vector<32x32xf32>
    %25 = arith.addf %23, %24 : vector<32x32xf32>
    %26 = arith.truncf %25 : vector<32x32xf32> to vector<32x32xbf16>
    %c0_9 = arith.constant 0 : index
    %c0_10 = arith.constant 0 : index
    %27 = vector.load %arg4[%c0_9, %c0_10] : memref<32x32xbf16, #tpu.memory_space<vmem>>, vector<32x32xbf16>
    %cst_11 = arith.constant dense<0.000000e+00> : vector<32x32xf32>
    %28 = tpu.matmul %26, %27, %cst_11 {dimension_numbers = #tpu.dot_dimension_numbers<[1], [0], [0], [1], [0, 0, 1, 1], [], []>} : vector<32x32xbf16>, vector<32x32xbf16>, vector<32x32xf32> -> vector<32x32xf32>
    %c0_12 = arith.constant 0 : index
    %c0_13 = arith.constant 0 : index
    %29 = vector.load %arg7[%c0_12, %c0_13] : memref<1x32xf32, #tpu.memory_space<vmem>>, vector<1x32xf32>
    %30 = vector.broadcast %29 : vector<1x32xf32> to vector<32x32xf32>
    %31 = arith.addf %28, %30 : vector<32x32xf32>
    %32 = arith.truncf %31 : vector<32x32xf32> to vector<32x32xbf16>
    %c0_14 = arith.constant 0 : index
    %c0_15 = arith.constant 0 : index
    %33 = vector.load %arg10[%c0_14, %c0_15] : memref<32x32xbf16, #tpu.memory_space<vmem>>, vector<32x32xbf16>
    tpu.vector_store %arg10[%c0_14, %c0_15], %32 {strides = array<i32>} : memref<32x32xbf16, #tpu.memory_space<vmem>>, vector<32x32xbf16>,
    %c0_16 = arith.constant 0 : index
    %c0_17 = arith.constant 0 : index
    %34 = vector.load %arg5[%c0_16, %c0_17] : memref<32x32xbf16, #tpu.memory_space<vmem>>, vector<32x32xbf16>
    %cst_18 = arith.constant dense<0.000000e+00> : vector<32x32xf32>
    %35 = tpu.matmul %26, %34, %cst_18 {dimension_numbers = #tpu.dot_dimension_numbers<[1], [0], [0], [1], [0, 0, 1, 1], [], []>} : vector<32x32xbf16>, vector<32x32xbf16>, vector<32x32xf32> -> vector<32x32xf32>
    %c0_19 = arith.constant 0 : index
    %c0_20 = arith.constant 0 : index
    %36 = vector.load %arg8[%c0_19, %c0_20] : memref<1x32xf32, #tpu.memory_space<vmem>>, vector<1x32xf32>
    %37 = vector.broadcast %36 : vector<1x32xf32> to vector<32x32xf32>
    %38 = arith.addf %35, %37 : vector<32x32xf32>
    %39 = arith.truncf %38 : vector<32x32xf32> to vector<32x32xbf16>
    %c0_21 = arith.constant 0 : index
    %c0_22 = arith.constant 0 : index
    %40 = vector.load %arg11[%c0_21, %c0_22] : memref<32x32xbf16, #tpu.memory_space<vmem>>, vector<32x32xbf16>
    tpu.vector_store %arg11[%c0_21, %c0_22], %39 {strides = array<i32>} : memref<32x32xbf16, #tpu.memory_space<vmem>>, vector<32x32xbf16>,
    %c0_23 = arith.constant 0 : index
    %c0_24 = arith.constant 0 : index
    %41 = vector.load %arg6[%c0_23, %c0_24] : memref<32x32xbf16, #tpu.memory_space<vmem>>, vector<32x32xbf16>
    %cst_25 = arith.constant dense<0.000000e+00> : vector<32x32xf32>
    %42 = tpu.matmul %26, %41, %cst_25 {dimension_numbers = #tpu.dot_dimension_numbers<[1], [0], [0], [1], [0, 0, 1, 1], [], []>} : vector<32x32xbf16>, vector<32x32xbf16>, vector<32x32xf32> -> vector<32x32xf32>
    %c0_26 = arith.constant 0 : index
    %c0_27 = arith.constant 0 : index
    %43 = vector.load %arg9[%c0_26, %c0_27] : memref<1x32xf32, #tpu.memory_space<vmem>>, vector<1x32xf32>
    %44 = vector.broadcast %43 : vector<1x32xf32> to vector<32x32xf32>
    %45 = arith.addf %42, %44 : vector<32x32xf32>
    %46 = arith.truncf %45 : vector<32x32xf32> to vector<32x32xbf16>
    %c0_28 = arith.constant 0 : index
    %c0_29 = arith.constant 0 : index
    %47 = vector.load %arg12[%c0_28, %c0_29] : memref<32x32xbf16, #tpu.memory_space<vmem>>, vector<32x32xbf16>
    tpu.vector_store %arg12[%c0_28, %c0_29], %46 {strides = array<i32>} : memref<32x32xbf16, #tpu.memory_space<vmem>>, vector<32x32xbf16>,
    return
  }
  func.func @transform_0(%arg0: i32) -> (i32, i32) {
    %c0_i32 = arith.constant 0 : i32
    %c0_i32_0 = arith.constant 0 : i32
    return %arg0, %c0_i32 : i32, i32
  }
  func.func @transform_1(%arg0: i32) -> (i32, i32) {
    %c0_i32 = arith.constant 0 : i32
    %c0_i32_0 = arith.constant 0 : i32
    %c0_i32_1 = arith.constant 0 : i32
    return %c0_i32, %c0_i32_0 : i32, i32
  }
  func.func @transform_2(%arg0: i32) -> (i32, i32) {
    %c0_i32 = arith.constant 0 : i32
    %c0_i32_0 = arith.constant 0 : i32
    %c0_i32_1 = arith.constant 0 : i32
    return %c0_i32, %c0_i32_0 : i32, i32
  }
  func.func @transform_3(%arg0: i32) -> (i32, i32) {
    %c0_i32 = arith.constant 0 : i32
    %c0_i32_0 = arith.constant 0 : i32
    %c0_i32_1 = arith.constant 0 : i32
    return %c0_i32, %c0_i32_0 : i32, i32
  }
  func.func @transform_4(%arg0: i32) -> (i32, i32) {
    %c0_i32 = arith.constant 0 : i32
    %c0_i32_0 = arith.constant 0 : i32
    %c0_i32_1 = arith.constant 0 : i32
    return %c0_i32, %c0_i32_0 : i32, i32
  }
  func.func @transform_5(%arg0: i32) -> (i32, i32) {
    %c0_i32 = arith.constant 0 : i32
    %c0_i32_0 = arith.constant 0 : i32
    %c0_i32_1 = arith.constant 0 : i32
    return %c0_i32, %c0_i32_0 : i32, i32
  }
  func.func @transform_6(%arg0: i32) -> (i32, i32) {
    %c0_i32 = arith.constant 0 : i32
    %c0_i32_0 = arith.constant 0 : i32
    %c0_i32_1 = arith.constant 0 : i32
    return %c0_i32, %c0_i32_0 : i32, i32
  }
  func.func @transform_7(%arg0: i32) -> (i32, i32) {
    %c0_i32 = arith.constant 0 : i32
    %c0_i32_0 = arith.constant 0 : i32
    %c0_i32_1 = arith.constant 0 : i32
    return %c0_i32, %c0_i32_0 : i32, i32
  }
  func.func @transform_8(%arg0: i32) -> (i32, i32) {
    %c0_i32 = arith.constant 0 : i32
    %c0_i32_0 = arith.constant 0 : i32
    %c0_i32_1 = arith.constant 0 : i32
    return %c0_i32, %c0_i32_0 : i32, i32
  }
  func.func @transform_9(%arg0: i32) -> (i32, i32) {
    %c0_i32 = arith.constant 0 : i32
    %c0_i32_0 = arith.constant 0 : i32
    return %arg0, %c0_i32 : i32, i32
  }
  func.func @transform_10(%arg0: i32) -> (i32, i32) {
    %c0_i32 = arith.constant 0 : i32
    %c0_i32_0 = arith.constant 0 : i32
    return %arg0, %c0_i32 : i32, i32
  }
  func.func @transform_11(%arg0: i32) -> (i32, i32) {
    %c0_i32 = arith.constant 0 : i32
    %c0_i32_0 = arith.constant 0 : i32
    return %arg0, %c0_i32 : i32, i32
  }
}

module attributes {stable_mosaic.version = 11 : i64} {
  func.func @_matmul_res_kernel(%arg0: i32, %arg1: memref<16x48xbf16, #tpu.memory_space<vmem>>, %arg2: memref<48x32xbf16, #tpu.memory_space<vmem>>, %arg3: memref<1x32xf32, #tpu.memory_space<vmem>>, %arg4: memref<16x32xbf16, #tpu.memory_space<vmem>>, %arg5: memref<16x32xbf16, #tpu.memory_space<vmem>>) attributes {dimension_semantics = [#tpu.dimension_semantics<parallel>], iteration_bounds = array<i64: 2>, scalar_prefetch = 0 : i64, scratch_operands = 0 : i64, tpu.core_type = #tpu.core_type<tc>, window_params = [{transform_indices = @transform_0, window_bounds = array<i64: 16, 48>}, {pipeline_mode = #tpu.pipeline_mode<synchronous>, transform_indices = @transform_1, window_bounds = array<i64: 48, 32>}, {pipeline_mode = #tpu.pipeline_mode<synchronous>, transform_indices = @transform_2, window_bounds = array<i64: 1, 32>}, {pipeline_mode = #tpu.pipeline_mode<synchronous>, transform_indices = @transform_3, window_bounds = array<i64: 16, 32>}, {transform_indices = @transform_4, window_bounds = array<i64: 16, 32>}]} {
    %c0 = arith.constant 0 : index
    %c0_0 = arith.constant 0 : index
    %0 = vector.load %arg1[%c0, %c0_0] : memref<16x48xbf16, #tpu.memory_space<vmem>>, vector<16x48xbf16>
    %c0_1 = arith.constant 0 : index
    %c0_2 = arith.constant 0 : index
    %1 = vector.load %arg2[%c0_1, %c0_2] : memref<48x32xbf16, #tpu.memory_space<vmem>>, vector<48x32xbf16>
    %cst = arith.constant dense<0.000000e+00> : vector<16x32xf32>
    %2 = tpu.matmul %0, %1, %cst {dimension_numbers = #tpu.dot_dimension_numbers<[1], [0], [0], [1], [0, 0, 1, 1], [], []>} : vector<16x48xbf16>, vector<48x32xbf16>, vector<16x32xf32> -> vector<16x32xf32>
    %c0_3 = arith.constant 0 : index
    %c0_4 = arith.constant 0 : index
    %3 = vector.load %arg3[%c0_3, %c0_4] : memref<1x32xf32, #tpu.memory_space<vmem>>, vector<1x32xf32>
    %4 = vector.broadcast %3 : vector<1x32xf32> to vector<16x32xf32>
    %5 = arith.addf %2, %4 : vector<16x32xf32>
    %c0_5 = arith.constant 0 : index
    %c0_6 = arith.constant 0 : index
    %6 = vector.load %arg4[%c0_5, %c0_6] : memref<16x32xbf16, #tpu.memory_space<vmem>>, vector<16x32xbf16>
    %7 = arith.extf %6 : vector<16x32xbf16> to vector<16x32xf32>
    %8 = arith.addf %5, %7 : vector<16x32xf32>
    %9 = arith.truncf %8 : vector<16x32xf32> to vector<16x32xbf16>
    %c0_7 = arith.constant 0 : index
    %c0_8 = arith.constant 0 : index
    %10 = vector.load %arg5[%c0_7, %c0_8] : memref<16x32xbf16, #tpu.memory_space<vmem>>, vector<16x32xbf16>
    tpu.vector_store %arg5[%c0_7, %c0_8], %9 {strides = array<i32>} : memref<16x32xbf16, #tpu.memory_space<vmem>>, vector<16x32xbf16>,
    return
  }
  func.func @transform_0(%arg0: i32) -> (i32, i32) {
    %c0_i32 = arith.constant 0 : i32
    %c0_i32_0 = arith.constant 0 : i32
    return %arg0, %c0_i32 : i32, i32
  }
  func.func @transform_1(%arg0: i32) -> (i32, i32) {
    %c0_i32 = arith.constant 0 : i32
    %c0_i32_0 = arith.constant 0 : i32
    %c0_i32_1 = arith.constant 0 : i32
    return %c0_i32, %c0_i32_0 : i32, i32
  }
  func.func @transform_2(%arg0: i32) -> (i32, i32) {
    %c0_i32 = arith.constant 0 : i32
    %c0_i32_0 = arith.constant 0 : i32
    %c0_i32_1 = arith.constant 0 : i32
    return %c0_i32, %c0_i32_0 : i32, i32
  }
  func.func @transform_3(%arg0: i32) -> (i32, i32) {
    %c0_i32 = arith.constant 0 : i32
    %c0_i32_0 = arith.constant 0 : i32
    %c0_i32_1 = arith.constant 0 : i32
    return %c0_i32, %c0_i32_0 : i32, i32
  }
  func.func @transform_4(%arg0: i32) -> (i32, i32) {
    %c0_i32 = arith.constant 0 : i32
    %c0_i32_0 = arith.constant 0 : i32
    return %arg0, %c0_i32 : i32, i32
  }
}

module attributes {stable_mosaic.version = 11 : i64} {
  func.func @_flash_attn_kernel(%arg0: i32, %arg1: i32, %arg2: i32, %arg3: i32, %arg4: memref<1x16x32xbf16, #tpu.memory_space<vmem>>, %arg5: memref<1x16x32xbf16, #tpu.memory_space<vmem>>, %arg6: memref<1x16x32xbf16, #tpu.memory_space<vmem>>, %arg7: memref<1x16x32xbf16, #tpu.memory_space<vmem>>, %arg8: memref<16x4xf32, #tpu.memory_space<vmem>>, %arg9: memref<16x4xf32, #tpu.memory_space<vmem>>, %arg10: memref<16x32xf32, #tpu.memory_space<vmem>>) attributes {dimension_semantics = [#tpu.dimension_semantics<parallel>, #tpu.dimension_semantics<parallel>, #tpu.dimension_semantics<parallel>, #tpu.dimension_semantics<arbitrary>], iteration_bounds = array<i64: 2, 1, 1, 1>, scalar_prefetch = 0 : i64, scratch_operands = 3 : i64, tpu.core_type = #tpu.core_type<tc>, window_params = [{transform_indices = @transform_0, window_bounds = array<i64: 1, 16, 32>}, {transform_indices = @transform_1, window_bounds = array<i64: 1, 16, 32>}, {transform_indices = @transform_2, window_bounds = array<i64: 1, 16, 32>}, {transform_indices = @transform_3, window_bounds = array<i64: 1, 16, 32>}]} {
    %c0_i32 = arith.constant 0 : i32
    %0 = arith.cmpi eq, %arg3, %c0_i32 : i32
    %1 = arith.extui %0 : i1 to i32
    %c0_i32_0 = arith.constant 0 : i32
    %2 = arith.cmpi ne, %1, %c0_i32_0 : i32
    scf.if %2 {
      %cst_47 = arith.constant 0xFF800000 : f32
      %110 = vector.broadcast %cst_47 : f32 to vector<16x4xf32>
      %c0_48 = arith.constant 0 : index
      %c0_49 = arith.constant 0 : index
      %111 = vector.load %arg8[%c0_48, %c0_49] : memref<16x4xf32, #tpu.memory_space<vmem>>, vector<16x4xf32>
      tpu.vector_store %arg8[%c0_48, %c0_49], %110 {strides = array<i32>} : memref<16x4xf32, #tpu.memory_space<vmem>>, vector<16x4xf32>,
      %cst_50 = arith.constant 0.000000e+00 : f32
      %112 = vector.broadcast %cst_50 : f32 to vector<16x4xf32>
      %c0_51 = arith.constant 0 : index
      %c0_52 = arith.constant 0 : index
      %113 = vector.load %arg9[%c0_51, %c0_52] : memref<16x4xf32, #tpu.memory_space<vmem>>, vector<16x4xf32>
      tpu.vector_store %arg9[%c0_51, %c0_52], %112 {strides = array<i32>} : memref<16x4xf32, #tpu.memory_space<vmem>>, vector<16x4xf32>,
      %cst_53 = arith.constant 0.000000e+00 : f32
      %114 = vector.broadcast %cst_53 : f32 to vector<16x32xf32>
      %c0_54 = arith.constant 0 : index
      %c0_55 = arith.constant 0 : index
      %115 = vector.load %arg10[%c0_54, %c0_55] : memref<16x32xf32, #tpu.memory_space<vmem>>, vector<16x32xf32>
      tpu.vector_store %arg10[%c0_54, %c0_55], %114 {strides = array<i32>} : memref<16x32xf32, #tpu.memory_space<vmem>>, vector<16x32xf32>,
    } else {
    }
    %c0 = arith.constant 0 : index
    %c0_1 = arith.constant 0 : index
    %c0_2 = arith.constant 0 : index
    %3 = vector.load %arg4[%c0, %c0_1, %c0_2] : memref<1x16x32xbf16, #tpu.memory_space<vmem>>, vector<1x16x32xbf16>
    %4 = vector.shape_cast %3 : vector<1x16x32xbf16> to vector<16x32xbf16>
    %c0_3 = arith.constant 0 : index
    %c0_4 = arith.constant 0 : index
    %c0_5 = arith.constant 0 : index
    %5 = vector.load %arg5[%c0_3, %c0_4, %c0_5] : memref<1x16x32xbf16, #tpu.memory_space<vmem>>, vector<1x16x32xbf16>
    %6 = vector.shape_cast %5 : vector<1x16x32xbf16> to vector<16x32xbf16>
    %c0_6 = arith.constant 0 : index
    %c0_7 = arith.constant 0 : index
    %c0_8 = arith.constant 0 : index
    %7 = vector.load %arg6[%c0_6, %c0_7, %c0_8] : memref<1x16x32xbf16, #tpu.memory_space<vmem>>, vector<1x16x32xbf16>
    %8 = vector.shape_cast %7 : vector<1x16x32xbf16> to vector<16x32xbf16>
    %9 = vector.extract_strided_slice %4 {offsets = [0, 0], sizes = [16, 8], strides = [1, 1]} : vector<16x32xbf16> to vector<16x8xbf16>
    %10 = vector.extract_strided_slice %6 {offsets = [0, 0], sizes = [16, 8], strides = [1, 1]} : vector<16x32xbf16> to vector<16x8xbf16>
    %cst = arith.constant dense<0.000000e+00> : vector<16x16xf32>
    %11 = tpu.matmul %9, %10, %cst {dimension_numbers = #tpu.dot_dimension_numbers<[1], [1], [0], [0], [0, 0, 1, 0], [], []>} : vector<16x8xbf16>, vector<16x8xbf16>, vector<16x16xf32> -> vector<16x16xf32>
    %c0_9 = arith.constant 0 : index
    %c0_10 = arith.constant 0 : index
    %12 = vector.load %arg8[%c0_9, %c0_10] : memref<16x4xf32, #tpu.memory_space<vmem>>, vector<16x1xf32>
    %cst_11 = arith.constant dense<0xFF800000> : vector<16xf32>
    %13 = vector.multi_reduction <maximumf>, %11, %cst_11 [1] : vector<16x16xf32> to vector<16xf32>
    %14 = vector.shape_cast %13 : vector<16xf32> to vector<16x1xf32>
    %15 = arith.maximumf %12, %14 : vector<16x1xf32>
    %16 = arith.subf %12, %15 : vector<16x1xf32>
    %17 = math.exp %16 : vector<16x1xf32>
    %18 = vector.broadcast %15 : vector<16x1xf32> to vector<16x16xf32>
    %19 = arith.subf %11, %18 : vector<16x16xf32>
    %20 = math.exp %19 : vector<16x16xf32>
    %c0_12 = arith.constant 0 : index
    %c0_13 = arith.constant 0 : index
    %21 = vector.load %arg9[%c0_12, %c0_13] : memref<16x4xf32, #tpu.memory_space<vmem>>, vector<16x1xf32>
    %22 = arith.mulf %17, %21 : vector<16x1xf32>
    %cst_14 = arith.constant dense<0.000000e+00> : vector<16xf32>
    %23 = vector.multi_reduction <add>, %20, %cst_14 [1] : vector<16x16xf32> to vector<16xf32>
    %24 = vector.shape_cast %23 : vector<16xf32> to vector<16x1xf32>
    %25 = arith.addf %22, %24 : vector<16x1xf32>
    %26 = arith.truncf %20 : vector<16x16xf32> to vector<16x16xbf16>
    %27 = vector.extract_strided_slice %8 {offsets = [0, 0], sizes = [16, 8], strides = [1, 1]} : vector<16x32xbf16> to vector<16x8xbf16>
    %cst_15 = arith.constant dense<0.000000e+00> : vector<16x8xf32>
    %28 = tpu.matmul %26, %27, %cst_15 {dimension_numbers = #tpu.dot_dimension_numbers<[1], [0], [0], [1], [0, 0, 1, 1], [], []>} : vector<16x16xbf16>, vector<16x8xbf16>, vector<16x8xf32> -> vector<16x8xf32>
    %29 = vector.shape_cast %17 : vector<16x1xf32> to vector<16x1xf32>
    %30 = vector.broadcast %29 : vector<16x1xf32> to vector<16x8xf32>
    %31 = vector.extract_strided_slice %4 {offsets = [0, 8], sizes = [16, 8], strides = [1, 1]} : vector<16x32xbf16> to vector<16x8xbf16>
    %32 = vector.extract_strided_slice %6 {offsets = [0, 8], sizes = [16, 8], strides = [1, 1]} : vector<16x32xbf16> to vector<16x8xbf16>
    %cst_16 = arith.constant dense<0.000000e+00> : vector<16x16xf32>
    %33 = tpu.matmul %31, %32, %cst_16 {dimension_numbers = #tpu.dot_dimension_numbers<[1], [1], [0], [0], [0, 0, 1, 0], [], []>} : vector<16x8xbf16>, vector<16x8xbf16>, vector<16x16xf32> -> vector<16x16xf32>
    %c0_17 = arith.constant 0 : index
    %c1 = arith.constant 1 : index
    %34 = vector.load %arg8[%c0_17, %c1] : memref<16x4xf32, #tpu.memory_space<vmem>>, vector<16x1xf32>
    %cst_18 = arith.constant dense<0xFF800000> : vector<16xf32>
    %35 = vector.multi_reduction <maximumf>, %33, %cst_18 [1] : vector<16x16xf32> to vector<16xf32>
    %36 = vector.shape_cast %35 : vector<16xf32> to vector<16x1xf32>
    %37 = arith.maximumf %34, %36 : vector<16x1xf32>
    %38 = arith.subf %34, %37 : vector<16x1xf32>
    %39 = math.exp %38 : vector<16x1xf32>
    %40 = vector.broadcast %37 : vector<16x1xf32> to vector<16x16xf32>
    %41 = arith.subf %33, %40 : vector<16x16xf32>
    %42 = math.exp %41 : vector<16x16xf32>
    %c0_19 = arith.constant 0 : index
    %c1_20 = arith.constant 1 : index
    %43 = vector.load %arg9[%c0_19, %c1_20] : memref<16x4xf32, #tpu.memory_space<vmem>>, vector<16x1xf32>
    %44 = arith.mulf %39, %43 : vector<16x1xf32>
    %cst_21 = arith.constant dense<0.000000e+00> : vector<16xf32>
    %45 = vector.multi_reduction <add>, %42, %cst_21 [1] : vector<16x16xf32> to vector<16xf32>
    %46 = vector.shape_cast %45 : vector<16xf32> to vector<16x1xf32>
    %47 = arith.addf %44, %46 : vector<16x1xf32>
    %48 = arith.truncf %42 : vector<16x16xf32> to vector<16x16xbf16>
    %49 = vector.extract_strided_slice %8 {offsets = [0, 8], sizes = [16, 8], strides = [1, 1]} : vector<16x32xbf16> to vector<16x8xbf16>
    %cst_22 = arith.constant dense<0.000000e+00> : vector<16x8xf32>
    %50 = tpu.matmul %48, %49, %cst_22 {dimension_numbers = #tpu.dot_dimension_numbers<[1], [0], [0], [1], [0, 0, 1, 1], [], []>} : vector<16x16xbf16>, vector<16x8xbf16>, vector<16x8xf32> -> vector<16x8xf32>
    %51 = vector.shape_cast %39 : vector<16x1xf32> to vector<16x1xf32>
    %52 = vector.broadcast %51 : vector<16x1xf32> to vector<16x8xf32>
    %53 = vector.extract_strided_slice %4 {offsets = [0, 16], sizes = [16, 8], strides = [1, 1]} : vector<16x32xbf16> to vector<16x8xbf16>
    %54 = vector.extract_strided_slice %6 {offsets = [0, 16], sizes = [16, 8], strides = [1, 1]} : vector<16x32xbf16> to vector<16x8xbf16>
    %cst_23 = arith.constant dense<0.000000e+00> : vector<16x16xf32>
    %55 = tpu.matmul %53, %54, %cst_23 {dimension_numbers = #tpu.dot_dimension_numbers<[1], [1], [0], [0], [0, 0, 1, 0], [], []>} : vector<16x8xbf16>, vector<16x8xbf16>, vector<16x16xf32> -> vector<16x16xf32>
    %c0_24 = arith.constant 0 : index
    %c2 = arith.constant 2 : index
    %56 = vector.load %arg8[%c0_24, %c2] : memref<16x4xf32, #tpu.memory_space<vmem>>, vector<16x1xf32>
    %cst_25 = arith.constant dense<0xFF800000> : vector<16xf32>
    %57 = vector.multi_reduction <maximumf>, %55, %cst_25 [1] : vector<16x16xf32> to vector<16xf32>
    %58 = vector.shape_cast %57 : vector<16xf32> to vector<16x1xf32>
    %59 = arith.maximumf %56, %58 : vector<16x1xf32>
    %60 = arith.subf %56, %59 : vector<16x1xf32>
    %61 = math.exp %60 : vector<16x1xf32>
    %62 = vector.broadcast %59 : vector<16x1xf32> to vector<16x16xf32>
    %63 = arith.subf %55, %62 : vector<16x16xf32>
    %64 = math.exp %63 : vector<16x16xf32>
    %c0_26 = arith.constant 0 : index
    %c2_27 = arith.constant 2 : index
    %65 = vector.load %arg9[%c0_26, %c2_27] : memref<16x4xf32, #tpu.memory_space<vmem>>, vector<16x1xf32>
    %66 = arith.mulf %61, %65 : vector<16x1xf32>
    %cst_28 = arith.constant dense<0.000000e+00> : vector<16xf32>
    %67 = vector.multi_reduction <add>, %64, %cst_28 [1] : vector<16x16xf32> to vector<16xf32>
    %68 = vector.shape_cast %67 : vector<16xf32> to vector<16x1xf32>
    %69 = arith.addf %66, %68 : vector<16x1xf32>
    %70 = arith.truncf %64 : vector<16x16xf32> to vector<16x16xbf16>
    %71 = vector.extract_strided_slice %8 {offsets = [0, 16], sizes = [16, 8], strides = [1, 1]} : vector<16x32xbf16> to vector<16x8xbf16>
    %cst_29 = arith.constant dense<0.000000e+00> : vector<16x8xf32>
    %72 = tpu.matmul %70, %71, %cst_29 {dimension_numbers = #tpu.dot_dimension_numbers<[1], [0], [0], [1], [0, 0, 1, 1], [], []>} : vector<16x16xbf16>, vector<16x8xbf16>, vector<16x8xf32> -> vector<16x8xf32>
    %73 = vector.shape_cast %61 : vector<16x1xf32> to vector<16x1xf32>
    %74 = vector.broadcast %73 : vector<16x1xf32> to vector<16x8xf32>
    %75 = vector.extract_strided_slice %4 {offsets = [0, 24], sizes = [16, 8], strides = [1, 1]} : vector<16x32xbf16> to vector<16x8xbf16>
    %76 = vector.extract_strided_slice %6 {offsets = [0, 24], sizes = [16, 8], strides = [1, 1]} : vector<16x32xbf16> to vector<16x8xbf16>
    %cst_30 = arith.constant dense<0.000000e+00> : vector<16x16xf32>
    %77 = tpu.matmul %75, %76, %cst_30 {dimension_numbers = #tpu.dot_dimension_numbers<[1], [1], [0], [0], [0, 0, 1, 0], [], []>} : vector<16x8xbf16>, vector<16x8xbf16>, vector<16x16xf32> -> vector<16x16xf32>
    %c0_31 = arith.constant 0 : index
    %c3 = arith.constant 3 : index
    %78 = vector.load %arg8[%c0_31, %c3] : memref<16x4xf32, #tpu.memory_space<vmem>>, vector<16x1xf32>
    %cst_32 = arith.constant dense<0xFF800000> : vector<16xf32>
    %79 = vector.multi_reduction <maximumf>, %77, %cst_32 [1] : vector<16x16xf32> to vector<16xf32>
    %80 = vector.shape_cast %79 : vector<16xf32> to vector<16x1xf32>
    %81 = arith.maximumf %78, %80 : vector<16x1xf32>
    %82 = arith.subf %78, %81 : vector<16x1xf32>
    %83 = math.exp %82 : vector<16x1xf32>
    %84 = vector.broadcast %81 : vector<16x1xf32> to vector<16x16xf32>
    %85 = arith.subf %77, %84 : vector<16x16xf32>
    %86 = math.exp %85 : vector<16x16xf32>
    %c0_33 = arith.constant 0 : index
    %c3_34 = arith.constant 3 : index
    %87 = vector.load %arg9[%c0_33, %c3_34] : memref<16x4xf32, #tpu.memory_space<vmem>>, vector<16x1xf32>
    %88 = arith.mulf %83, %87 : vector<16x1xf32>
    %cst_35 = arith.constant dense<0.000000e+00> : vector<16xf32>
    %89 = vector.multi_reduction <add>, %86, %cst_35 [1] : vector<16x16xf32> to vector<16xf32>
    %90 = vector.shape_cast %89 : vector<16xf32> to vector<16x1xf32>
    %91 = arith.addf %88, %90 : vector<16x1xf32>
    %92 = arith.truncf %86 : vector<16x16xf32> to vector<16x16xbf16>
    %93 = vector.extract_strided_slice %8 {offsets = [0, 24], sizes = [16, 8], strides = [1, 1]} : vector<16x32xbf16> to vector<16x8xbf16>
    %cst_36 = arith.constant dense<0.000000e+00> : vector<16x8xf32>
    %94 = tpu.matmul %92, %93, %cst_36 {dimension_numbers = #tpu.dot_dimension_numbers<[1], [0], [0], [1], [0, 0, 1, 1], [], []>} : vector<16x16xbf16>, vector<16x8xbf16>, vector<16x8xf32> -> vector<16x8xf32>
    %95 = vector.shape_cast %83 : vector<16x1xf32> to vector<16x1xf32>
    %96 = vector.broadcast %95 : vector<16x1xf32> to vector<16x8xf32>
    %97 = tpu.concatenate %15, %37, %59, %81 in 1 : vector<16x1xf32>, vector<16x1xf32>, vector<16x1xf32>, vector<16x1xf32> -> vector<16x4xf32>
    %c0_37 = arith.constant 0 : index
    %c0_38 = arith.constant 0 : index
    %98 = vector.load %arg8[%c0_37, %c0_38] : memref<16x4xf32, #tpu.memory_space<vmem>>, vector<16x4xf32>
    tpu.vector_store %arg8[%c0_37, %c0_38], %97 {strides = array<i32>} : memref<16x4xf32, #tpu.memory_space<vmem>>, vector<16x4xf32>,
    %99 = tpu.concatenate %25, %47, %69, %91 in 1 : vector<16x1xf32>, vector<16x1xf32>, vector<16x1xf32>, vector<16x1xf32> -> vector<16x4xf32>
    %c0_39 = arith.constant 0 : index
    %c0_40 = arith.constant 0 : index
    %100 = vector.load %arg9[%c0_39, %c0_40] : memref<16x4xf32, #tpu.memory_space<vmem>>, vector<16x4xf32>
    tpu.vector_store %arg9[%c0_39, %c0_40], %99 {strides = array<i32>} : memref<16x4xf32, #tpu.memory_space<vmem>>, vector<16x4xf32>,
    %101 = tpu.concatenate %30, %52, %74, %96 in 1 : vector<16x8xf32>, vector<16x8xf32>, vector<16x8xf32>, vector<16x8xf32> -> vector<16x32xf32>
    %c0_41 = arith.constant 0 : index
    %c0_42 = arith.constant 0 : index
    %102 = vector.load %arg10[%c0_41, %c0_42] : memref<16x32xf32, #tpu.memory_space<vmem>>, vector<16x32xf32>
    %103 = arith.mulf %101, %102 : vector<16x32xf32>
    %104 = tpu.concatenate %28, %50, %72, %94 in 1 : vector<16x8xf32>, vector<16x8xf32>, vector<16x8xf32>, vector<16x8xf32> -> vector<16x32xf32>
    %105 = arith.addf %103, %104 : vector<16x32xf32>
    %c0_43 = arith.constant 0 : index
    %c0_44 = arith.constant 0 : index
    %106 = vector.load %arg10[%c0_43, %c0_44] : memref<16x32xf32, #tpu.memory_space<vmem>>, vector<16x32xf32>
    tpu.vector_store %arg10[%c0_43, %c0_44], %105 {strides = array<i32>} : memref<16x32xf32, #tpu.memory_space<vmem>>, vector<16x32xf32>,
    %c0_i32_45 = arith.constant 0 : i32
    %107 = arith.cmpi eq, %arg3, %c0_i32_45 : i32
    %108 = arith.extui %107 : i1 to i32
    %c0_i32_46 = arith.constant 0 : i32
    %109 = arith.cmpi ne, %108, %c0_i32_46 : i32
    scf.if %109 {
      %c0_47 = arith.constant 0 : index
      %c0_48 = arith.constant 0 : index
      %110 = vector.load %arg9[%c0_47, %c0_48] : memref<16x4xf32, #tpu.memory_space<vmem>>, vector<16x4xf32>
      %cst_49 = arith.constant 1.000000e+00 : f32
      %111 = vector.broadcast %cst_49 : f32 to vector<16x4xf32>
      %112 = arith.divf %111, %110 : vector<16x4xf32>
      %113 = vector.extract_strided_slice %112 {offsets = [0, 0], sizes = [16, 1], strides = [1, 1]} : vector<16x4xf32> to vector<16x1xf32>
      %114 = vector.shape_cast %113 : vector<16x1xf32> to vector<16x1xf32>
      %115 = vector.broadcast %114 : vector<16x1xf32> to vector<16x8xf32>
      %116 = vector.extract_strided_slice %112 {offsets = [0, 1], sizes = [16, 1], strides = [1, 1]} : vector<16x4xf32> to vector<16x1xf32>
      %117 = vector.shape_cast %116 : vector<16x1xf32> to vector<16x1xf32>
      %118 = vector.broadcast %117 : vector<16x1xf32> to vector<16x8xf32>
      %119 = vector.extract_strided_slice %112 {offsets = [0, 2], sizes = [16, 1], strides = [1, 1]} : vector<16x4xf32> to vector<16x1xf32>
      %120 = vector.shape_cast %119 : vector<16x1xf32> to vector<16x1xf32>
      %121 = vector.broadcast %120 : vector<16x1xf32> to vector<16x8xf32>
      %122 = vector.extract_strided_slice %112 {offsets = [0, 3], sizes = [16, 1], strides = [1, 1]} : vector<16x4xf32> to vector<16x1xf32>
      %123 = vector.shape_cast %122 : vector<16x1xf32> to vector<16x1xf32>
      %124 = vector.broadcast %123 : vector<16x1xf32> to vector<16x8xf32>
      %125 = tpu.concatenate %115, %118, %121, %124 in 1 : vector<16x8xf32>, vector<16x8xf32>, vector<16x8xf32>, vector<16x8xf32> -> vector<16x32xf32>
      %c0_50 = arith.constant 0 : index
      %c0_51 = arith.constant 0 : index
      %126 = vector.load %arg10[%c0_50, %c0_51] : memref<16x32xf32, #tpu.memory_space<vmem>>, vector<16x32xf32>
      %127 = arith.mulf %126, %125 : vector<16x32xf32>
      %128 = arith.truncf %127 : vector<16x32xf32> to vector<16x32xbf16>
      %c0_52 = arith.constant 0 : index
      %c0_53 = arith.constant 0 : index
      %c0_54 = arith.constant 0 : index
      %129 = vector.load %arg7[%c0_52, %c0_53, %c0_54] : memref<1x16x32xbf16, #tpu.memory_space<vmem>>, vector<1x16x32xbf16>
      %130 = vector.shape_cast %129 : vector<1x16x32xbf16> to vector<16x32xbf16>
      %131 = vector.shape_cast %128 : vector<16x32xbf16> to vector<1x16x32xbf16>
      tpu.vector_store %arg7[%c0_52, %c0_53, %c0_54], %131 {strides = array<i32>} : memref<1x16x32xbf16, #tpu.memory_space<vmem>>, vector<1x16x32xbf16>,
    } else {
    }
    return
  }
  func.func @transform_0(%arg0: i32, %arg1: i32, %arg2: i32, %arg3: i32) -> (i32, i32, i32) {
    %c0_i32 = arith.constant 0 : i32
    return %arg0, %arg2, %arg1 : i32, i32, i32
  }
  func.func @transform_1(%arg0: i32, %arg1: i32, %arg2: i32, %arg3: i32) -> (i32, i32, i32) {
    %c0_i32 = arith.constant 0 : i32
    return %arg0, %arg3, %arg1 : i32, i32, i32
  }
  func.func @transform_2(%arg0: i32, %arg1: i32, %arg2: i32, %arg3: i32) -> (i32, i32, i32) {
    %c0_i32 = arith.constant 0 : i32
    return %arg0, %arg3, %arg1 : i32, i32, i32
  }
  func.func @transform_3(%arg0: i32, %arg1: i32, %arg2: i32, %arg3: i32) -> (i32, i32, i32) {
    %c0_i32 = arith.constant 0 : i32
    return %arg0, %arg2, %arg1 : i32, i32, i32
  }
}

module attributes {stable_mosaic.version = 11 : i64} {
  func.func @_matmul_res_kernel(%arg0: i32, %arg1: memref<32x32xbf16, #tpu.memory_space<vmem>>, %arg2: memref<32x32xbf16, #tpu.memory_space<vmem>>, %arg3: memref<1x32xf32, #tpu.memory_space<vmem>>, %arg4: memref<32x32xbf16, #tpu.memory_space<vmem>>, %arg5: memref<32x32xbf16, #tpu.memory_space<vmem>>) attributes {dimension_semantics = [#tpu.dimension_semantics<parallel>], iteration_bounds = array<i64: 1>, scalar_prefetch = 0 : i64, scratch_operands = 0 : i64, tpu.core_type = #tpu.core_type<tc>, window_params = [{transform_indices = @transform_0, window_bounds = array<i64: 32, 32>}, {pipeline_mode = #tpu.pipeline_mode<synchronous>, transform_indices = @transform_1, window_bounds = array<i64: 32, 32>}, {pipeline_mode = #tpu.pipeline_mode<synchronous>, transform_indices = @transform_2, window_bounds = array<i64: 1, 32>}, {pipeline_mode = #tpu.pipeline_mode<synchronous>, transform_indices = @transform_3, window_bounds = array<i64: 32, 32>}, {transform_indices = @transform_4, window_bounds = array<i64: 32, 32>}]} {
    %c0 = arith.constant 0 : index
    %c0_0 = arith.constant 0 : index
    %0 = vector.load %arg1[%c0, %c0_0] : memref<32x32xbf16, #tpu.memory_space<vmem>>, vector<32x32xbf16>
    %c0_1 = arith.constant 0 : index
    %c0_2 = arith.constant 0 : index
    %1 = vector.load %arg2[%c0_1, %c0_2] : memref<32x32xbf16, #tpu.memory_space<vmem>>, vector<32x32xbf16>
    %cst = arith.constant dense<0.000000e+00> : vector<32x32xf32>
    %2 = tpu.matmul %0, %1, %cst {dimension_numbers = #tpu.dot_dimension_numbers<[1], [0], [0], [1], [0, 0, 1, 1], [], []>} : vector<32x32xbf16>, vector<32x32xbf16>, vector<32x32xf32> -> vector<32x32xf32>
    %c0_3 = arith.constant 0 : index
    %c0_4 = arith.constant 0 : index
    %3 = vector.load %arg3[%c0_3, %c0_4] : memref<1x32xf32, #tpu.memory_space<vmem>>, vector<1x32xf32>
    %4 = vector.broadcast %3 : vector<1x32xf32> to vector<32x32xf32>
    %5 = arith.addf %2, %4 : vector<32x32xf32>
    %c0_5 = arith.constant 0 : index
    %c0_6 = arith.constant 0 : index
    %6 = vector.load %arg4[%c0_5, %c0_6] : memref<32x32xbf16, #tpu.memory_space<vmem>>, vector<32x32xbf16>
    %7 = arith.extf %6 : vector<32x32xbf16> to vector<32x32xf32>
    %8 = arith.addf %5, %7 : vector<32x32xf32>
    %9 = arith.truncf %8 : vector<32x32xf32> to vector<32x32xbf16>
    %c0_7 = arith.constant 0 : index
    %c0_8 = arith.constant 0 : index
    %10 = vector.load %arg5[%c0_7, %c0_8] : memref<32x32xbf16, #tpu.memory_space<vmem>>, vector<32x32xbf16>
    tpu.vector_store %arg5[%c0_7, %c0_8], %9 {strides = array<i32>} : memref<32x32xbf16, #tpu.memory_space<vmem>>, vector<32x32xbf16>,
    return
  }
  func.func @transform_0(%arg0: i32) -> (i32, i32) {
    %c0_i32 = arith.constant 0 : i32
    %c0_i32_0 = arith.constant 0 : i32
    return %arg0, %c0_i32 : i32, i32
  }
  func.func @transform_1(%arg0: i32) -> (i32, i32) {
    %c0_i32 = arith.constant 0 : i32
    %c0_i32_0 = arith.constant 0 : i32
    %c0_i32_1 = arith.constant 0 : i32
    return %c0_i32, %c0_i32_0 : i32, i32
  }
  func.func @transform_2(%arg0: i32) -> (i32, i32) {
    %c0_i32 = arith.constant 0 : i32
    %c0_i32_0 = arith.constant 0 : i32
    %c0_i32_1 = arith.constant 0 : i32
    return %c0_i32, %c0_i32_0 : i32, i32
  }
  func.func @transform_3(%arg0: i32) -> (i32, i32) {
    %c0_i32 = arith.constant 0 : i32
    %c0_i32_0 = arith.constant 0 : i32
    %c0_i32_1 = arith.constant 0 : i32
    return %c0_i32, %c0_i32_0 : i32, i32
  }
  func.func @transform_4(%arg0: i32) -> (i32, i32) {
    %c0_i32 = arith.constant 0 : i32
    %c0_i32_0 = arith.constant 0 : i32
    return %arg0, %c0_i32 : i32, i32
  }
}

module attributes {stable_mosaic.version = 11 : i64} {
  func.func @_ln_matmul_kernel(%arg0: i32, %arg1: memref<32x32xbf16, #tpu.memory_space<vmem>>, %arg2: memref<1x32xf32, #tpu.memory_space<vmem>>, %arg3: memref<1x32xf32, #tpu.memory_space<vmem>>, %arg4: memref<32x128xbf16, #tpu.memory_space<vmem>>, %arg5: memref<1x128xf32, #tpu.memory_space<vmem>>, %arg6: memref<32x128xbf16, #tpu.memory_space<vmem>>) attributes {dimension_semantics = [#tpu.dimension_semantics<parallel>], iteration_bounds = array<i64: 1>, scalar_prefetch = 0 : i64, scratch_operands = 0 : i64, tpu.core_type = #tpu.core_type<tc>, window_params = [{transform_indices = @transform_0, window_bounds = array<i64: 32, 32>}, {pipeline_mode = #tpu.pipeline_mode<synchronous>, transform_indices = @transform_1, window_bounds = array<i64: 1, 32>}, {pipeline_mode = #tpu.pipeline_mode<synchronous>, transform_indices = @transform_2, window_bounds = array<i64: 1, 32>}, {pipeline_mode = #tpu.pipeline_mode<synchronous>, transform_indices = @transform_3, window_bounds = array<i64: 32, 128>}, {pipeline_mode = #tpu.pipeline_mode<synchronous>, transform_indices = @transform_4, window_bounds = array<i64: 1, 128>}, {transform_indices = @transform_5, window_bounds = array<i64: 32, 128>}]} {
    %c0 = arith.constant 0 : index
    %c0_0 = arith.constant 0 : index
    %0 = vector.load %arg1[%c0, %c0_0] : memref<32x32xbf16, #tpu.memory_space<vmem>>, vector<32x32xbf16>
    %1 = arith.extf %0 : vector<32x32xbf16> to vector<32x32xf32>
    %c0_1 = arith.constant 0 : index
    %c0_2 = arith.constant 0 : index
    %2 = vector.load %arg2[%c0_1, %c0_2] : memref<1x32xf32, #tpu.memory_space<vmem>>, vector<1x32xf32>
    %c0_3 = arith.constant 0 : index
    %c0_4 = arith.constant 0 : index
    %3 = vector.load %arg3[%c0_3, %c0_4] : memref<1x32xf32, #tpu.memory_space<vmem>>, vector<1x32xf32>
    %cst = arith.constant dense<0.000000e+00> : vector<32xf32>
    %4 = vector.multi_reduction <add>, %1, %cst [1] : vector<32x32xf32> to vector<32xf32>
    %5 = vector.shape_cast %4 : vector<32xf32> to vector<32x1xf32>
    %cst_5 = arith.constant 3.200000e+01 : f32
    %6 = vector.broadcast %cst_5 : f32 to vector<32x1xf32>
    %7 = arith.divf %5, %6 : vector<32x1xf32>
    %8 = vector.broadcast %7 : vector<32x1xf32> to vector<32x32xf32>
    %9 = arith.subf %1, %8 : vector<32x32xf32>
    %10 = arith.mulf %9, %9 : vector<32x32xf32>
    %cst_6 = arith.constant dense<0.000000e+00> : vector<32xf32>
    %11 = vector.multi_reduction <add>, %10, %cst_6 [1] : vector<32x32xf32> to vector<32xf32>
    %12 = vector.shape_cast %11 : vector<32xf32> to vector<32x1xf32>
    %cst_7 = arith.constant 3.200000e+01 : f32
    %13 = vector.broadcast %cst_7 : f32 to vector<32x1xf32>
    %14 = arith.divf %12, %13 : vector<32x1xf32>
    %15 = vector.broadcast %7 : vector<32x1xf32> to vector<32x32xf32>
    %16 = arith.subf %1, %15 : vector<32x32xf32>
    %cst_8 = arith.constant 9.99999974E-6 : f32
    %17 = vector.broadcast %cst_8 : f32 to vector<32x1xf32>
    %18 = arith.addf %14, %17 : vector<32x1xf32>
    %19 = math.rsqrt %18 : vector<32x1xf32>
    %20 = vector.broadcast %19 : vector<32x1xf32> to vector<32x32xf32>
    %21 = arith.mulf %16, %20 : vector<32x32xf32>
    %22 = vector.broadcast %2 : vector<1x32xf32> to vector<32x32xf32>
    %23 = arith.mulf %21, %22 : vector<32x32xf32>
    %24 = vector.broadcast %3 : vector<1x32xf32> to vector<32x32xf32>
    %25 = arith.addf %23, %24 : vector<32x32xf32>
    %26 = arith.truncf %25 : vector<32x32xf32> to vector<32x32xbf16>
    %c0_9 = arith.constant 0 : index
    %c0_10 = arith.constant 0 : index
    %27 = vector.load %arg4[%c0_9, %c0_10] : memref<32x128xbf16, #tpu.memory_space<vmem>>, vector<32x128xbf16>
    %cst_11 = arith.constant dense<0.000000e+00> : vector<32x128xf32>
    %28 = tpu.matmul %26, %27, %cst_11 {dimension_numbers = #tpu.dot_dimension_numbers<[1], [0], [0], [1], [0, 0, 1, 1], [], []>} : vector<32x32xbf16>, vector<32x128xbf16>, vector<32x128xf32> -> vector<32x128xf32>
    %c0_12 = arith.constant 0 : index
    %c0_13 = arith.constant 0 : index
    %29 = vector.load %arg5[%c0_12, %c0_13] : memref<1x128xf32, #tpu.memory_space<vmem>>, vector<1x128xf32>
    %30 = vector.broadcast %29 : vector<1x128xf32> to vector<32x128xf32>
    %31 = arith.addf %28, %30 : vector<32x128xf32>
    %cst_14 = arith.constant 5.000000e-01 : f32
    %32 = vector.broadcast %cst_14 : f32 to vector<32x128xf32>
    %33 = arith.mulf %32, %31 : vector<32x128xf32>
    %cst_15 = arith.constant 0.707106769 : f32
    %34 = vector.broadcast %cst_15 : f32 to vector<32x128xf32>
    %35 = arith.mulf %31, %34 : vector<32x128xf32>
    %36 = math.erf %35 : vector<32x128xf32>
    %cst_16 = arith.constant 1.000000e+00 : f32
    %37 = vector.broadcast %cst_16 : f32 to vector<32x128xf32>
    %38 = arith.addf %37, %36 : vector<32x128xf32>
    %39 = arith.mulf %33, %38 : vector<32x128xf32>
    %40 = arith.truncf %39 : vector<32x128xf32> to vector<32x128xbf16>
    %c0_17 = arith.constant 0 : index
    %c0_18 = arith.constant 0 : index
    %41 = vector.load %arg6[%c0_17, %c0_18] : memref<32x128xbf16, #tpu.memory_space<vmem>>, vector<32x128xbf16>
    tpu.vector_store %arg6[%c0_17, %c0_18], %40 {strides = array<i32>} : memref<32x128xbf16, #tpu.memory_space<vmem>>, vector<32x128xbf16>,
    return
  }
  func.func @transform_0(%arg0: i32) -> (i32, i32) {
    %c0_i32 = arith.constant 0 : i32
    %c0_i32_0 = arith.constant 0 : i32
    return %arg0, %c0_i32 : i32, i32
  }
  func.func @transform_1(%arg0: i32) -> (i32, i32) {
    %c0_i32 = arith.constant 0 : i32
    %c0_i32_0 = arith.constant 0 : i32
    %c0_i32_1 = arith.constant 0 : i32
    return %c0_i32, %c0_i32_0 : i32, i32
  }
  func.func @transform_2(%arg0: i32) -> (i32, i32) {
    %c0_i32 = arith.constant 0 : i32
    %c0_i32_0 = arith.constant 0 : i32
    %c0_i32_1 = arith.constant 0 : i32
    return %c0_i32, %c0_i32_0 : i32, i32
  }
  func.func @transform_3(%arg0: i32) -> (i32, i32) {
    %c0_i32 = arith.constant 0 : i32
    %c0_i32_0 = arith.constant 0 : i32
    %c0_i32_1 = arith.constant 0 : i32
    return %c0_i32, %c0_i32_0 : i32, i32
  }
  func.func @transform_4(%arg0: i32) -> (i32, i32) {
    %c0_i32 = arith.constant 0 : i32
    %c0_i32_0 = arith.constant 0 : i32
    %c0_i32_1 = arith.constant 0 : i32
    return %c0_i32, %c0_i32_0 : i32, i32
  }
  func.func @transform_5(%arg0: i32) -> (i32, i32) {
    %c0_i32 = arith.constant 0 : i32
    %c0_i32_0 = arith.constant 0 : i32
    return %arg0, %c0_i32 : i32, i32
  }
}

module attributes {stable_mosaic.version = 11 : i64} {
  func.func @_matmul_res_kernel(%arg0: i32, %arg1: memref<32x128xbf16, #tpu.memory_space<vmem>>, %arg2: memref<128x32xbf16, #tpu.memory_space<vmem>>, %arg3: memref<1x32xf32, #tpu.memory_space<vmem>>, %arg4: memref<32x32xbf16, #tpu.memory_space<vmem>>, %arg5: memref<32x32xbf16, #tpu.memory_space<vmem>>) attributes {dimension_semantics = [#tpu.dimension_semantics<parallel>], iteration_bounds = array<i64: 1>, scalar_prefetch = 0 : i64, scratch_operands = 0 : i64, tpu.core_type = #tpu.core_type<tc>, window_params = [{transform_indices = @transform_0, window_bounds = array<i64: 32, 128>}, {pipeline_mode = #tpu.pipeline_mode<synchronous>, transform_indices = @transform_1, window_bounds = array<i64: 128, 32>}, {pipeline_mode = #tpu.pipeline_mode<synchronous>, transform_indices = @transform_2, window_bounds = array<i64: 1, 32>}, {pipeline_mode = #tpu.pipeline_mode<synchronous>, transform_indices = @transform_3, window_bounds = array<i64: 32, 32>}, {transform_indices = @transform_4, window_bounds = array<i64: 32, 32>}]} {
    %c0 = arith.constant 0 : index
    %c0_0 = arith.constant 0 : index
    %0 = vector.load %arg1[%c0, %c0_0] : memref<32x128xbf16, #tpu.memory_space<vmem>>, vector<32x128xbf16>
    %c0_1 = arith.constant 0 : index
    %c0_2 = arith.constant 0 : index
    %1 = vector.load %arg2[%c0_1, %c0_2] : memref<128x32xbf16, #tpu.memory_space<vmem>>, vector<128x32xbf16>
    %cst = arith.constant dense<0.000000e+00> : vector<32x32xf32>
    %2 = tpu.matmul %0, %1, %cst {dimension_numbers = #tpu.dot_dimension_numbers<[1], [0], [0], [1], [0, 0, 1, 1], [], []>} : vector<32x128xbf16>, vector<128x32xbf16>, vector<32x32xf32> -> vector<32x32xf32>
    %c0_3 = arith.constant 0 : index
    %c0_4 = arith.constant 0 : index
    %3 = vector.load %arg3[%c0_3, %c0_4] : memref<1x32xf32, #tpu.memory_space<vmem>>, vector<1x32xf32>
    %4 = vector.broadcast %3 : vector<1x32xf32> to vector<32x32xf32>
    %5 = arith.addf %2, %4 : vector<32x32xf32>
    %c0_5 = arith.constant 0 : index
    %c0_6 = arith.constant 0 : index
    %6 = vector.load %arg4[%c0_5, %c0_6] : memref<32x32xbf16, #tpu.memory_space<vmem>>, vector<32x32xbf16>
    %7 = arith.extf %6 : vector<32x32xbf16> to vector<32x32xf32>
    %8 = arith.addf %5, %7 : vector<32x32xf32>
    %9 = arith.truncf %8 : vector<32x32xf32> to vector<32x32xbf16>
    %c0_7 = arith.constant 0 : index
    %c0_8 = arith.constant 0 : index
    %10 = vector.load %arg5[%c0_7, %c0_8] : memref<32x32xbf16, #tpu.memory_space<vmem>>, vector<32x32xbf16>
    tpu.vector_store %arg5[%c0_7, %c0_8], %9 {strides = array<i32>} : memref<32x32xbf16, #tpu.memory_space<vmem>>, vector<32x32xbf16>,
    return
  }
  func.func @transform_0(%arg0: i32) -> (i32, i32) {
    %c0_i32 = arith.constant 0 : i32
    %c0_i32_0 = arith.constant 0 : i32
    return %arg0, %c0_i32 : i32, i32
  }
  func.func @transform_1(%arg0: i32) -> (i32, i32) {
    %c0_i32 = arith.constant 0 : i32
    %c0_i32_0 = arith.constant 0 : i32
    %c0_i32_1 = arith.constant 0 : i32
    return %c0_i32, %c0_i32_0 : i32, i32
  }
  func.func @transform_2(%arg0: i32) -> (i32, i32) {
    %c0_i32 = arith.constant 0 : i32
    %c0_i32_0 = arith.constant 0 : i32
    %c0_i32_1 = arith.constant 0 : i32
    return %c0_i32, %c0_i32_0 : i32, i32
  }
  func.func @transform_3(%arg0: i32) -> (i32, i32) {
    %c0_i32 = arith.constant 0 : i32
    %c0_i32_0 = arith.constant 0 : i32
    %c0_i32_1 = arith.constant 0 : i32
    return %c0_i32, %c0_i32_0 : i32, i32
  }
  func.func @transform_4(%arg0: i32) -> (i32, i32) {
    %c0_i32 = arith.constant 0 : i32
    %c0_i32_0 = arith.constant 0 : i32
    return %arg0, %c0_i32 : i32, i32
  }
}

module attributes {stable_mosaic.version = 11 : i64} {
  func.func @_matmul_res_kernel(%arg0: i32, %arg1: memref<32x32xbf16, #tpu.memory_space<vmem>>, %arg2: memref<32x32xbf16, #tpu.memory_space<vmem>>, %arg3: memref<1x32xf32, #tpu.memory_space<vmem>>, %arg4: memref<32x32xbf16, #tpu.memory_space<vmem>>) attributes {dimension_semantics = [#tpu.dimension_semantics<parallel>], iteration_bounds = array<i64: 1>, scalar_prefetch = 0 : i64, scratch_operands = 0 : i64, tpu.core_type = #tpu.core_type<tc>, window_params = [{transform_indices = @transform_0, window_bounds = array<i64: 32, 32>}, {pipeline_mode = #tpu.pipeline_mode<synchronous>, transform_indices = @transform_1, window_bounds = array<i64: 32, 32>}, {pipeline_mode = #tpu.pipeline_mode<synchronous>, transform_indices = @transform_2, window_bounds = array<i64: 1, 32>}, {transform_indices = @transform_3, window_bounds = array<i64: 32, 32>}]} {
    %c0 = arith.constant 0 : index
    %c0_0 = arith.constant 0 : index
    %0 = vector.load %arg1[%c0, %c0_0] : memref<32x32xbf16, #tpu.memory_space<vmem>>, vector<32x32xbf16>
    %c0_1 = arith.constant 0 : index
    %c0_2 = arith.constant 0 : index
    %1 = vector.load %arg2[%c0_1, %c0_2] : memref<32x32xbf16, #tpu.memory_space<vmem>>, vector<32x32xbf16>
    %cst = arith.constant dense<0.000000e+00> : vector<32x32xf32>
    %2 = tpu.matmul %0, %1, %cst {dimension_numbers = #tpu.dot_dimension_numbers<[1], [0], [0], [1], [0, 0, 1, 1], [], []>} : vector<32x32xbf16>, vector<32x32xbf16>, vector<32x32xf32> -> vector<32x32xf32>
    %c0_3 = arith.constant 0 : index
    %c0_4 = arith.constant 0 : index
    %3 = vector.load %arg3[%c0_3, %c0_4] : memref<1x32xf32, #tpu.memory_space<vmem>>, vector<1x32xf32>
    %4 = vector.broadcast %3 : vector<1x32xf32> to vector<32x32xf32>
    %5 = arith.addf %2, %4 : vector<32x32xf32>
    %6 = arith.truncf %5 : vector<32x32xf32> to vector<32x32xbf16>
    %c0_5 = arith.constant 0 : index
    %c0_6 = arith.constant 0 : index
    %7 = vector.load %arg4[%c0_5, %c0_6] : memref<32x32xbf16, #tpu.memory_space<vmem>>, vector<32x32xbf16>
    tpu.vector_store %arg4[%c0_5, %c0_6], %6 {strides = array<i32>} : memref<32x32xbf16, #tpu.memory_space<vmem>>, vector<32x32xbf16>,
    return
  }
  func.func @transform_0(%arg0: i32) -> (i32, i32) {
    %c0_i32 = arith.constant 0 : i32
    %c0_i32_0 = arith.constant 0 : i32
    return %arg0, %c0_i32 : i32, i32
  }
  func.func @transform_1(%arg0: i32) -> (i32, i32) {
    %c0_i32 = arith.constant 0 : i32
    %c0_i32_0 = arith.constant 0 : i32
    %c0_i32_1 = arith.constant 0 : i32
    return %c0_i32, %c0_i32_0 : i32, i32
  }
  func.func @transform_2(%arg0: i32) -> (i32, i32) {
    %c0_i32 = arith.constant 0 : i32
    %c0_i32_0 = arith.constant 0 : i32
    %c0_i32_1 = arith.constant 0 : i32
    return %c0_i32, %c0_i32_0 : i32, i32
  }
  func.func @transform_3(%arg0: i32) -> (i32, i32) {
    %c0_i32 = arith.constant 0 : i32
    %c0_i32_0 = arith.constant 0 : i32
    return %arg0, %c0_i32 : i32, i32
  }
}

module attributes {stable_mosaic.version = 11 : i64} {
  func.func @_layernorm_kernel(%arg0: i32, %arg1: memref<32x32xbf16, #tpu.memory_space<vmem>>, %arg2: memref<1x32xf32, #tpu.memory_space<vmem>>, %arg3: memref<1x32xf32, #tpu.memory_space<vmem>>, %arg4: memref<32x32xbf16, #tpu.memory_space<vmem>>) attributes {dimension_semantics = [#tpu.dimension_semantics<parallel>], iteration_bounds = array<i64: 1>, scalar_prefetch = 0 : i64, scratch_operands = 0 : i64, tpu.core_type = #tpu.core_type<tc>, window_params = [{transform_indices = @transform_0, window_bounds = array<i64: 32, 32>}, {pipeline_mode = #tpu.pipeline_mode<synchronous>, transform_indices = @transform_1, window_bounds = array<i64: 1, 32>}, {pipeline_mode = #tpu.pipeline_mode<synchronous>, transform_indices = @transform_2, window_bounds = array<i64: 1, 32>}, {transform_indices = @transform_3, window_bounds = array<i64: 32, 32>}]} {
    %c0 = arith.constant 0 : index
    %c0_0 = arith.constant 0 : index
    %0 = vector.load %arg1[%c0, %c0_0] : memref<32x32xbf16, #tpu.memory_space<vmem>>, vector<32x32xbf16>
    %1 = arith.extf %0 : vector<32x32xbf16> to vector<32x32xf32>
    %c0_1 = arith.constant 0 : index
    %c0_2 = arith.constant 0 : index
    %2 = vector.load %arg2[%c0_1, %c0_2] : memref<1x32xf32, #tpu.memory_space<vmem>>, vector<1x32xf32>
    %c0_3 = arith.constant 0 : index
    %c0_4 = arith.constant 0 : index
    %3 = vector.load %arg3[%c0_3, %c0_4] : memref<1x32xf32, #tpu.memory_space<vmem>>, vector<1x32xf32>
    %cst = arith.constant dense<0.000000e+00> : vector<32xf32>
    %4 = vector.multi_reduction <add>, %1, %cst [1] : vector<32x32xf32> to vector<32xf32>
    %5 = vector.shape_cast %4 : vector<32xf32> to vector<32x1xf32>
    %cst_5 = arith.constant 3.200000e+01 : f32
    %6 = vector.broadcast %cst_5 : f32 to vector<32x1xf32>
    %7 = arith.divf %5, %6 : vector<32x1xf32>
    %8 = vector.broadcast %7 : vector<32x1xf32> to vector<32x32xf32>
    %9 = arith.subf %1, %8 : vector<32x32xf32>
    %10 = arith.mulf %9, %9 : vector<32x32xf32>
    %cst_6 = arith.constant dense<0.000000e+00> : vector<32xf32>
    %11 = vector.multi_reduction <add>, %10, %cst_6 [1] : vector<32x32xf32> to vector<32xf32>
    %12 = vector.shape_cast %11 : vector<32xf32> to vector<32x1xf32>
    %cst_7 = arith.constant 3.200000e+01 : f32
    %13 = vector.broadcast %cst_7 : f32 to vector<32x1xf32>
    %14 = arith.divf %12, %13 : vector<32x1xf32>
    %15 = vector.broadcast %7 : vector<32x1xf32> to vector<32x32xf32>
    %16 = arith.subf %1, %15 : vector<32x32xf32>
    %cst_8 = arith.constant 9.99999997E-7 : f32
    %17 = vector.broadcast %cst_8 : f32 to vector<32x1xf32>
    %18 = arith.addf %14, %17 : vector<32x1xf32>
    %19 = math.rsqrt %18 : vector<32x1xf32>
    %20 = vector.broadcast %19 : vector<32x1xf32> to vector<32x32xf32>
    %21 = arith.mulf %16, %20 : vector<32x32xf32>
    %22 = vector.broadcast %2 : vector<1x32xf32> to vector<32x32xf32>
    %23 = arith.mulf %21, %22 : vector<32x32xf32>
    %24 = vector.broadcast %3 : vector<1x32xf32> to vector<32x32xf32>
    %25 = arith.addf %23, %24 : vector<32x32xf32>
    %26 = arith.truncf %25 : vector<32x32xf32> to vector<32x32xbf16>
    %c0_9 = arith.constant 0 : index
    %c0_10 = arith.constant 0 : index
    %27 = vector.load %arg4[%c0_9, %c0_10] : memref<32x32xbf16, #tpu.memory_space<vmem>>, vector<32x32xbf16>
    tpu.vector_store %arg4[%c0_9, %c0_10], %26 {strides = array<i32>} : memref<32x32xbf16, #tpu.memory_space<vmem>>, vector<32x32xbf16>,
    return
  }
  func.func @transform_0(%arg0: i32) -> (i32, i32) {
    %c0_i32 = arith.constant 0 : i32
    %c0_i32_0 = arith.constant 0 : i32
    return %arg0, %c0_i32 : i32, i32
  }
  func.func @transform_1(%arg0: i32) -> (i32, i32) {
    %c0_i32 = arith.constant 0 : i32
    %c0_i32_0 = arith.constant 0 : i32
    %c0_i32_1 = arith.constant 0 : i32
    return %c0_i32, %c0_i32_0 : i32, i32
  }
  func.func @transform_2(%arg0: i32) -> (i32, i32) {
    %c0_i32 = arith.constant 0 : i32
    %c0_i32_0 = arith.constant 0 : i32
    %c0_i32_1 = arith.constant 0 : i32
    return %c0_i32, %c0_i32_0 : i32, i32
  }
  func.func @transform_3(%arg0: i32) -> (i32, i32) {
    %c0_i32 = arith.constant 0 : i32
    %c0_i32_0 = arith.constant 0 : i32
    return %arg0, %c0_i32 : i32, i32
  }
}

module attributes {stable_mosaic.version = 11 : i64} {
  func.func @_neck_conv3x3_kernel(%arg0: i32, %arg1: memref<1x6x6x32xbf16, #tpu.memory_space<vmem>>, %arg2: memref<3x3x32x32xbf16, #tpu.memory_space<vmem>>, %arg3: memref<1x16x32xbf16, #tpu.memory_space<vmem>>) attributes {dimension_semantics = [#tpu.dimension_semantics<parallel>], iteration_bounds = array<i64: 2>, scalar_prefetch = 0 : i64, scratch_operands = 0 : i64, tpu.core_type = #tpu.core_type<tc>, window_params = [{transform_indices = @transform_0, window_bounds = array<i64: 1, 6, 6, 32>}, {pipeline_mode = #tpu.pipeline_mode<synchronous>, transform_indices = @transform_1, window_bounds = array<i64: 3, 3, 32, 32>}, {transform_indices = @transform_2, window_bounds = array<i64: 1, 16, 32>}]} {
    %c0 = arith.constant 0 : index
    %c0_0 = arith.constant 0 : index
    %c0_1 = arith.constant 0 : index
    %c0_2 = arith.constant 0 : index
    %0 = vector.load %arg1[%c0, %c0_0, %c0_1, %c0_2] : memref<1x6x6x32xbf16, #tpu.memory_space<vmem>>, vector<1x4x4x32xbf16>
    %1 = vector.shape_cast %0 : vector<1x4x4x32xbf16> to vector<4x4x32xbf16>
    %2 = vector.shape_cast %1 : vector<4x4x32xbf16> to vector<16x32xbf16>
    %c0_3 = arith.constant 0 : index
    %c0_4 = arith.constant 0 : index
    %c0_5 = arith.constant 0 : index
    %c0_6 = arith.constant 0 : index
    %3 = vector.load %arg2[%c0_3, %c0_4, %c0_5, %c0_6] : memref<3x3x32x32xbf16, #tpu.memory_space<vmem>>, vector<1x1x32x32xbf16>
    %4 = vector.shape_cast %3 : vector<1x1x32x32xbf16> to vector<32x32xbf16>
    %cst = arith.constant dense<0.000000e+00> : vector<16x32xf32>
    %5 = tpu.matmul %2, %4, %cst {dimension_numbers = #tpu.dot_dimension_numbers<[1], [0], [0], [1], [0, 0, 1, 1], [], []>} : vector<16x32xbf16>, vector<32x32xbf16>, vector<16x32xf32> -> vector<16x32xf32>
    %c0_7 = arith.constant 0 : index
    %c0_8 = arith.constant 0 : index
    %c1 = arith.constant 1 : index
    %c0_9 = arith.constant 0 : index
    %6 = vector.load %arg1[%c0_7, %c0_8, %c1, %c0_9] : memref<1x6x6x32xbf16, #tpu.memory_space<vmem>>, vector<1x4x4x32xbf16>
    %7 = vector.shape_cast %6 : vector<1x4x4x32xbf16> to vector<4x4x32xbf16>
    %8 = vector.shape_cast %7 : vector<4x4x32xbf16> to vector<16x32xbf16>
    %c0_10 = arith.constant 0 : index
    %c1_11 = arith.constant 1 : index
    %c0_12 = arith.constant 0 : index
    %c0_13 = arith.constant 0 : index
    %9 = vector.load %arg2[%c0_10, %c1_11, %c0_12, %c0_13] : memref<3x3x32x32xbf16, #tpu.memory_space<vmem>>, vector<1x1x32x32xbf16>
    %10 = vector.shape_cast %9 : vector<1x1x32x32xbf16> to vector<32x32xbf16>
    %cst_14 = arith.constant dense<0.000000e+00> : vector<16x32xf32>
    %11 = tpu.matmul %8, %10, %cst_14 {dimension_numbers = #tpu.dot_dimension_numbers<[1], [0], [0], [1], [0, 0, 1, 1], [], []>} : vector<16x32xbf16>, vector<32x32xbf16>, vector<16x32xf32> -> vector<16x32xf32>
    %12 = arith.addf %5, %11 : vector<16x32xf32>
    %c0_15 = arith.constant 0 : index
    %c0_16 = arith.constant 0 : index
    %c2 = arith.constant 2 : index
    %c0_17 = arith.constant 0 : index
    %13 = vector.load %arg1[%c0_15, %c0_16, %c2, %c0_17] : memref<1x6x6x32xbf16, #tpu.memory_space<vmem>>, vector<1x4x4x32xbf16>
    %14 = vector.shape_cast %13 : vector<1x4x4x32xbf16> to vector<4x4x32xbf16>
    %15 = vector.shape_cast %14 : vector<4x4x32xbf16> to vector<16x32xbf16>
    %c0_18 = arith.constant 0 : index
    %c2_19 = arith.constant 2 : index
    %c0_20 = arith.constant 0 : index
    %c0_21 = arith.constant 0 : index
    %16 = vector.load %arg2[%c0_18, %c2_19, %c0_20, %c0_21] : memref<3x3x32x32xbf16, #tpu.memory_space<vmem>>, vector<1x1x32x32xbf16>
    %17 = vector.shape_cast %16 : vector<1x1x32x32xbf16> to vector<32x32xbf16>
    %cst_22 = arith.constant dense<0.000000e+00> : vector<16x32xf32>
    %18 = tpu.matmul %15, %17, %cst_22 {dimension_numbers = #tpu.dot_dimension_numbers<[1], [0], [0], [1], [0, 0, 1, 1], [], []>} : vector<16x32xbf16>, vector<32x32xbf16>, vector<16x32xf32> -> vector<16x32xf32>
    %19 = arith.addf %12, %18 : vector<16x32xf32>
    %c0_23 = arith.constant 0 : index
    %c1_24 = arith.constant 1 : index
    %c0_25 = arith.constant 0 : index
    %c0_26 = arith.constant 0 : index
    %20 = vector.load %arg1[%c0_23, %c1_24, %c0_25, %c0_26] : memref<1x6x6x32xbf16, #tpu.memory_space<vmem>>, vector<1x4x4x32xbf16>
    %21 = vector.shape_cast %20 : vector<1x4x4x32xbf16> to vector<4x4x32xbf16>
    %22 = vector.shape_cast %21 : vector<4x4x32xbf16> to vector<16x32xbf16>
    %c1_27 = arith.constant 1 : index
    %c0_28 = arith.constant 0 : index
    %c0_29 = arith.constant 0 : index
    %c0_30 = arith.constant 0 : index
    %23 = vector.load %arg2[%c1_27, %c0_28, %c0_29, %c0_30] : memref<3x3x32x32xbf16, #tpu.memory_space<vmem>>, vector<1x1x32x32xbf16>
    %24 = vector.shape_cast %23 : vector<1x1x32x32xbf16> to vector<32x32xbf16>
    %cst_31 = arith.constant dense<0.000000e+00> : vector<16x32xf32>
    %25 = tpu.matmul %22, %24, %cst_31 {dimension_numbers = #tpu.dot_dimension_numbers<[1], [0], [0], [1], [0, 0, 1, 1], [], []>} : vector<16x32xbf16>, vector<32x32xbf16>, vector<16x32xf32> -> vector<16x32xf32>
    %26 = arith.addf %19, %25 : vector<16x32xf32>
    %c0_32 = arith.constant 0 : index
    %c1_33 = arith.constant 1 : index
    %c1_34 = arith.constant 1 : index
    %c0_35 = arith.constant 0 : index
    %27 = vector.load %arg1[%c0_32, %c1_33, %c1_34, %c0_35] : memref<1x6x6x32xbf16, #tpu.memory_space<vmem>>, vector<1x4x4x32xbf16>
    %28 = vector.shape_cast %27 : vector<1x4x4x32xbf16> to vector<4x4x32xbf16>
    %29 = vector.shape_cast %28 : vector<4x4x32xbf16> to vector<16x32xbf16>
    %c1_36 = arith.constant 1 : index
    %c1_37 = arith.constant 1 : index
    %c0_38 = arith.constant 0 : index
    %c0_39 = arith.constant 0 : index
    %30 = vector.load %arg2[%c1_36, %c1_37, %c0_38, %c0_39] : memref<3x3x32x32xbf16, #tpu.memory_space<vmem>>, vector<1x1x32x32xbf16>
    %31 = vector.shape_cast %30 : vector<1x1x32x32xbf16> to vector<32x32xbf16>
    %cst_40 = arith.constant dense<0.000000e+00> : vector<16x32xf32>
    %32 = tpu.matmul %29, %31, %cst_40 {dimension_numbers = #tpu.dot_dimension_numbers<[1], [0], [0], [1], [0, 0, 1, 1], [], []>} : vector<16x32xbf16>, vector<32x32xbf16>, vector<16x32xf32> -> vector<16x32xf32>
    %33 = arith.addf %26, %32 : vector<16x32xf32>
    %c0_41 = arith.constant 0 : index
    %c1_42 = arith.constant 1 : index
    %c2_43 = arith.constant 2 : index
    %c0_44 = arith.constant 0 : index
    %34 = vector.load %arg1[%c0_41, %c1_42, %c2_43, %c0_44] : memref<1x6x6x32xbf16, #tpu.memory_space<vmem>>, vector<1x4x4x32xbf16>
    %35 = vector.shape_cast %34 : vector<1x4x4x32xbf16> to vector<4x4x32xbf16>
    %36 = vector.shape_cast %35 : vector<4x4x32xbf16> to vector<16x32xbf16>
    %c1_45 = arith.constant 1 : index
    %c2_46 = arith.constant 2 : index
    %c0_47 = arith.constant 0 : index
    %c0_48 = arith.constant 0 : index
    %37 = vector.load %arg2[%c1_45, %c2_46, %c0_47, %c0_48] : memref<3x3x32x32xbf16, #tpu.memory_space<vmem>>, vector<1x1x32x32xbf16>
    %38 = vector.shape_cast %37 : vector<1x1x32x32xbf16> to vector<32x32xbf16>
    %cst_49 = arith.constant dense<0.000000e+00> : vector<16x32xf32>
    %39 = tpu.matmul %36, %38, %cst_49 {dimension_numbers = #tpu.dot_dimension_numbers<[1], [0], [0], [1], [0, 0, 1, 1], [], []>} : vector<16x32xbf16>, vector<32x32xbf16>, vector<16x32xf32> -> vector<16x32xf32>
    %40 = arith.addf %33, %39 : vector<16x32xf32>
    %c0_50 = arith.constant 0 : index
    %c2_51 = arith.constant 2 : index
    %c0_52 = arith.constant 0 : index
    %c0_53 = arith.constant 0 : index
    %41 = vector.load %arg1[%c0_50, %c2_51, %c0_52, %c0_53] : memref<1x6x6x32xbf16, #tpu.memory_space<vmem>>, vector<1x4x4x32xbf16>
    %42 = vector.shape_cast %41 : vector<1x4x4x32xbf16> to vector<4x4x32xbf16>
    %43 = vector.shape_cast %42 : vector<4x4x32xbf16> to vector<16x32xbf16>
    %c2_54 = arith.constant 2 : index
    %c0_55 = arith.constant 0 : index
    %c0_56 = arith.constant 0 : index
    %c0_57 = arith.constant 0 : index
    %44 = vector.load %arg2[%c2_54, %c0_55, %c0_56, %c0_57] : memref<3x3x32x32xbf16, #tpu.memory_space<vmem>>, vector<1x1x32x32xbf16>
    %45 = vector.shape_cast %44 : vector<1x1x32x32xbf16> to vector<32x32xbf16>
    %cst_58 = arith.constant dense<0.000000e+00> : vector<16x32xf32>
    %46 = tpu.matmul %43, %45, %cst_58 {dimension_numbers = #tpu.dot_dimension_numbers<[1], [0], [0], [1], [0, 0, 1, 1], [], []>} : vector<16x32xbf16>, vector<32x32xbf16>, vector<16x32xf32> -> vector<16x32xf32>
    %47 = arith.addf %40, %46 : vector<16x32xf32>
    %c0_59 = arith.constant 0 : index
    %c2_60 = arith.constant 2 : index
    %c1_61 = arith.constant 1 : index
    %c0_62 = arith.constant 0 : index
    %48 = vector.load %arg1[%c0_59, %c2_60, %c1_61, %c0_62] : memref<1x6x6x32xbf16, #tpu.memory_space<vmem>>, vector<1x4x4x32xbf16>
    %49 = vector.shape_cast %48 : vector<1x4x4x32xbf16> to vector<4x4x32xbf16>
    %50 = vector.shape_cast %49 : vector<4x4x32xbf16> to vector<16x32xbf16>
    %c2_63 = arith.constant 2 : index
    %c1_64 = arith.constant 1 : index
    %c0_65 = arith.constant 0 : index
    %c0_66 = arith.constant 0 : index
    %51 = vector.load %arg2[%c2_63, %c1_64, %c0_65, %c0_66] : memref<3x3x32x32xbf16, #tpu.memory_space<vmem>>, vector<1x1x32x32xbf16>
    %52 = vector.shape_cast %51 : vector<1x1x32x32xbf16> to vector<32x32xbf16>
    %cst_67 = arith.constant dense<0.000000e+00> : vector<16x32xf32>
    %53 = tpu.matmul %50, %52, %cst_67 {dimension_numbers = #tpu.dot_dimension_numbers<[1], [0], [0], [1], [0, 0, 1, 1], [], []>} : vector<16x32xbf16>, vector<32x32xbf16>, vector<16x32xf32> -> vector<16x32xf32>
    %54 = arith.addf %47, %53 : vector<16x32xf32>
    %c0_68 = arith.constant 0 : index
    %c2_69 = arith.constant 2 : index
    %c2_70 = arith.constant 2 : index
    %c0_71 = arith.constant 0 : index
    %55 = vector.load %arg1[%c0_68, %c2_69, %c2_70, %c0_71] : memref<1x6x6x32xbf16, #tpu.memory_space<vmem>>, vector<1x4x4x32xbf16>
    %56 = vector.shape_cast %55 : vector<1x4x4x32xbf16> to vector<4x4x32xbf16>
    %57 = vector.shape_cast %56 : vector<4x4x32xbf16> to vector<16x32xbf16>
    %c2_72 = arith.constant 2 : index
    %c2_73 = arith.constant 2 : index
    %c0_74 = arith.constant 0 : index
    %c0_75 = arith.constant 0 : index
    %58 = vector.load %arg2[%c2_72, %c2_73, %c0_74, %c0_75] : memref<3x3x32x32xbf16, #tpu.memory_space<vmem>>, vector<1x1x32x32xbf16>
    %59 = vector.shape_cast %58 : vector<1x1x32x32xbf16> to vector<32x32xbf16>
    %cst_76 = arith.constant dense<0.000000e+00> : vector<16x32xf32>
    %60 = tpu.matmul %57, %59, %cst_76 {dimension_numbers = #tpu.dot_dimension_numbers<[1], [0], [0], [1], [0, 0, 1, 1], [], []>} : vector<16x32xbf16>, vector<32x32xbf16>, vector<16x32xf32> -> vector<16x32xf32>
    %61 = arith.addf %54, %60 : vector<16x32xf32>
    %62 = arith.truncf %61 : vector<16x32xf32> to vector<16x32xbf16>
    %c0_77 = arith.constant 0 : index
    %c0_78 = arith.constant 0 : index
    %c0_79 = arith.constant 0 : index
    %63 = vector.load %arg3[%c0_77, %c0_78, %c0_79] : memref<1x16x32xbf16, #tpu.memory_space<vmem>>, vector<1x16x32xbf16>
    %64 = vector.shape_cast %63 : vector<1x16x32xbf16> to vector<16x32xbf16>
    %65 = vector.shape_cast %62 : vector<16x32xbf16> to vector<1x16x32xbf16>
    tpu.vector_store %arg3[%c0_77, %c0_78, %c0_79], %65 {strides = array<i32>} : memref<1x16x32xbf16, #tpu.memory_space<vmem>>, vector<1x16x32xbf16>,
    return
  }
  func.func @transform_0(%arg0: i32) -> (i32, i32, i32, i32) {
    %c0_i32 = arith.constant 0 : i32
    %c0_i32_0 = arith.constant 0 : i32
    %c0_i32_1 = arith.constant 0 : i32
    %c0_i32_2 = arith.constant 0 : i32
    return %arg0, %c0_i32, %c0_i32_0, %c0_i32_1 : i32, i32, i32, i32
  }
  func.func @transform_1(%arg0: i32) -> (i32, i32, i32, i32) {
    %c0_i32 = arith.constant 0 : i32
    %c0_i32_0 = arith.constant 0 : i32
    %c0_i32_1 = arith.constant 0 : i32
    %c0_i32_2 = arith.constant 0 : i32
    %c0_i32_3 = arith.constant 0 : i32
    return %c0_i32, %c0_i32_0, %c0_i32_1, %c0_i32_2 : i32, i32, i32, i32
  }
  func.func @transform_2(%arg0: i32) -> (i32, i32, i32) {
    %c0_i32 = arith.constant 0 : i32
    %c0_i32_0 = arith.constant 0 : i32
    %c0_i32_1 = arith.constant 0 : i32
    return %arg0, %c0_i32, %c0_i32_0 : i32, i32, i32
  }
}

module attributes {stable_mosaic.version = 11 : i64} {
  func.func @_layernorm_kernel(%arg0: i32, %arg1: memref<32x32xbf16, #tpu.memory_space<vmem>>, %arg2: memref<1x32xf32, #tpu.memory_space<vmem>>, %arg3: memref<1x32xf32, #tpu.memory_space<vmem>>, %arg4: memref<32x32xf32, #tpu.memory_space<vmem>>) attributes {dimension_semantics = [#tpu.dimension_semantics<parallel>], iteration_bounds = array<i64: 1>, scalar_prefetch = 0 : i64, scratch_operands = 0 : i64, tpu.core_type = #tpu.core_type<tc>, window_params = [{transform_indices = @transform_0, window_bounds = array<i64: 32, 32>}, {pipeline_mode = #tpu.pipeline_mode<synchronous>, transform_indices = @transform_1, window_bounds = array<i64: 1, 32>}, {pipeline_mode = #tpu.pipeline_mode<synchronous>, transform_indices = @transform_2, window_bounds = array<i64: 1, 32>}, {transform_indices = @transform_3, window_bounds = array<i64: 32, 32>}]} {
    %c0 = arith.constant 0 : index
    %c0_0 = arith.constant 0 : index
    %0 = vector.load %arg1[%c0, %c0_0] : memref<32x32xbf16, #tpu.memory_space<vmem>>, vector<32x32xbf16>
    %1 = arith.extf %0 : vector<32x32xbf16> to vector<32x32xf32>
    %c0_1 = arith.constant 0 : index
    %c0_2 = arith.constant 0 : index
    %2 = vector.load %arg2[%c0_1, %c0_2] : memref<1x32xf32, #tpu.memory_space<vmem>>, vector<1x32xf32>
    %c0_3 = arith.constant 0 : index
    %c0_4 = arith.constant 0 : index
    %3 = vector.load %arg3[%c0_3, %c0_4] : memref<1x32xf32, #tpu.memory_space<vmem>>, vector<1x32xf32>
    %cst = arith.constant dense<0.000000e+00> : vector<32xf32>
    %4 = vector.multi_reduction <add>, %1, %cst [1] : vector<32x32xf32> to vector<32xf32>
    %5 = vector.shape_cast %4 : vector<32xf32> to vector<32x1xf32>
    %cst_5 = arith.constant 3.200000e+01 : f32
    %6 = vector.broadcast %cst_5 : f32 to vector<32x1xf32>
    %7 = arith.divf %5, %6 : vector<32x1xf32>
    %8 = vector.broadcast %7 : vector<32x1xf32> to vector<32x32xf32>
    %9 = arith.subf %1, %8 : vector<32x32xf32>
    %10 = arith.mulf %9, %9 : vector<32x32xf32>
    %cst_6 = arith.constant dense<0.000000e+00> : vector<32xf32>
    %11 = vector.multi_reduction <add>, %10, %cst_6 [1] : vector<32x32xf32> to vector<32xf32>
    %12 = vector.shape_cast %11 : vector<32xf32> to vector<32x1xf32>
    %cst_7 = arith.constant 3.200000e+01 : f32
    %13 = vector.broadcast %cst_7 : f32 to vector<32x1xf32>
    %14 = arith.divf %12, %13 : vector<32x1xf32>
    %15 = vector.broadcast %7 : vector<32x1xf32> to vector<32x32xf32>
    %16 = arith.subf %1, %15 : vector<32x32xf32>
    %cst_8 = arith.constant 9.99999997E-7 : f32
    %17 = vector.broadcast %cst_8 : f32 to vector<32x1xf32>
    %18 = arith.addf %14, %17 : vector<32x1xf32>
    %19 = math.rsqrt %18 : vector<32x1xf32>
    %20 = vector.broadcast %19 : vector<32x1xf32> to vector<32x32xf32>
    %21 = arith.mulf %16, %20 : vector<32x32xf32>
    %22 = vector.broadcast %2 : vector<1x32xf32> to vector<32x32xf32>
    %23 = arith.mulf %21, %22 : vector<32x32xf32>
    %24 = vector.broadcast %3 : vector<1x32xf32> to vector<32x32xf32>
    %25 = arith.addf %23, %24 : vector<32x32xf32>
    %c0_9 = arith.constant 0 : index
    %c0_10 = arith.constant 0 : index
    %26 = vector.load %arg4[%c0_9, %c0_10] : memref<32x32xf32, #tpu.memory_space<vmem>>, vector<32x32xf32>
    tpu.vector_store %arg4[%c0_9, %c0_10], %25 {strides = array<i32>} : memref<32x32xf32, #tpu.memory_space<vmem>>, vector<32x32xf32>,
    return
  }
  func.func @transform_0(%arg0: i32) -> (i32, i32) {
    %c0_i32 = arith.constant 0 : i32
    %c0_i32_0 = arith.constant 0 : i32
    return %arg0, %c0_i32 : i32, i32
  }
  func.func @transform_1(%arg0: i32) -> (i32, i32) {
    %c0_i32 = arith.constant 0 : i32
    %c0_i32_0 = arith.constant 0 : i32
    %c0_i32_1 = arith.constant 0 : i32
    return %c0_i32, %c0_i32_0 : i32, i32
  }
  func.func @transform_2(%arg0: i32) -> (i32, i32) {
    %c0_i32 = arith.constant 0 : i32
    %c0_i32_0 = arith.constant 0 : i32
    %c0_i32_1 = arith.constant 0 : i32
    return %c0_i32, %c0_i32_0 : i32, i32
  }
  func.func @transform_3(%arg0: i32) -> (i32, i32) {
    %c0_i32 = arith.constant 0 : i32
    %c0_i32_0 = arith.constant 0 : i32
    return %arg0, %c0_i32 : i32, i32
  }
}

</mosaic_0001>

<llo_original>
// kernel: image_encoder_vit.18
$region0: #{image_encoder_vit.18}
  #allocation0 [shape = 'u32[]', space=smem, size = 0x4, offset = 0x4, fixed_abs, tag = 'smem constant byte address 0x4 - core index']
  #allocation1 [shape = 'u32[144,128]{1,0:T(1,128)}', space=vmem, size = 0x12000, scoped, tag = 'internal scratch']
  %s0 = inlined_call_operand.vmem [shape: bf16[32,32], index: 0, kind: input, shape index: {}]
  %s1 = inlined_call_operand.vmem [shape: bf16[32,32], index: 1, kind: input, shape index: {}]
  %s2 = inlined_call_operand.vmem [shape: f32[1,32], index: 2, kind: input, shape index: {}]
  %s3 = inlined_call_operand.vmem [shape: bf16[32,32], index: 3, kind: input, shape index: {}]
  %s4 = inlined_call_operand.vmem [shape: bf16[32,32], index: 4, kind: output, shape index: {}]
  %s5 = sld [smem:[#allocation0]]
  $region26: #{image_encoder_vit.18} parent=0
    _
  %s7 = ssub.s32 1, %s5
  %s8 = scalar_select 0, %s7, %s5
  // Predicated region
  $region2: #{image_encoder_vit.18} parent=0 // pred_check
    _
  $region3: #{image_encoder_vit.18} parent=0 // pred_check_branch
    %10 = sbr.rel (0) target = $region5
  $region4: #{image_encoder_vit.18} parent=0 // pred_region
    _
  $region5: #{image_encoder_vit.18} parent=0 // pred_fallthru
    _
  // Predicated region
  $region6: #{image_encoder_vit.18} parent=0 // pred_check
    _
  $region7: #{image_encoder_vit.18} parent=0 // pred_check_branch
    %12 = sbr.rel (0) target = $region9
  $region8: #{image_encoder_vit.18} parent=0 // pred_region
    _
  $region9: #{image_encoder_vit.18} parent=0 // pred_fallthru
    _
  // Predicated region
  $region10: #{image_encoder_vit.18} parent=0 // pred_check
    _
  $region11: #{image_encoder_vit.18} parent=0 // pred_check_branch
    %14 = sbr.rel (0) target = $region13
  $region12: #{image_encoder_vit.18} parent=0 // pred_region
    _
  $region13: #{image_encoder_vit.18} parent=0 // pred_fallthru
    _
  // Predicated region
  $region14: #{image_encoder_vit.18} parent=0 // pred_check
    _
  $region15: #{image_encoder_vit.18} parent=0 // pred_check_branch
    %16 = sbr.rel (0) target = $region17
  $region16: #{image_encoder_vit.18} parent=0 // pred_region
    _
  $region17: #{image_encoder_vit.18} parent=0 // pred_fallthru
    _
  %v18 = vld [vmem:[%s0] sm:$0xf]
  %v19 = vld [vmem:[%s0 + $0x4] sm:$0xf]
  %v20 = vld [vmem:[%s0 + $0x8] sm:$0xf]
  %v21 = vld [vmem:[%s0 + $0xc] sm:$0xf]
  %v22 = vld [vmem:[%s1] sm:$0xf]
  %v23 = vld [vmem:[%s1 + $0x4] sm:$0xf]
  %v24 = vld [vmem:[%s1 + $0x8] sm:$0xf]
  %v25 = vld [vmem:[%s1 + $0xc] sm:$0xf]
  %v26 = vld [vmem:[%s2] sm:$0x1]
  %v28 = vlaneseq
  %v29 = vshrl.u32 %v28, 7
  %v30 = vsub.s32 0, %v29
  %v31 = vrot.slane %v26, %v30
  %v37 = vunpack.c.l.b16 %v18
  %v38 = vunpack.c.l.b16 %v19
  %v39 = vunpack.c.l.b16 %v20
  %v40 = vunpack.c.l.b16 %v21
  %v41 = vpack.c.b16 %v38, %v37
  %v42 = vpack.c.b16 %v40, %v39
  %v47 = vunpack.c.l.b16 %v22
  %v48 = vunpack.c.l.b16 %v23
  %v49 = vunpack.c.l.b16 %v24
  %v50 = vunpack.c.l.b16 %v25
  %v51 = vpack.c.b16 %v48, %v47
  %v52 = vpack.c.b16 %v50, %v49
  %vm55 = vcmask 261120
  %v57 = vsel %vm55, %v41, 0
  %v60 = vsel %vm55, %v42, 0
  %62 = vmatprep.subr.bf16.mxu0 0
  %63 = vmatpush1.bf16.msra.mxu0 %v51
  %64 = vmatprep.subr.bf16.mxu0 0
  %65 = vmatpush1.bf16.msra.mxu0 %v52
  %66 = vmatprep.subr.bf16.mxu0 0
  %67 = vmatpush1.bf16.msra.mxu0 0
  %68 = vmatprep.subr.bf16.mxu0 0
  %69 = vmatpush1.bf16.msra.mxu0 0
  %70 = vmatprep.subr.bf16.mxu0 0
  %71 = vmatpush1.bf16.msra.mxu0 0
  %72 = vmatprep.subr.bf16.mxu0 0
  %73 = vmatpush1.bf16.msra.mxu0 0
  %74 = vmatprep.subr.bf16.mxu0 0
  %75 = vmatpush1.bf16.msra.mxu0 0
  %76 = vmatprep.subr.bf16.mxu0 0
  %77 = vmatpush1.bf16.msra.mxu0 0
  %78 = vmatprep.subr.bf16.mxu0 0
  %79 = vmatpush1.bf16.msra.mxu0 0
  %80 = vmatprep.subr.bf16.mxu0 0
  %81 = vmatpush1.bf16.msra.mxu0 0
  %82 = vmatprep.subr.bf16.mxu0 0
  %83 = vmatpush1.bf16.msra.mxu0 0
  %84 = vmatprep.subr.bf16.mxu0 0
  %85 = vmatpush1.bf16.msra.mxu0 0
  %86 = vmatprep.subr.bf16.mxu0 0
  %87 = vmatpush1.bf16.msra.mxu0 0
  %88 = vmatprep.subr.bf16.mxu0 0
  %89 = vmatpush1.bf16.msra.mxu0 0
  %90 = vmatprep.subr.bf16.mxu0 0
  %91 = vmatpush1.bf16.msra.mxu0 0
  %92 = vmatprep.subr.bf16.mxu0 0
  %93 = vmatpush1.bf16.msra.mxu0 0
  %94 = vmatprep.mubr.bf16.mxu0 0
  %95 = vmatmul.mubr.bf16.gmra.mrb[0].mxu0 %v57
  %v96 = vpop.f32.mrb[0].mxu0
  %v97 = vadd.f32 %v31, %v96
  %v98 = vpop.f32.mrb[0].mxu0
  %v99 = vpop.f32.mrb[0].mxu0
  %v100 = vadd.f32 %v31, %v99
  %v101 = vpop.f32.mrb[0].mxu0
  %102 = vmatprep.mubr.bf16.mxu0 0
  %103 = vmatmul.mubr.bf16.gmra.mrb[0].mxu0 %v60
  %v104 = vpop.f32.mrb[0].mxu0
  %v105 = vadd.f32 %v31, %v104
  %v106 = vpop.f32.mrb[0].mxu0
  %v107 = vpop.f32.mrb[0].mxu0
  %v108 = vadd.f32 %v31, %v107
  %v109 = vpop.f32.mrb[0].mxu0
  %110 = vdwg.mxu0
  %v111 = vld [vmem:[%s3] sm:$0xf]
  %v112 = vld [vmem:[%s3 + $0x4] sm:$0xf]
  %v113 = vld [vmem:[%s3 + $0x8] sm:$0xf]
  %v114 = vld [vmem:[%s3 + $0xc] sm:$0xf]
  %v115 = vunpack.c.l.bf16 %v111
  %v116 = vunpack.c.l.bf16 %v112
  %v117 = vunpack.c.l.bf16 %v113
  %v118 = vunpack.c.l.bf16 %v114
  %v119 = vadd.f32 %v97, %v115
  %v120 = vadd.f32 %v100, %v116
  %v121 = vadd.f32 %v105, %v117
  %v122 = vadd.f32 %v108, %v118
  %v123 = vpack.c.bf16 %v120, %v119
  %v124 = vpack.c.bf16 %v122, %v121
  %v127 = vunpack.c.l.b16 %v123
  %v128 = vunpack.c.h.b16 %v123
  %v129 = vunpack.c.l.b16 %v124
  %v130 = vunpack.c.h.b16 %v124
  %v131 = vpack.c.b16 %v127, %v127
  %v132 = vpack.c.b16 %v128, %v128
  %v133 = vpack.c.b16 %v129, %v129
  %v134 = vpack.c.b16 %v130, %v130
  %vm139 = vcmask 257024
  %140 = vst.msk [vmem:[%s4] sm:$0xf] %vm139, %v131
  %141 = vst.msk [vmem:[%s4 + $0x4] sm:$0xf] %vm139, %v132
  %142 = vst.msk [vmem:[%s4 + $0x8] sm:$0xf] %vm139, %v133
  %143 = vst.msk [vmem:[%s4 + $0xc] sm:$0xf] %vm139, %v134
  // Predicated region
  $region18: #{image_encoder_vit.18} parent=0 // pred_check
    _
  $region19: #{image_encoder_vit.18} parent=0 // pred_check_branch
    %145 = sbr.rel (0) target = $region21
  $region20: #{image_encoder_vit.18} parent=0 // pred_region
    _
  $region21: #{image_encoder_vit.18} parent=0 // pred_fallthru
    _
  // Predicated region
  $region22: #{image_encoder_vit.18} parent=0 // pred_check
    _
  $region23: #{image_encoder_vit.18} parent=0 // pred_check_branch
    %147 = sbr.rel (0) target = $region25
  $region24: #{image_encoder_vit.18} parent=0 // pred_region
    _
  $region25: #{image_encoder_vit.18} parent=0 // pred_fallthru
    _

// kernel: image_encoder_vit.15
$region0: #{image_encoder_vit.15}
  #allocation0 [shape = 'u32[]', space=smem, size = 0x4, offset = 0x4, fixed_abs, tag = 'smem constant byte address 0x4 - core index']
  #allocation1 [shape = 'u32[144,128]{1,0:T(1,128)}', space=vmem, size = 0x12000, scoped, tag = 'internal scratch']
  %s0 = inlined_call_operand.vmem [shape: bf16[32,48], index: 0, kind: input, shape index: {}]
  %s1 = inlined_call_operand.vmem [shape: bf16[48,32], index: 1, kind: input, shape index: {}]
  %s2 = inlined_call_operand.vmem [shape: f32[1,32], index: 2, kind: input, shape index: {}]
  %s3 = inlined_call_operand.vmem [shape: bf16[16,32], index: 3, kind: input, shape index: {}]
  %s4 = inlined_call_operand.vmem [shape: bf16[32,32], index: 4, kind: output, shape index: {}]
  %s5 = sld [smem:[#allocation0]]
  $region49: #{image_encoder_vit.15} parent=0
    _
  %s7 = ssub.s32 1, %s5
  %s8 = scalar_select 0, %s7, %s5
  loop: start=0, step=1, limit=4
  $region2: #{image_encoder_vit.15} parent=0 // loop_pre_header
    _
  $region3: #{image_encoder_vit.15} parent=0 // loop_header
    %s10 = sphi 0, %s14
    %p11 = scmp.ge.s32.totalorder %s10, 4
    %s20 = sphi 0, %s22
    %s23 = sphi 0, %s20
    %s24 = sphi 0, %s23
    %s40 = sphi 0, %s24
    %s44 = sphi 0, %s44
    %s46 = sphi 0, %s44
    %s47 = sphi 0, %s46
    %s61 = sphi 0, %s47
    %s65 = sphi 0, %s65
    %s67 = sphi 0, %s65
    %s68 = sphi 0, %s67
    %s82 = sphi 0, %s68
    %s86 = sphi 0, %s86
    %s88 = sphi 0, %s86
    %s89 = sphi 0, %s88
    %s103 = sphi 0, %s89
    %s109 = sphi 0, %s111
    %s112 = sphi 0, %s109
    %s113 = sphi 0, %s112
    %s129 = sphi 0, %s113
  $region4: #{image_encoder_vit.15} parent=0 // loop_header_branch
    %13 = sbr.rel (%p11) target = $region8
  $region5: #{image_encoder_vit.15} parent=0 // loop_body
    %s15 = ssub.s32 %s10, 1
    %s16 = ssub.s32 %s10, 2
    %s17 = sadd.s32 %s10, 1
    %s18 = ssub.s32 %s10, %s17
    %p19 = scmp.eq.s32.totalorder %s18, 0
    %s21 = sadd.s32 %s20, 1
    %s22 = scalar_select %p19, %s20, %s21
    %p25 = pneg %p19
    %p26 = scmp.eq.s32.totalorder %s10, 1
    %p27 = por %p25, %p26
    %p28 = scmp.ne.s32.totalorder %s20, %s23
    %p29 = scmp.eq.s32.totalorder %s10, 0
    %p30 = por %p28, %p29
    %p31 = scmp.ne.s32.totalorder %s20, %s23
    %p32 = scmp.eq.s32.totalorder %s15, 1
    %p33 = por %p31, %p32
    %p34 = scmp.ne.s32.totalorder %s23, %s24
    %p35 = scmp.eq.s32.totalorder %s15, 0
    %p36 = por %p34, %p35
    %p37 = scmp.ne.s32.totalorder %s23, %s24
    %p38 = scmp.eq.s32.totalorder %s16, 1
    %p39 = por %p37, %p38
    %p41 = scmp.ne.s32.totalorder %s24, %s40
    %p42 = scmp.eq.s32.totalorder %s16, 0
    %p43 = por %p41, %p42
    %s45 = sadd.s32 %s44, 1
    %p48 = scmp.eq.s32.totalorder %s10, 1
    %p49 = scmp.ne.s32.totalorder %s44, %s46
    %p50 = scmp.eq.s32.totalorder %s10, 0
    %p51 = por %p49, %p50
    %p52 = scmp.ne.s32.totalorder %s44, %s46
    %p53 = scmp.eq.s32.totalorder %s15, 1
    %p54 = por %p52, %p53
    %p55 = scmp.ne.s32.totalorder %s46, %s47
    %p56 = scmp.eq.s32.totalorder %s15, 0
    %p57 = por %p55, %p56
    %p58 = scmp.ne.s32.totalorder %s46, %s47
    %p59 = scmp.eq.s32.totalorder %s16, 1
    %p60 = por %p58, %p59
    %p62 = scmp.ne.s32.totalorder %s47, %s61
    %p63 = scmp.eq.s32.totalorder %s16, 0
    %p64 = por %p62, %p63
    %s66 = sadd.s32 %s65, 1
    %p69 = scmp.eq.s32.totalorder %s10, 1
    %p70 = scmp.ne.s32.totalorder %s65, %s67
    %p71 = scmp.eq.s32.totalorder %s10, 0
    %p72 = por %p70, %p71
    %p73 = scmp.ne.s32.totalorder %s65, %s67
    %p74 = scmp.eq.s32.totalorder %s15, 1
    %p75 = por %p73, %p74
    %p76 = scmp.ne.s32.totalorder %s67, %s68
    %p77 = scmp.eq.s32.totalorder %s15, 0
    %p78 = por %p76, %p77
    %p79 = scmp.ne.s32.totalorder %s67, %s68
    %p80 = scmp.eq.s32.totalorder %s16, 1
    %p81 = por %p79, %p80
    %p83 = scmp.ne.s32.totalorder %s68, %s82
    %p84 = scmp.eq.s32.totalorder %s16, 0
    %p85 = por %p83, %p84
    %s87 = sadd.s32 %s86, 1
    %p90 = scmp.eq.s32.totalorder %s10, 1
    %p91 = scmp.ne.s32.totalorder %s86, %s88
    %p92 = scmp.eq.s32.totalorder %s10, 0
    %p93 = por %p91, %p92
    %p94 = scmp.ne.s32.totalorder %s86, %s88
    %p95 = scmp.eq.s32.totalorder %s15, 1
    %p96 = por %p94, %p95
    %p97 = scmp.ne.s32.totalorder %s88, %s89
    %p98 = scmp.eq.s32.totalorder %s15, 0
    %p99 = por %p97, %p98
    %p100 = scmp.ne.s32.totalorder %s88, %s89
    %p101 = scmp.eq.s32.totalorder %s16, 1
    %p102 = por %p100, %p101
    %p104 = scmp.ne.s32.totalorder %s89, %s103
    %p105 = scmp.eq.s32.totalorder %s16, 0
    %p106 = por %p104, %p105
    %s107 = ssub.s32 %s10, %s17
    %p108 = scmp.eq.s32.totalorder %s107, 0
    %s110 = sadd.s32 %s109, 1
    %s111 = scalar_select %p108, %s109, %s110
    %p114 = pneg %p108
    %p115 = scmp.eq.s32.totalorder %s10, 1
    %p116 = por %p114, %p115
    %p117 = scmp.ne.s32.totalorder %s109, %s112
    %p118 = scmp.eq.s32.totalorder %s10, 0
    %p119 = por %p117, %p118
    %p120 = scmp.ne.s32.totalorder %s109, %s112
    %p121 = scmp.eq.s32.totalorder %s15, 1
    %p122 = por %p120, %p121
    %p123 = scmp.ne.s32.totalorder %s112, %s113
    %p124 = scmp.eq.s32.totalorder %s15, 0
    %p125 = por %p123, %p124
    %p126 = scmp.ne.s32.totalorder %s112, %s113
    %p127 = scmp.eq.s32.totalorder %s16, 1
    %p128 = por %p126, %p127
    %p130 = scmp.ne.s32.totalorder %s113, %s129
    %p131 = scmp.eq.s32.totalorder %s16, 0
    %p132 = por %p130, %p131
    %p133 = scmp.le.s32.totalorder 1, %s10
    %p134 = scmp.lt.s32.totalorder %s10, 3
    %p135 = pnand %p133, %p134
    %p136 = pneg %p135
    // Predicated region
    $region9: #{image_encoder_vit.15} parent=5 // pred_check
      _
    $region10: #{image_encoder_vit.15} parent=5 // pred_check_branch
      %138 = sbr.rel (%p135) target = $region12
    $region11: #{image_encoder_vit.15} parent=5 // pred_region
      %s139 = ssub.s32 %s10, 1
      // Predicated region
      $region13: #{image_encoder_vit.15} parent=11 // pred_check
        %p140 = pneg %p57
      $region14: #{image_encoder_vit.15} parent=11 // pred_check_branch
        %142 = sbr.rel (%p140) target = $region16
      $region15: #{image_encoder_vit.15} parent=11 // pred_region
        _
      $region16: #{image_encoder_vit.15} parent=11 // pred_fallthru
        _
      // Predicated region
      $region17: #{image_encoder_vit.15} parent=11 // pred_check
        %p143 = pneg %p78
      $region18: #{image_encoder_vit.15} parent=11 // pred_check_branch
        %145 = sbr.rel (%p143) target = $region20
      $region19: #{image_encoder_vit.15} parent=11 // pred_region
        _
      $region20: #{image_encoder_vit.15} parent=11 // pred_fallthru
        _
      // Predicated region
      $region21: #{image_encoder_vit.15} parent=11 // pred_check
        %p146 = pneg %p99
      $region22: #{image_encoder_vit.15} parent=11 // pred_check_branch
        %148 = sbr.rel (%p146) target = $region24
      $region23: #{image_encoder_vit.15} parent=11 // pred_region
        _
      $region24: #{image_encoder_vit.15} parent=11 // pred_fallthru
        _
    $region12: #{image_encoder_vit.15} parent=5 // pred_fallthru
      _
    %p149 = scmp.lt.s32.totalorder %s10, 2
    // Predicated region
    $region25: #{image_encoder_vit.15} parent=5 // pred_check
      %p150 = pneg %p149
    $region26: #{image_encoder_vit.15} parent=5 // pred_check_branch
      %152 = sbr.rel (%p150) target = $region28
    $region27: #{image_encoder_vit.15} parent=5 // pred_region
      // Predicated region
      $region29: #{image_encoder_vit.15} parent=27 // pred_check
        %p153 = pneg %p30
      $region30: #{image_encoder_vit.15} parent=27 // pred_check_branch
        %155 = sbr.rel (%p153) target = $region32
      $region31: #{image_encoder_vit.15} parent=27 // pred_region
        %s156 = smul.u32 2, %s10
        %p157 = scmp.lt.s32.totalorder %s156, 3
        %s158 = scalar_select %p157, %s156, 3
        %s159 = smul.addr %s158, 4
        %s160 = scalar_lea.vmem %s0, %s159
        %s161 = smul.u32 2, %s10
      $region32: #{image_encoder_vit.15} parent=27 // pred_fallthru
        _
    $region28: #{image_encoder_vit.15} parent=5 // pred_fallthru
      _
    %p162 = scmp.le.s32.totalorder 1, %s10
    %p163 = scmp.lt.s32.totalorder %s10, 3
    %p164 = pnand %p162, %p163
    %p165 = pneg %p164
    // Predicated region
    $region33: #{image_encoder_vit.15} parent=5 // pred_check
      _
    $region34: #{image_encoder_vit.15} parent=5 // pred_check_branch
      %167 = sbr.rel (%p164) target = $region36
    $region35: #{image_encoder_vit.15} parent=5 // pred_region
      %s168 = ssub.s32 %s10, 1
      %s169 = smul.u32 2, %s15
      %p170 = scmp.lt.s32.totalorder %s169, 3
      %s171 = scalar_select %p170, %s169, 3
      %s172 = smul.addr %s171, 4
      %s173 = scalar_lea.vmem %s0, %s172
      %p174 = pneg %p36
      %p175 = pneg %p33
      %p176 = pneg %p57
      %p177 = pneg %p54
      %p178 = pneg %p78
      %p179 = pneg %p75
      %p180 = pneg %p99
      %p181 = pneg %p96
      %p182 = pneg %p125
      %p183 = pneg %p122
      %s184 = smul.u32 2, %s15
      %p185 = scmp.lt.s32.totalorder %s184, 3
      %s186 = scalar_select %p185, %s184, 3
      %s187 = smul.addr %s186, 4
      %s188 = scalar_lea.vmem %s4, %s187
      %s189 = smul.u32 2, %s15
      %p190 = scmp.lt.s32.totalorder %s189, 3
      %s191 = scalar_select %p190, %s189, 3
      %s192 = smul.addr %s191, 4
      %s193 = scalar_lea.vmem %s0, %s192
      %s194 = smul.u32 2, %s15
      %s195 = smul.u32 2, %s15
      %p196 = scmp.lt.s32.totalorder %s195, 3
      %s197 = scalar_select %p196, %s195, 3
      %s198 = smul.addr %s197, 4
      %s199 = scalar_lea.vmem %s4, %s198
      %s200 = smul.u32 2, %s15
      %v202 = vld [vmem:[%s193] sm:$0xf]
      %v203 = vld [vmem:[%s193 + $0x4] sm:$0xf]
      %v204 = vld [vmem:[%s1] sm:$0xf]
      %v205 = vld [vmem:[%s1 + $0x4] sm:$0xf]
      %v206 = vld [vmem:[%s1 + $0x8] sm:$0xf]
      %v207 = vld [vmem:[%s1 + $0xc] sm:$0xf]
      %v208 = vld [vmem:[%s1 + $0x10] sm:$0xf]
      %v209 = vld [vmem:[%s1 + $0x14] sm:$0xf]
      %v210 = vld [vmem:[%s2] sm:$0x1]
      %v212 = vlaneseq
      %v213 = vshrl.u32 %v212, 7
      %v214 = vsub.s32 0, %v213
      %v215 = vrot.slane %v210, %v214
      %v219 = vunpack.c.l.b16 %v202
      %v220 = vunpack.c.l.b16 %v203
      %v221 = vpack.c.b16 %v220, %v219
      %v228 = vunpack.c.l.b16 %v204
      %v229 = vunpack.c.l.b16 %v205
      %v230 = vunpack.c.l.b16 %v206
      %v231 = vunpack.c.l.b16 %v207
      %v232 = vunpack.c.l.b16 %v208
      %v233 = vunpack.c.l.b16 %v209
      %v234 = vpack.c.b16 %v229, %v228
      %v235 = vpack.c.b16 %v231, %v230
      %v236 = vpack.c.b16 %v233, %v232
      %vm240 = vcmask 392192
      %v242 = vsel %vm240, %v221, 0
      %244 = vmatprep.subr.bf16.mxu0 0
      %245 = vmatpush1.bf16.msra.mxu0 %v234
      %246 = vmatprep.subr.bf16.mxu0 0
      %247 = vmatpush1.bf16.msra.mxu0 %v235
      %248 = vmatprep.subr.bf16.mxu0 0
      %249 = vmatpush1.bf16.msra.mxu0 %v236
      %250 = vmatprep.subr.bf16.mxu0 0
      %251 = vmatpush1.bf16.msra.mxu0 0
      %252 = vmatprep.subr.bf16.mxu0 0
      %253 = vmatpush1.bf16.msra.mxu0 0
      %254 = vmatprep.subr.bf16.mxu0 0
      %255 = vmatpush1.bf16.msra.mxu0 0
      %256 = vmatprep.subr.bf16.mxu0 0
      %257 = vmatpush1.bf16.msra.mxu0 0
      %258 = vmatprep.subr.bf16.mxu0 0
      %259 = vmatpush1.bf16.msra.mxu0 0
      %260 = vmatprep.subr.bf16.mxu0 0
      %261 = vmatpush1.bf16.msra.mxu0 0
      %262 = vmatprep.subr.bf16.mxu0 0
      %263 = vmatpush1.bf16.msra.mxu0 0
      %264 = vmatprep.subr.bf16.mxu0 0
      %265 = vmatpush1.bf16.msra.mxu0 0
      %266 = vmatprep.subr.bf16.mxu0 0
      %267 = vmatpush1.bf16.msra.mxu0 0
      %268 = vmatprep.subr.bf16.mxu0 0
      %269 = vmatpush1.bf16.msra.mxu0 0
      %270 = vmatprep.subr.bf16.mxu0 0
      %271 = vmatpush1.bf16.msra.mxu0 0
      %272 = vmatprep.subr.bf16.mxu0 0
      %273 = vmatpush1.bf16.msra.mxu0 0
      %274 = vmatprep.subr.bf16.mxu0 0
      %275 = vmatpush1.bf16.msra.mxu0 0
      %276 = vmatprep.mubr.bf16.mxu0 0
      %277 = vmatmul.mubr.bf16.gmra.mrb[0].mxu0 %v242
      %v278 = vpop.f32.mrb[0].mxu0
      %v279 = vadd.f32 %v215, %v278
      %v280 = vpop.f32.mrb[0].mxu0
      %v281 = vpop.f32.mrb[0].mxu0
      %v282 = vadd.f32 %v215, %v281
      %v283 = vpop.f32.mrb[0].mxu0
      %284 = vdwg.mxu0
      %v285 = vld [vmem:[%s3] sm:$0xf]
      %v286 = vld [vmem:[%s3 + $0x4] sm:$0xf]
      %v287 = vunpack.c.l.bf16 %v285
      %v288 = vunpack.c.l.bf16 %v286
      %v289 = vadd.f32 %v279, %v287
      %v290 = vadd.f32 %v282, %v288
      %v291 = vpack.c.bf16 %v290, %v289
      %v293 = vunpack.c.l.b16 %v291
      %v294 = vunpack.c.h.b16 %v291
      %v295 = vpack.c.b16 %v293, %v293
      %v296 = vpack.c.b16 %v294, %v294
      %vm299 = vcmask 257024
      %300 = vst.msk [vmem:[%s199] sm:$0xf] %vm299, %v295
      %301 = vst.msk [vmem:[%s199 + $0x4] sm:$0xf] %vm299, %v296
      %s302 = smul.u32 2, %s15
      %p303 = scmp.lt.s32.totalorder %s302, 3
      %s304 = scalar_select %p303, %s302, 3
      %s305 = smul.addr %s304, 4
      %s306 = scalar_lea.vmem %s4, %s305
      // Predicated region
      $region37: #{image_encoder_vit.15} parent=35 // pred_check
        %p307 = pneg %p122
      $region38: #{image_encoder_vit.15} parent=35 // pred_check_branch
        %309 = sbr.rel (%p307) target = $region40
      $region39: #{image_encoder_vit.15} parent=35 // pred_region
        %s310 = smul.u32 2, %s15
      $region40: #{image_encoder_vit.15} parent=35 // pred_fallthru
        _
    $region36: #{image_encoder_vit.15} parent=5 // pred_fallthru
      _
    %p311 = scmp.le.s32.totalorder 2, %s10
    // Predicated region
    $region41: #{image_encoder_vit.15} parent=5 // pred_check
      %p312 = pneg %p311
    $region42: #{image_encoder_vit.15} parent=5 // pred_check_branch
      %314 = sbr.rel (%p312) target = $region44
    $region43: #{image_encoder_vit.15} parent=5 // pred_region
      %s315 = ssub.s32 %s10, 2
      // Predicated region
      $region45: #{image_encoder_vit.15} parent=43 // pred_check
        %p316 = pneg %p128
      $region46: #{image_encoder_vit.15} parent=43 // pred_check_branch
        %318 = sbr.rel (%p316) target = $region48
      $region47: #{image_encoder_vit.15} parent=43 // pred_region
        %s319 = smul.u32 2, %s16
        %p320 = scmp.lt.s32.totalorder %s319, 3
        %s321 = scalar_select %p320, %s319, 3
        %s322 = smul.addr %s321, 4
        %s323 = scalar_lea.vmem %s4, %s322
      $region48: #{image_encoder_vit.15} parent=43 // pred_fallthru
        _
    $region44: #{image_encoder_vit.15} parent=5 // pred_fallthru
      _
  $region6: #{image_encoder_vit.15} parent=0 // loop_footer
    %s14 = sadd.s32 1, %s10
  $region7: #{image_encoder_vit.15} parent=0 // loop_footer_branch
    %9 = sbr.rel target = $region3
  $region8: #{image_encoder_vit.15} parent=0 // loop_exit
    _

// kernel: image_encoder_vit.16
$region0: #{image_encoder_vit.16}
  #allocation0 [shape = 'u32[]', space=smem, size = 0x4, offset = 0x4, fixed_abs, tag = 'smem constant byte address 0x4 - core index']
  #allocation1 [shape = 'u32[144,128]{1,0:T(1,128)}', space=vmem, size = 0x12000, scoped, tag = 'internal scratch']
  %s0 = inlined_call_operand.vmem [shape: bf16[32,32], index: 0, kind: input, shape index: {}]
  %s1 = inlined_call_operand.vmem [shape: f32[1,32], index: 1, kind: input, shape index: {}]
  %s2 = inlined_call_operand.vmem [shape: f32[1,32], index: 2, kind: input, shape index: {}]
  %s3 = inlined_call_operand.vmem [shape: bf16[32,32], index: 3, kind: input, shape index: {}]
  %s4 = inlined_call_operand.vmem [shape: bf16[32,32], index: 4, kind: input, shape index: {}]
  %s5 = inlined_call_operand.vmem [shape: bf16[32,32], index: 5, kind: input, shape index: {}]
  %s6 = inlined_call_operand.vmem [shape: f32[1,32], index: 6, kind: input, shape index: {}]
  %s7 = inlined_call_operand.vmem [shape: f32[1,32], index: 7, kind: input, shape index: {}]
  %s8 = inlined_call_operand.vmem [shape: f32[1,32], index: 8, kind: input, shape index: {}]
  %s9 = inlined_call_operand.vmem [shape: bf16[32,32], index: 9, kind: output, shape index: {0}]
  %s10 = inlined_call_operand.vmem [shape: bf16[32,32], index: 10, kind: output, shape index: {1}]
  %s11 = inlined_call_operand.vmem [shape: bf16[32,32], index: 11, kind: output, shape index: {2}]
  %12 = xla_tuple %s9, %s10, %s11
  %s13 = sld [smem:[#allocation0]]
  $region62: #{image_encoder_vit.16} parent=0
    _
  %s15 = ssub.s32 1, %s13
  %s16 = scalar_select 0, %s15, %s13
  // Predicated region
  $region2: #{image_encoder_vit.16} parent=0 // pred_check
    _
  $region3: #{image_encoder_vit.16} parent=0 // pred_check_branch
    %18 = sbr.rel (0) target = $region5
  $region4: #{image_encoder_vit.16} parent=0 // pred_region
    _
  $region5: #{image_encoder_vit.16} parent=0 // pred_fallthru
    _
  // Predicated region
  $region6: #{image_encoder_vit.16} parent=0 // pred_check
    _
  $region7: #{image_encoder_vit.16} parent=0 // pred_check_branch
    %20 = sbr.rel (0) target = $region9
  $region8: #{image_encoder_vit.16} parent=0 // pred_region
    _
  $region9: #{image_encoder_vit.16} parent=0 // pred_fallthru
    _
  // Predicated region
  $region10: #{image_encoder_vit.16} parent=0 // pred_check
    _
  $region11: #{image_encoder_vit.16} parent=0 // pred_check_branch
    %22 = sbr.rel (0) target = $region13
  $region12: #{image_encoder_vit.16} parent=0 // pred_region
    _
  $region13: #{image_encoder_vit.16} parent=0 // pred_fallthru
    _
  // Predicated region
  $region14: #{image_encoder_vit.16} parent=0 // pred_check
    _
  $region15: #{image_encoder_vit.16} parent=0 // pred_check_branch
    %24 = sbr.rel (0) target = $region17
  $region16: #{image_encoder_vit.16} parent=0 // pred_region
    _
  $region17: #{image_encoder_vit.16} parent=0 // pred_fallthru
    _
  // Predicated region
  $region18: #{image_encoder_vit.16} parent=0 // pred_check
    _
  $region19: #{image_encoder_vit.16} parent=0 // pred_check_branch
    %26 = sbr.rel (0) target = $region21
  $region20: #{image_encoder_vit.16} parent=0 // pred_region
    _
  $region21: #{image_encoder_vit.16} parent=0 // pred_fallthru
    _
  // Predicated region
  $region22: #{image_encoder_vit.16} parent=0 // pred_check
    _
  $region23: #{image_encoder_vit.16} parent=0 // pred_check_branch
    %28 = sbr.rel (0) target = $region25
  $region24: #{image_encoder_vit.16} parent=0 // pred_region
    _
  $region25: #{image_encoder_vit.16} parent=0 // pred_fallthru
    _
  // Predicated region
  $region26: #{image_encoder_vit.16} parent=0 // pred_check
    _
  $region27: #{image_encoder_vit.16} parent=0 // pred_check_branch
    %30 = sbr.rel (0) target = $region29
  $region28: #{image_encoder_vit.16} parent=0 // pred_region
    _
  $region29: #{image_encoder_vit.16} parent=0 // pred_fallthru
    _
  // Predicated region
  $region30: #{image_encoder_vit.16} parent=0 // pred_check
    _
  $region31: #{image_encoder_vit.16} parent=0 // pred_check_branch
    %32 = sbr.rel (0) target = $region33
  $region32: #{image_encoder_vit.16} parent=0 // pred_region
    _
  $region33: #{image_encoder_vit.16} parent=0 // pred_fallthru
    _
  // Predicated region
  $region34: #{image_encoder_vit.16} parent=0 // pred_check
    _
  $region35: #{image_encoder_vit.16} parent=0 // pred_check_branch
    %34 = sbr.rel (0) target = $region37
  $region36: #{image_encoder_vit.16} parent=0 // pred_region
    _
  $region37: #{image_encoder_vit.16} parent=0 // pred_fallthru
    _
  %v36 = vld [vmem:[%s0] sm:$0xf]
  %v37 = vld [vmem:[%s0 + $0x4] sm:$0xf]
  %v38 = vld [vmem:[%s0 + $0x8] sm:$0xf]
  %v39 = vld [vmem:[%s0 + $0xc] sm:$0xf]
  %v40 = vunpack.c.l.bf16 %v36
  %v41 = vunpack.c.l.bf16 %v37
  %v42 = vunpack.c.l.bf16 %v38
  %v43 = vunpack.c.l.bf16 %v39
  %v44 = vld [vmem:[%s1] sm:$0x1]
  %v45 = vld [vmem:[%s2] sm:$0x1]
  %vm46 = vcmask 261120
  %v47 = vsel %vm46, %v40, 0.0
  %48 = vadd.xlane.f32.xlu0 %v47
  %v49 = vpop.xlane.xlu0 %48
  %v50 = vsel %vm46, %v41, 0.0
  %51 = vadd.xlane.f32.xlu0 %v50
  %v52 = vpop.xlane.xlu0 %51
  %v53 = vsel %vm46, %v42, 0.0
  %54 = vadd.xlane.f32.xlu0 %v53
  %v55 = vpop.xlane.xlu0 %54
  %v56 = vsel %vm46, %v43, 0.0
  %57 = vadd.xlane.f32.xlu0 %v56
  %v58 = vpop.xlane.xlu0 %57
  %v59 = vrcp.pop 32.0
  %v60 = vmul.f32 %v49, %v59
  %v61 = vmul.f32 %v52, %v59
  %v62 = vmul.f32 %v55, %v59
  %v63 = vmul.f32 %v58, %v59
  %v64 = vsub.f32 %v40, %v60
  %v65 = vsub.f32 %v41, %v61
  %v66 = vsub.f32 %v42, %v62
  %v67 = vsub.f32 %v43, %v63
  %v68 = vmul.f32 %v64, %v64
  %v69 = vmul.f32 %v65, %v65
  %v70 = vmul.f32 %v66, %v66
  %v71 = vmul.f32 %v67, %v67
  %v72 = vsel %vm46, %v68, 0.0
  %73 = vadd.xlane.f32.xlu0 %v72
  %v74 = vpop.xlane.xlu0 %73
  %v75 = vsel %vm46, %v69, 0.0
  %76 = vadd.xlane.f32.xlu0 %v75
  %v77 = vpop.xlane.xlu0 %76
  %v78 = vsel %vm46, %v70, 0.0
  %79 = vadd.xlane.f32.xlu0 %v78
  %v80 = vpop.xlane.xlu0 %79
  %v81 = vsel %vm46, %v71, 0.0
  %82 = vadd.xlane.f32.xlu0 %v81
  %v83 = vpop.xlane.xlu0 %82
  %v84 = vmul.f32 %v74, %v59
  %v85 = vmul.f32 %v77, %v59
  %v86 = vmul.f32 %v80, %v59
  %v87 = vmul.f32 %v83, %v59
  %v88 = vadd.f32 %v84, 1e-05
  %v89 = vadd.f32 %v85, 1e-05
  %v90 = vadd.f32 %v86, 1e-05
  %v91 = vadd.f32 %v87, 1e-05
  %v92 = vrsqrt.pop %v88
  %v93 = vrsqrt.pop %v89
  %v94 = vrsqrt.pop %v90
  %v95 = vrsqrt.pop %v91
  %v96 = vmul.f32 %v64, %v92
  %v97 = vmul.f32 %v65, %v93
  %v98 = vmul.f32 %v66, %v94
  %v99 = vmul.f32 %v67, %v95
  %v101 = vlaneseq
  %v102 = vshrl.u32 %v101, 7
  %v103 = vsub.s32 0, %v102
  %v104 = vrot.slane %v44, %v103
  %v106 = vmul.f32 %v96, %v104
  %v107 = vmul.f32 %v97, %v104
  %v108 = vmul.f32 %v98, %v104
  %v109 = vmul.f32 %v99, %v104
  %v111 = vlaneseq
  %v112 = vshrl.u32 %v111, 7
  %v113 = vsub.s32 0, %v112
  %v114 = vrot.slane %v45, %v113
  %v116 = vadd.f32 %v106, %v114
  %v117 = vadd.f32 %v107, %v114
  %v118 = vadd.f32 %v108, %v114
  %v119 = vadd.f32 %v109, %v114
  %v120 = vpack.c.bf16 %v117, %v116
  %v121 = vpack.c.bf16 %v119, %v118
  %v122 = vld [vmem:[%s3] sm:$0xf]
  %v123 = vld [vmem:[%s3 + $0x4] sm:$0xf]
  %v124 = vld [vmem:[%s3 + $0x8] sm:$0xf]
  %v125 = vld [vmem:[%s3 + $0xc] sm:$0xf]
  %v126 = vld [vmem:[%s6] sm:$0x1]
  %v128 = vlaneseq
  %v129 = vshrl.u32 %v128, 7
  %v130 = vsub.s32 0, %v129
  %v131 = vrot.slane %v126, %v130
  %v137 = vunpack.c.l.b16 %v122
  %v138 = vunpack.c.l.b16 %v123
  %v139 = vunpack.c.l.b16 %v124
  %v140 = vunpack.c.l.b16 %v125
  %v141 = vpack.c.b16 %v138, %v137
  %v142 = vpack.c.b16 %v140, %v139
  %v146 = vsel %vm46, %v120, 0
  %v149 = vsel %vm46, %v121, 0
  %151 = vmatprep.subr.bf16.mxu0 0
  %152 = vmatpush1.bf16.msra.mxu0 %v141
  %153 = vmatprep.subr.bf16.mxu0 0
  %154 = vmatpush1.bf16.msra.mxu0 %v142
  %155 = vmatprep.subr.bf16.mxu0 0
  %156 = vmatpush1.bf16.msra.mxu0 0
  %157 = vmatprep.subr.bf16.mxu0 0
  %158 = vmatpush1.bf16.msra.mxu0 0
  %159 = vmatprep.subr.bf16.mxu0 0
  %160 = vmatpush1.bf16.msra.mxu0 0
  %161 = vmatprep.subr.bf16.mxu0 0
  %162 = vmatpush1.bf16.msra.mxu0 0
  %163 = vmatprep.subr.bf16.mxu0 0
  %164 = vmatpush1.bf16.msra.mxu0 0
  %165 = vmatprep.subr.bf16.mxu0 0
  %166 = vmatpush1.bf16.msra.mxu0 0
  %167 = vmatprep.subr.bf16.mxu0 0
  %168 = vmatpush1.bf16.msra.mxu0 0
  %169 = vmatprep.subr.bf16.mxu0 0
  %170 = vmatpush1.bf16.msra.mxu0 0
  %171 = vmatprep.subr.bf16.mxu0 0
  %172 = vmatpush1.bf16.msra.mxu0 0
  %173 = vmatprep.subr.bf16.mxu0 0
  %174 = vmatpush1.bf16.msra.mxu0 0
  %175 = vmatprep.subr.bf16.mxu0 0
  %176 = vmatpush1.bf16.msra.mxu0 0
  %177 = vmatprep.subr.bf16.mxu0 0
  %178 = vmatpush1.bf16.msra.mxu0 0
  %179 = vmatprep.subr.bf16.mxu0 0
  %180 = vmatpush1.bf16.msra.mxu0 0
  %181 = vmatprep.subr.bf16.mxu0 0
  %182 = vmatpush1.bf16.msra.mxu0 0
  %183 = vmatprep.mubr.bf16.mxu0 0
  %184 = vmatmul.mubr.bf16.gmra.mrb[0].mxu0 %v146
  %v185 = vpop.f32.mrb[0].mxu0
  %v186 = vadd.f32 %v131, %v185
  %v187 = vpop.f32.mrb[0].mxu0
  %v188 = vpop.f32.mrb[0].mxu0
  %v189 = vadd.f32 %v131, %v188
  %v190 = vpop.f32.mrb[0].mxu0
  %191 = vmatprep.mubr.bf16.mxu0 0
  %192 = vmatmul.mubr.bf16.gmra.mrb[0].mxu0 %v149
  %v193 = vpop.f32.mrb[0].mxu0
  %v194 = vadd.f32 %v131, %v193
  %v195 = vpop.f32.mrb[0].mxu0
  %v196 = vpop.f32.mrb[0].mxu0
  %v197 = vadd.f32 %v131, %v196
  %v198 = vpop.f32.mrb[0].mxu0
  %199 = vdwg.mxu0
  %v200 = vpack.c.bf16 %v189, %v186
  %v201 = vpack.c.bf16 %v197, %v194
  %v204 = vunpack.c.l.b16 %v200
  %v205 = vunpack.c.h.b16 %v200
  %v206 = vunpack.c.l.b16 %v201
  %v207 = vunpack.c.h.b16 %v201
  %v208 = vpack.c.b16 %v204, %v204
  %v209 = vpack.c.b16 %v205, %v205
  %v210 = vpack.c.b16 %v206, %v206
  %v211 = vpack.c.b16 %v207, %v207
  %vm216 = vcmask 257024
  %217 = vst.msk [vmem:[%s9] sm:$0xf] %vm216, %v208
  %218 = vst.msk [vmem:[%s9 + $0x4] sm:$0xf] %vm216, %v209
  %219 = vst.msk [vmem:[%s9 + $0x8] sm:$0xf] %vm216, %v210
  %220 = vst.msk [vmem:[%s9 + $0xc] sm:$0xf] %vm216, %v211
  %v221 = vld [vmem:[%s4] sm:$0xf]
  %v222 = vld [vmem:[%s4 + $0x4] sm:$0xf]
  %v223 = vld [vmem:[%s4 + $0x8] sm:$0xf]
  %v224 = vld [vmem:[%s4 + $0xc] sm:$0xf]
  %v225 = vld [vmem:[%s7] sm:$0x1]
  %v227 = vlaneseq
  %v228 = vshrl.u32 %v227, 7
  %v229 = vsub.s32 0, %v228
  %v230 = vrot.slane %v225, %v229
  %v236 = vunpack.c.l.b16 %v221
  %v237 = vunpack.c.l.b16 %v222
  %v238 = vunpack.c.l.b16 %v223
  %v239 = vunpack.c.l.b16 %v224
  %v240 = vpack.c.b16 %v237, %v236
  %v241 = vpack.c.b16 %v239, %v238
  %244 = vmatprep.subr.bf16.mxu0 0
  %245 = vmatpush1.bf16.msra.mxu0 %v240
  %246 = vmatprep.subr.bf16.mxu0 0
  %247 = vmatpush1.bf16.msra.mxu0 %v241
  %248 = vmatprep.subr.bf16.mxu0 0
  %249 = vmatpush1.bf16.msra.mxu0 0
  %250 = vmatprep.subr.bf16.mxu0 0
  %251 = vmatpush1.bf16.msra.mxu0 0
  %252 = vmatprep.subr.bf16.mxu0 0
  %253 = vmatpush1.bf16.msra.mxu0 0
  %254 = vmatprep.subr.bf16.mxu0 0
  %255 = vmatpush1.bf16.msra.mxu0 0
  %256 = vmatprep.subr.bf16.mxu0 0
  %257 = vmatpush1.bf16.msra.mxu0 0
  %258 = vmatprep.subr.bf16.mxu0 0
  %259 = vmatpush1.bf16.msra.mxu0 0
  %260 = vmatprep.subr.bf16.mxu0 0
  %261 = vmatpush1.bf16.msra.mxu0 0
  %262 = vmatprep.subr.bf16.mxu0 0
  %263 = vmatpush1.bf16.msra.mxu0 0
  %264 = vmatprep.subr.bf16.mxu0 0
  %265 = vmatpush1.bf16.msra.mxu0 0
  %266 = vmatprep.subr.bf16.mxu0 0
  %267 = vmatpush1.bf16.msra.mxu0 0
  %268 = vmatprep.subr.bf16.mxu0 0
  %269 = vmatpush1.bf16.msra.mxu0 0
  %270 = vmatprep.subr.bf16.mxu0 0
  %271 = vmatpush1.bf16.msra.mxu0 0
  %272 = vmatprep.subr.bf16.mxu0 0
  %273 = vmatpush1.bf16.msra.mxu0 0
  %274 = vmatprep.subr.bf16.mxu0 0
  %275 = vmatpush1.bf16.msra.mxu0 0
  %276 = vmatprep.mubr.bf16.mxu0 0
  %277 = vmatmul.mubr.bf16.gmra.mrb[0].mxu0 %v146
  %v278 = vpop.f32.mrb[0].mxu0
  %v279 = vadd.f32 %v230, %v278
  %v280 = vpop.f32.mrb[0].mxu0
  %v281 = vpop.f32.mrb[0].mxu0
  %v282 = vadd.f32 %v230, %v281
  %v283 = vpop.f32.mrb[0].mxu0
  %284 = vmatprep.mubr.bf16.mxu0 0
  %285 = vmatmul.mubr.bf16.gmra.mrb[0].mxu0 %v149
  %v286 = vpop.f32.mrb[0].mxu0
  %v287 = vadd.f32 %v230, %v286
  %v288 = vpop.f32.mrb[0].mxu0
  %v289 = vpop.f32.mrb[0].mxu0
  %v290 = vadd.f32 %v230, %v289
  %v291 = vpop.f32.mrb[0].mxu0
  %292 = vdwg.mxu0
  %v293 = vpack.c.bf16 %v282, %v279
  %v294 = vpack.c.bf16 %v290, %v287
  %v297 = vunpack.c.l.b16 %v293
  %v298 = vunpack.c.h.b16 %v293
  %v299 = vunpack.c.l.b16 %v294
  %v300 = vunpack.c.h.b16 %v294
  %v301 = vpack.c.b16 %v297, %v297
  %v302 = vpack.c.b16 %v298, %v298
  %v303 = vpack.c.b16 %v299, %v299
  %v304 = vpack.c.b16 %v300, %v300
  %309 = vst.msk [vmem:[%s10] sm:$0xf] %vm216, %v301
  %310 = vst.msk [vmem:[%s10 + $0x4] sm:$0xf] %vm216, %v302
  %311 = vst.msk [vmem:[%s10 + $0x8] sm:$0xf] %vm216, %v303
  %312 = vst.msk [vmem:[%s10 + $0xc] sm:$0xf] %vm216, %v304
  %v313 = vld [vmem:[%s5] sm:$0xf]
  %v314 = vld [vmem:[%s5 + $0x4] sm:$0xf]
  %v315 = vld [vmem:[%s5 + $0x8] sm:$0xf]
  %v316 = vld [vmem:[%s5 + $0xc] sm:$0xf]
  %v317 = vld [vmem:[%s8] sm:$0x1]
  %v319 = vlaneseq
  %v320 = vshrl.u32 %v319, 7
  %v321 = vsub.s32 0, %v320
  %v322 = vrot.slane %v317, %v321
  %v328 = vunpack.c.l.b16 %v313
  %v329 = vunpack.c.l.b16 %v314
  %v330 = vunpack.c.l.b16 %v315
  %v331 = vunpack.c.l.b16 %v316
  %v332 = vpack.c.b16 %v329, %v328
  %v333 = vpack.c.b16 %v331, %v330
  %336 = vmatprep.subr.bf16.mxu0 0
  %337 = vmatpush1.bf16.msra.mxu0 %v332
  %338 = vmatprep.subr.bf16.mxu0 0
  %339 = vmatpush1.bf16.msra.mxu0 %v333
  %340 = vmatprep.subr.bf16.mxu0 0
  %341 = vmatpush1.bf16.msra.mxu0 0
  %342 = vmatprep.subr.bf16.mxu0 0
  %343 = vmatpush1.bf16.msra.mxu0 0
  %344 = vmatprep.subr.bf16.mxu0 0
  %345 = vmatpush1.bf16.msra.mxu0 0
  %346 = vmatprep.subr.bf16.mxu0 0
  %347 = vmatpush1.bf16.msra.mxu0 0
  %348 = vmatprep.subr.bf16.mxu0 0
  %349 = vmatpush1.bf16.msra.mxu0 0
  %350 = vmatprep.subr.bf16.mxu0 0
  %351 = vmatpush1.bf16.msra.mxu0 0
  %352 = vmatprep.subr.bf16.mxu0 0
  %353 = vmatpush1.bf16.msra.mxu0 0
  %354 = vmatprep.subr.bf16.mxu0 0
  %355 = vmatpush1.bf16.msra.mxu0 0
  %356 = vmatprep.subr.bf16.mxu0 0
  %357 = vmatpush1.bf16.msra.mxu0 0
  %358 = vmatprep.subr.bf16.mxu0 0
  %359 = vmatpush1.bf16.msra.mxu0 0
  %360 = vmatprep.subr.bf16.mxu0 0
  %361 = vmatpush1.bf16.msra.mxu0 0
  %362 = vmatprep.subr.bf16.mxu0 0
  %363 = vmatpush1.bf16.msra.mxu0 0
  %364 = vmatprep.subr.bf16.mxu0 0
  %365 = vmatpush1.bf16.msra.mxu0 0
  %366 = vmatprep.subr.bf16.mxu0 0
  %367 = vmatpush1.bf16.msra.mxu0 0
  %368 = vmatprep.mubr.bf16.mxu0 0
  %369 = vmatmul.mubr.bf16.gmra.mrb[0].mxu0 %v146
  %v370 = vpop.f32.mrb[0].mxu0
  %v371 = vadd.f32 %v322, %v370
  %v372 = vpop.f32.mrb[0].mxu0
  %v373 = vpop.f32.mrb[0].mxu0
  %v374 = vadd.f32 %v322, %v373
  %v375 = vpop.f32.mrb[0].mxu0
  %376 = vmatprep.mubr.bf16.mxu0 0
  %377 = vmatmul.mubr.bf16.gmra.mrb[0].mxu0 %v149
  %v378 = vpop.f32.mrb[0].mxu0
  %v379 = vadd.f32 %v322, %v378
  %v380 = vpop.f32.mrb[0].mxu0
  %v381 = vpop.f32.mrb[0].mxu0
  %v382 = vadd.f32 %v322, %v381
  %v383 = vpop.f32.mrb[0].mxu0
  %384 = vdwg.mxu0
  %v385 = vpack.c.bf16 %v374, %v371
  %v386 = vpack.c.bf16 %v382, %v379
  %v389 = vunpack.c.l.b16 %v385
  %v390 = vunpack.c.h.b16 %v385
  %v391 = vunpack.c.l.b16 %v386
  %v392 = vunpack.c.h.b16 %v386
  %v393 = vpack.c.b16 %v389, %v389
  %v394 = vpack.c.b16 %v390, %v390
  %v395 = vpack.c.b16 %v391, %v391
  %v396 = vpack.c.b16 %v392, %v392
  %401 = vst.msk [vmem:[%s11] sm:$0xf] %vm216, %v393
  %402 = vst.msk [vmem:[%s11 + $0x4] sm:$0xf] %vm216, %v394
  %403 = vst.msk [vmem:[%s11 + $0x8] sm:$0xf] %vm216, %v395
  %404 = vst.msk [vmem:[%s11 + $0xc] sm:$0xf] %vm216, %v396
  // Predicated region
  $region38: #{image_encoder_vit.16} parent=0 // pred_check
    _
  $region39: #{image_encoder_vit.16} parent=0 // pred_check_branch
    %406 = sbr.rel (0) target = $region41
  $region40: #{image_encoder_vit.16} parent=0 // pred_region
    _
  $region41: #{image_encoder_vit.16} parent=0 // pred_fallthru
    _
  // Predicated region
  $region42: #{image_encoder_vit.16} parent=0 // pred_check
    _
  $region43: #{image_encoder_vit.16} parent=0 // pred_check_branch
    %408 = sbr.rel (0) target = $region45
  $region44: #{image_encoder_vit.16} parent=0 // pred_region
    _
  $region45: #{image_encoder_vit.16} parent=0 // pred_fallthru
    _
  // Predicated region
  $region46: #{image_encoder_vit.16} parent=0 // pred_check
    _
  $region47: #{image_encoder_vit.16} parent=0 // pred_check_branch
    %410 = sbr.rel (0) target = $region49
  $region48: #{image_encoder_vit.16} parent=0 // pred_region
    _
  $region49: #{image_encoder_vit.16} parent=0 // pred_fallthru
    _
  // Predicated region
  $region50: #{image_encoder_vit.16} parent=0 // pred_check
    _
  $region51: #{image_encoder_vit.16} parent=0 // pred_check_branch
    %412 = sbr.rel (0) target = $region53
  $region52: #{image_encoder_vit.16} parent=0 // pred_region
    _
  $region53: #{image_encoder_vit.16} parent=0 // pred_fallthru
    _
  // Predicated region
  $region54: #{image_encoder_vit.16} parent=0 // pred_check
    _
  $region55: #{image_encoder_vit.16} parent=0 // pred_check_branch
    %414 = sbr.rel (0) target = $region57
  $region56: #{image_encoder_vit.16} parent=0 // pred_region
    _
  $region57: #{image_encoder_vit.16} parent=0 // pred_fallthru
    _
  // Predicated region
  $region58: #{image_encoder_vit.16} parent=0 // pred_check
    _
  $region59: #{image_encoder_vit.16} parent=0 // pred_check_branch
    %416 = sbr.rel (0) target = $region61
  $region60: #{image_encoder_vit.16} parent=0 // pred_region
    _
  $region61: #{image_encoder_vit.16} parent=0 // pred_fallthru
    _

// kernel: image_encoder_vit.17
$region0: #{image_encoder_vit.17}
  #allocation0 [shape = 'u32[]', space=smem, size = 0x4, offset = 0x4, fixed_abs, tag = 'smem constant byte address 0x4 - core index']
  #allocation1 [shape = 'u32[144,128]{1,0:T(1,128)}', space=vmem, size = 0x12000, scoped, tag = 'internal scratch']
  #allocation2 [shape = 'f32[16,4]{1,0:T(8,128)}', space=vmem, size = 0x2000, scoped, tag = 'scratch operand']
  #allocation3 [shape = 'f32[16,4]{1,0:T(8,128)}', space=vmem, size = 0x2000, scoped, tag = 'scratch operand']
  #allocation4 [shape = 'f32[16,32]{1,0:T(8,128)}', space=vmem, size = 0x2000, scoped, tag = 'scratch operand']
  %s0 = inlined_call_operand.vmem [shape: bf16[2,16,32], index: 0, kind: input, shape index: {}]
  %s1 = inlined_call_operand.vmem [shape: bf16[2,16,32], index: 1, kind: input, shape index: {}]
  %s2 = inlined_call_operand.vmem [shape: bf16[2,16,32], index: 2, kind: input, shape index: {}]
  %s3 = inlined_call_operand.vmem [shape: bf16[2,16,32], index: 3, kind: output, shape index: {}]
  %s4 = sld [smem:[#allocation0]]
  $region53: #{image_encoder_vit.17} parent=0
    _
  %s6 = ssub.s32 1, %s4
  %s7 = scalar_select 0, %s6, %s4
  loop: start=0, step=1, limit=4
  $region2: #{image_encoder_vit.17} parent=0 // loop_pre_header
    _
  $region3: #{image_encoder_vit.17} parent=0 // loop_header
    %s9 = sphi 0, %s13
    %p10 = scmp.ge.s32.totalorder %s9, 4
    %s16 = sphi 0, %s42
    %s17 = sphi 0, %s38
    %s18 = sphi 0, %s34
    %s19 = sphi 0, %s30
    %s20 = sphi 0, %s16
    %s21 = sphi 0, %s17
    %s22 = sphi 0, %s18
    %s23 = sphi 0, %s19
    %s24 = sphi 0, %s20
    %s25 = sphi 0, %s21
    %s26 = sphi 0, %s22
    %s27 = sphi 0, %s23
    %s49 = sphi 0, %s51
    %s52 = sphi 0, %s49
    %s53 = sphi 0, %s52
    %s69 = sphi 0, %s53
    %s79 = sphi 0, %s81
    %s82 = sphi 0, %s79
    %s83 = sphi 0, %s82
    %s99 = sphi 0, %s83
    %s109 = sphi 0, %s111
    %s112 = sphi 0, %s109
    %s113 = sphi 0, %s112
    %s129 = sphi 0, %s113
    %s139 = sphi 0, %s141
    %s142 = sphi 0, %s139
    %s143 = sphi 0, %s142
    %s159 = sphi 0, %s143
  $region4: #{image_encoder_vit.17} parent=0 // loop_header_branch
    %12 = sbr.rel (%p10) target = $region8
  $region5: #{image_encoder_vit.17} parent=0 // loop_body
    %s14 = ssub.s32 %s9, 1
    %s15 = ssub.s32 %s9, 2
    %s28 = sadd.s32 1, %s19
    %p29 = scmp.ge.s32.totalorder %s28, 1
    %s30 = scalar_select %p29, 0, %s28
    %s31 = sadd.s32 1, %s18
    %s32 = scalar_select %p29, %s31, %s18
    %p33 = scmp.ge.s32.totalorder %s32, 1
    %s34 = scalar_select %p33, 0, %s32
    %s35 = sadd.s32 1, %s17
    %s36 = scalar_select %p33, %s35, %s17
    %p37 = scmp.ge.s32.totalorder %s36, 1
    %s38 = scalar_select %p37, 0, %s36
    %s39 = sadd.s32 1, %s16
    %s40 = scalar_select %p37, %s39, %s16
    %p41 = scmp.ge.s32.totalorder %s40, 2
    %s42 = scalar_select %p41, 0, %s40
    %s43 = ssub.s32 %s16, %s42
    %s44 = ssub.s32 %s18, %s34
    %s45 = sor.u32 %s43, %s44
    %s46 = ssub.s32 %s17, %s38
    %s47 = sor.u32 %s45, %s46
    %p48 = scmp.eq.s32.totalorder %s47, 0
    %s50 = sadd.s32 %s49, 1
    %s51 = scalar_select %p48, %s49, %s50
    %p54 = pneg %p48
    %p55 = scmp.eq.s32.totalorder %s9, 1
    %p56 = por %p54, %p55
    %p57 = scmp.ne.s32.totalorder %s49, %s52
    %p58 = scmp.eq.s32.totalorder %s9, 0
    %p59 = por %p57, %p58
    %p60 = scmp.ne.s32.totalorder %s49, %s52
    %p61 = scmp.eq.s32.totalorder %s14, 1
    %p62 = por %p60, %p61
    %p63 = scmp.ne.s32.totalorder %s52, %s53
    %p64 = scmp.eq.s32.totalorder %s14, 0
    %p65 = por %p63, %p64
    %p66 = scmp.ne.s32.totalorder %s52, %s53
    %p67 = scmp.eq.s32.totalorder %s15, 1
    %p68 = por %p66, %p67
    %p70 = scmp.ne.s32.totalorder %s53, %s69
    %p71 = scmp.eq.s32.totalorder %s15, 0
    %p72 = por %p70, %p71
    %s73 = ssub.s32 %s16, %s42
    %s74 = ssub.s32 %s19, %s30
    %s75 = sor.u32 %s73, %s74
    %s76 = ssub.s32 %s17, %s38
    %s77 = sor.u32 %s75, %s76
    %p78 = scmp.eq.s32.totalorder %s77, 0
    %s80 = sadd.s32 %s79, 1
    %s81 = scalar_select %p78, %s79, %s80
    %p84 = pneg %p78
    %p85 = scmp.eq.s32.totalorder %s9, 1
    %p86 = por %p84, %p85
    %p87 = scmp.ne.s32.totalorder %s79, %s82
    %p88 = scmp.eq.s32.totalorder %s9, 0
    %p89 = por %p87, %p88
    %p90 = scmp.ne.s32.totalorder %s79, %s82
    %p91 = scmp.eq.s32.totalorder %s14, 1
    %p92 = por %p90, %p91
    %p93 = scmp.ne.s32.totalorder %s82, %s83
    %p94 = scmp.eq.s32.totalorder %s14, 0
    %p95 = por %p93, %p94
    %p96 = scmp.ne.s32.totalorder %s82, %s83
    %p97 = scmp.eq.s32.totalorder %s15, 1
    %p98 = por %p96, %p97
    %p100 = scmp.ne.s32.totalorder %s83, %s99
    %p101 = scmp.eq.s32.totalorder %s15, 0
    %p102 = por %p100, %p101
    %s103 = ssub.s32 %s16, %s42
    %s104 = ssub.s32 %s19, %s30
    %s105 = sor.u32 %s103, %s104
    %s106 = ssub.s32 %s17, %s38
    %s107 = sor.u32 %s105, %s106
    %p108 = scmp.eq.s32.totalorder %s107, 0
    %s110 = sadd.s32 %s109, 1
    %s111 = scalar_select %p108, %s109, %s110
    %p114 = pneg %p108
    %p115 = scmp.eq.s32.totalorder %s9, 1
    %p116 = por %p114, %p115
    %p117 = scmp.ne.s32.totalorder %s109, %s112
    %p118 = scmp.eq.s32.totalorder %s9, 0
    %p119 = por %p117, %p118
    %p120 = scmp.ne.s32.totalorder %s109, %s112
    %p121 = scmp.eq.s32.totalorder %s14, 1
    %p122 = por %p120, %p121
    %p123 = scmp.ne.s32.totalorder %s112, %s113
    %p124 = scmp.eq.s32.totalorder %s14, 0
    %p125 = por %p123, %p124
    %p126 = scmp.ne.s32.totalorder %s112, %s113
    %p127 = scmp.eq.s32.totalorder %s15, 1
    %p128 = por %p126, %p127
    %p130 = scmp.ne.s32.totalorder %s113, %s129
    %p131 = scmp.eq.s32.totalorder %s15, 0
    %p132 = por %p130, %p131
    %s133 = ssub.s32 %s16, %s42
    %s134 = ssub.s32 %s18, %s34
    %s135 = sor.u32 %s133, %s134
    %s136 = ssub.s32 %s17, %s38
    %s137 = sor.u32 %s135, %s136
    %p138 = scmp.eq.s32.totalorder %s137, 0
    %s140 = sadd.s32 %s139, 1
    %s141 = scalar_select %p138, %s139, %s140
    %p144 = pneg %p138
    %p145 = scmp.eq.s32.totalorder %s9, 1
    %p146 = por %p144, %p145
    %p147 = scmp.ne.s32.totalorder %s139, %s142
    %p148 = scmp.eq.s32.totalorder %s9, 0
    %p149 = por %p147, %p148
    %p150 = scmp.ne.s32.totalorder %s139, %s142
    %p151 = scmp.eq.s32.totalorder %s14, 1
    %p152 = por %p150, %p151
    %p153 = scmp.ne.s32.totalorder %s142, %s143
    %p154 = scmp.eq.s32.totalorder %s14, 0
    %p155 = por %p153, %p154
    %p156 = scmp.ne.s32.totalorder %s142, %s143
    %p157 = scmp.eq.s32.totalorder %s15, 1
    %p158 = por %p156, %p157
    %p160 = scmp.ne.s32.totalorder %s143, %s159
    %p161 = scmp.eq.s32.totalorder %s15, 0
    %p162 = por %p160, %p161
    %p163 = scmp.le.s32.totalorder 1, %s9
    %p164 = scmp.lt.s32.totalorder %s9, 3
    %p165 = pnand %p163, %p164
    %p166 = pneg %p165
    // Predicated region
    $region9: #{image_encoder_vit.17} parent=5 // pred_check
      _
    $region10: #{image_encoder_vit.17} parent=5 // pred_check_branch
      %168 = sbr.rel (%p165) target = $region12
    $region11: #{image_encoder_vit.17} parent=5 // pred_region
      %s169 = ssub.s32 %s9, 1
    $region12: #{image_encoder_vit.17} parent=5 // pred_fallthru
      _
    %p170 = scmp.lt.s32.totalorder %s9, 2
    // Predicated region
    $region13: #{image_encoder_vit.17} parent=5 // pred_check
      %p171 = pneg %p170
    $region14: #{image_encoder_vit.17} parent=5 // pred_check_branch
      %173 = sbr.rel (%p171) target = $region16
    $region15: #{image_encoder_vit.17} parent=5 // pred_region
      // Predicated region
      $region17: #{image_encoder_vit.17} parent=15 // pred_check
        %p174 = pneg %p59
      $region18: #{image_encoder_vit.17} parent=15 // pred_check_branch
        %176 = sbr.rel (%p174) target = $region20
      $region19: #{image_encoder_vit.17} parent=15 // pred_region
        %s177 = smul.u32 2, %s18
        %p178 = scmp.lt.s32.totalorder %s16, 1
        %s179 = scalar_select %p178, %s16, 1
        %p180 = scmp.lt.s32.totalorder %s177, 1
        %s181 = scalar_select %p180, %s177, 1
        %p182 = scmp.lt.s32.totalorder %s17, 0
        %s183 = scalar_select %p182, %s17, 0
        %s184 = sadd.s32 %s183, %s181
        %s185 = smul.addr %s179, 2
        %s186 = sadd.s32 %s184, %s185
        %s187 = smul.addr %s186, 4
        %s188 = scalar_lea.vmem %s0, %s187
        %s189 = smul.u32 2, %s18
      $region20: #{image_encoder_vit.17} parent=15 // pred_fallthru
        _
      // Predicated region
      $region21: #{image_encoder_vit.17} parent=15 // pred_check
        %p190 = pneg %p89
      $region22: #{image_encoder_vit.17} parent=15 // pred_check_branch
        %192 = sbr.rel (%p190) target = $region24
      $region23: #{image_encoder_vit.17} parent=15 // pred_region
        %s193 = smul.u32 2, %s19
        %p194 = scmp.lt.s32.totalorder %s16, 1
        %s195 = scalar_select %p194, %s16, 1
        %p196 = scmp.lt.s32.totalorder %s193, 1
        %s197 = scalar_select %p196, %s193, 1
        %p198 = scmp.lt.s32.totalorder %s17, 0
        %s199 = scalar_select %p198, %s17, 0
        %s200 = sadd.s32 %s199, %s197
        %s201 = smul.addr %s195, 2
        %s202 = sadd.s32 %s200, %s201
        %s203 = smul.addr %s202, 4
        %s204 = scalar_lea.vmem %s1, %s203
        %s205 = smul.u32 2, %s19
      $region24: #{image_encoder_vit.17} parent=15 // pred_fallthru
        _
      // Predicated region
      $region25: #{image_encoder_vit.17} parent=15 // pred_check
        %p206 = pneg %p119
      $region26: #{image_encoder_vit.17} parent=15 // pred_check_branch
        %208 = sbr.rel (%p206) target = $region28
      $region27: #{image_encoder_vit.17} parent=15 // pred_region
        %s209 = smul.u32 2, %s19
        %p210 = scmp.lt.s32.totalorder %s16, 1
        %s211 = scalar_select %p210, %s16, 1
        %p212 = scmp.lt.s32.totalorder %s209, 1
        %s213 = scalar_select %p212, %s209, 1
        %p214 = scmp.lt.s32.totalorder %s17, 0
        %s215 = scalar_select %p214, %s17, 0
        %s216 = sadd.s32 %s215, %s213
        %s217 = smul.addr %s211, 2
        %s218 = sadd.s32 %s216, %s217
        %s219 = smul.addr %s218, 4
        %s220 = scalar_lea.vmem %s2, %s219
        %s221 = smul.u32 2, %s19
      $region28: #{image_encoder_vit.17} parent=15 // pred_fallthru
        _
    $region16: #{image_encoder_vit.17} parent=5 // pred_fallthru
      _
    %p222 = scmp.le.s32.totalorder 1, %s9
    %p223 = scmp.lt.s32.totalorder %s9, 3
    %p224 = pnand %p222, %p223
    %p225 = pneg %p224
    // Predicated region
    $region29: #{image_encoder_vit.17} parent=5 // pred_check
      _
    $region30: #{image_encoder_vit.17} parent=5 // pred_check_branch
      %227 = sbr.rel (%p224) target = $region32
    $region31: #{image_encoder_vit.17} parent=5 // pred_region
      %s228 = ssub.s32 %s9, 1
      %s229 = smul.u32 2, %s22
      %p230 = scmp.lt.s32.totalorder %s20, 1
      %s231 = scalar_select %p230, %s20, 1
      %p232 = scmp.lt.s32.totalorder %s229, 1
      %s233 = scalar_select %p232, %s229, 1
      %p234 = scmp.lt.s32.totalorder %s21, 0
      %s235 = scalar_select %p234, %s21, 0
      %s236 = sadd.s32 %s235, %s233
      %s237 = smul.addr %s231, 2
      %s238 = sadd.s32 %s236, %s237
      %s239 = smul.addr %s238, 4
      %s240 = scalar_lea.vmem %s0, %s239
      %p241 = pneg %p65
      %p242 = pneg %p62
      %s243 = smul.u32 2, %s23
      %p244 = scmp.lt.s32.totalorder %s20, 1
      %s245 = scalar_select %p244, %s20, 1
      %p246 = scmp.lt.s32.totalorder %s243, 1
      %s247 = scalar_select %p246, %s243, 1
      %p248 = scmp.lt.s32.totalorder %s21, 0
      %s249 = scalar_select %p248, %s21, 0
      %s250 = sadd.s32 %s249, %s247
      %s251 = smul.addr %s245, 2
      %s252 = sadd.s32 %s250, %s251
      %s253 = smul.addr %s252, 4
      %s254 = scalar_lea.vmem %s1, %s253
      %p255 = pneg %p95
      %p256 = pneg %p92
      %s257 = smul.u32 2, %s23
      %p258 = scmp.lt.s32.totalorder %s20, 1
      %s259 = scalar_select %p258, %s20, 1
      %p260 = scmp.lt.s32.totalorder %s257, 1
      %s261 = scalar_select %p260, %s257, 1
      %p262 = scmp.lt.s32.totalorder %s21, 0
      %s263 = scalar_select %p262, %s21, 0
      %s264 = sadd.s32 %s263, %s261
      %s265 = smul.addr %s259, 2
      %s266 = sadd.s32 %s264, %s265
      %s267 = smul.addr %s266, 4
      %s268 = scalar_lea.vmem %s2, %s267
      %p269 = pneg %p125
      %p270 = pneg %p122
      %p271 = pneg %p155
      %p272 = pneg %p152
      %s273 = smul.u32 2, %s22
      %p274 = scmp.lt.s32.totalorder %s20, 1
      %s275 = scalar_select %p274, %s20, 1
      %p276 = scmp.lt.s32.totalorder %s273, 1
      %s277 = scalar_select %p276, %s273, 1
      %p278 = scmp.lt.s32.totalorder %s21, 0
      %s279 = scalar_select %p278, %s21, 0
      %s280 = sadd.s32 %s279, %s277
      %s281 = smul.addr %s275, 2
      %s282 = sadd.s32 %s280, %s281
      %s283 = smul.addr %s282, 4
      %s284 = scalar_lea.vmem %s3, %s283
      %s285 = smul.u32 2, %s22
      %p286 = scmp.lt.s32.totalorder %s20, 1
      %s287 = scalar_select %p286, %s20, 1
      %p288 = scmp.lt.s32.totalorder %s285, 1
      %s289 = scalar_select %p288, %s285, 1
      %p290 = scmp.lt.s32.totalorder %s21, 0
      %s291 = scalar_select %p290, %s21, 0
      %s292 = sadd.s32 %s291, %s289
      %s293 = smul.addr %s287, 2
      %s294 = sadd.s32 %s292, %s293
      %s295 = smul.addr %s294, 4
      %s296 = scalar_lea.vmem %s0, %s295
      %s297 = smul.u32 2, %s22
      %s298 = smul.u32 2, %s23
      %p299 = scmp.lt.s32.totalorder %s20, 1
      %s300 = scalar_select %p299, %s20, 1
      %p301 = scmp.lt.s32.totalorder %s298, 1
      %s302 = scalar_select %p301, %s298, 1
      %p303 = scmp.lt.s32.totalorder %s21, 0
      %s304 = scalar_select %p303, %s21, 0
      %s305 = sadd.s32 %s304, %s302
      %s306 = smul.addr %s300, 2
      %s307 = sadd.s32 %s305, %s306
      %s308 = smul.addr %s307, 4
      %s309 = scalar_lea.vmem %s1, %s308
      %s310 = smul.u32 2, %s23
      %s311 = smul.u32 2, %s23
      %p312 = scmp.lt.s32.totalorder %s20, 1
      %s313 = scalar_select %p312, %s20, 1
      %p314 = scmp.lt.s32.totalorder %s311, 1
      %s315 = scalar_select %p314, %s311, 1
      %p316 = scmp.lt.s32.totalorder %s21, 0
      %s317 = scalar_select %p316, %s21, 0
      %s318 = sadd.s32 %s317, %s315
      %s319 = smul.addr %s313, 2
      %s320 = sadd.s32 %s318, %s319
      %s321 = smul.addr %s320, 4
      %s322 = scalar_lea.vmem %s2, %s321
      %s323 = smul.u32 2, %s23
      %s324 = smul.u32 2, %s22
      %p325 = scmp.lt.s32.totalorder %s20, 1
      %s326 = scalar_select %p325, %s20, 1
      %p327 = scmp.lt.s32.totalorder %s324, 1
      %s328 = scalar_select %p327, %s324, 1
      %p329 = scmp.lt.s32.totalorder %s21, 0
      %s330 = scalar_select %p329, %s21, 0
      %s331 = sadd.s32 %s330, %s328
      %s332 = smul.addr %s326, 2
      %s333 = sadd.s32 %s331, %s332
      %s334 = smul.addr %s333, 4
      %s335 = scalar_lea.vmem %s3, %s334
      %s336 = smul.u32 2, %s22
      %p338 = scmp.eq.s32.totalorder %s23, 0
      // Predicated region
      $region33: #{image_encoder_vit.17} parent=31 // pred_check
        %p339 = pneg %p338
      $region34: #{image_encoder_vit.17} parent=31 // pred_check_branch
        %341 = sbr.rel (%p339) target = $region36
      $region35: #{image_encoder_vit.17} parent=31 // pred_region
        %vm342 = vcmask 31744
        %343 = vst.msk [vmem:[#allocation2] sm:$0xff] %vm342, -inf
        %344 = vst.msk [vmem:[#allocation2 + $0x8] sm:$0xff] %vm342, -inf
        %345 = vst.msk [vmem:[#allocation3] sm:$0xff] %vm342, 0.0
        %346 = vst.msk [vmem:[#allocation3 + $0x8] sm:$0xff] %vm342, 0.0
        %vm347 = vcmask 261120
        %348 = vst.msk [vmem:[#allocation4] sm:$0xff] %vm347, 0.0
        %349 = vst.msk [vmem:[#allocation4 + $0x8] sm:$0xff] %vm347, 0.0
      $region36: #{image_encoder_vit.17} parent=31 // pred_fallthru
        _
      %v350 = vld [vmem:[%s296] sm:$0xf]
      %v351 = vld [vmem:[%s296 + $0x4] sm:$0xf]
      %v352 = vld [vmem:[%s309] sm:$0xf]
      %v353 = vld [vmem:[%s309 + $0x4] sm:$0xf]
      %v354 = vld [vmem:[%s322] sm:$0xf]
      %v355 = vld [vmem:[%s322 + $0x4] sm:$0xf]
      %v358 = vunpack.c.l.b16 %v350
      %v359 = vunpack.c.l.b16 %v351
      %v360 = vpack.c.b16 %v359, %v358
      %v363 = vunpack.c.l.b16 %v352
      %v364 = vunpack.c.l.b16 %v353
      %v365 = vpack.c.b16 %v364, %v363
      %vm366 = vcmask 64512
      %v368 = vsel %vm366, %v360, 0
      %v371 = vsel %vm366, %v365, 0
      %373 = vmatprep.subr.bf16.mxu0 0
      %374 = vmatpush1.bf16.xpose.msra.mxu0 %v371
      %375 = vmatprep.subr.bf16.mxu0 0
      %376 = vmatpush1.bf16.xpose.msra.mxu0 0
      %377 = vmatprep.subr.bf16.mxu0 0
      %378 = vmatpush1.bf16.xpose.msra.mxu0 0
      %379 = vmatprep.subr.bf16.mxu0 0
      %380 = vmatpush1.bf16.xpose.msra.mxu0 0
      %381 = vmatprep.subr.bf16.mxu0 0
      %382 = vmatpush1.bf16.xpose.msra.mxu0 0
      %383 = vmatprep.subr.bf16.mxu0 0
      %384 = vmatpush1.bf16.xpose.msra.mxu0 0
      %385 = vmatprep.subr.bf16.mxu0 0
      %386 = vmatpush1.bf16.xpose.msra.mxu0 0
      %387 = vmatprep.subr.bf16.mxu0 0
      %388 = vmatpush1.bf16.xpose.msra.mxu0 0
      %389 = vmatprep.subr.bf16.mxu0 0
      %390 = vmatpush1.bf16.xpose.msra.mxu0 0
      %391 = vmatprep.subr.bf16.mxu0 0
      %392 = vmatpush1.bf16.xpose.msra.mxu0 0
      %393 = vmatprep.subr.bf16.mxu0 0
      %394 = vmatpush1.bf16.xpose.msra.mxu0 0
      %395 = vmatprep.subr.bf16.mxu0 0
      %396 = vmatpush1.bf16.xpose.msra.mxu0 0
      %397 = vmatprep.subr.bf16.mxu0 0
      %398 = vmatpush1.bf16.xpose.msra.mxu0 0
      %399 = vmatprep.subr.bf16.mxu0 0
      %400 = vmatpush1.bf16.xpose.msra.mxu0 0
      %401 = vmatprep.subr.bf16.mxu0 0
      %402 = vmatpush1.bf16.xpose.msra.mxu0 0
      %403 = vmatprep.subr.bf16.mxu0 0
      %404 = vmatpush1.bf16.xpose.msra.mxu0 0
      %405 = vmatprep.mubr.bf16.mxu0 0
      %406 = vmatmul.mubr.bf16.gmra.mrb[0].mxu0 %v368
      %v407 = vpop.f32.mrb[0].mxu0
      %v408 = vadd.f32 0.0, %v407
      %v409 = vpop.f32.mrb[0].mxu0
      %v410 = vpop.f32.mrb[0].mxu0
      %v411 = vadd.f32 0.0, %v410
      %v412 = vpop.f32.mrb[0].mxu0
      %413 = vdwg.mxu0
      %v414 = vld [vmem:[#allocation2] sm:$0xff]
      %v415 = vld [vmem:[#allocation2 + $0x8] sm:$0xff]
      %vm416 = vcmask 130048
      %v417 = vsel %vm416, %v408, -inf
      %418 = vmax.xlane.f32.xlu0 %v417
      %v419 = vpop.xlane.xlu0 %418
      %v420 = vsel %vm416, %v411, -inf
      %421 = vmax.xlane.f32.xlu0 %v420
      %v422 = vpop.xlane.xlu0 %421
      %v423 = vmax.f32 %v414, %v419
      %v424 = vmax.f32 %v415, %v422
      %v425 = vsub.f32 %v414, %v423
      %v426 = vsub.f32 %v415, %v424
      %v427 = vmul.f32 %v425, 1.442695
      %v428 = vpow.pop %v427
      %v429 = vmul.f32 %v426, 1.442695
      %v430 = vpow.pop %v429
      %432 = vset.pattern.permute.xlu0 0
      %433 = vperm.xlu0 %432, %v423
      %v434 = vpop.permute.xlu0 %433
      %437 = vset.pattern.permute.xlu0 0
      %438 = vperm.xlu0 %437, %v424
      %v439 = vpop.permute.xlu0 %438
      %v441 = vsub.f32 %v408, %v434
      %v442 = vsub.f32 %v411, %v439
      %v443 = vmul.f32 %v441, 1.442695
      %v444 = vpow.pop %v443
      %v445 = vmul.f32 %v442, 1.442695
      %v446 = vpow.pop %v445
      %v447 = vld [vmem:[#allocation3] sm:$0xff]
      %v448 = vld [vmem:[#allocation3 + $0x8] sm:$0xff]
      %v449 = vmul.f32 %v428, %v447
      %v450 = vmul.f32 %v430, %v448
      %v451 = vsel %vm416, %v444, 0.0
      %452 = vadd.xlane.f32.xlu0 %v451
      %v453 = vpop.xlane.xlu0 %452
      %v454 = vsel %vm416, %v446, 0.0
      %455 = vadd.xlane.f32.xlu0 %v454
      %v456 = vpop.xlane.xlu0 %455
      %v457 = vadd.f32 %v449, %v453
      %v458 = vadd.f32 %v450, %v456
      %v459 = vpack.c.bf16 %v446, %v444
      %v462 = vunpack.c.l.b16 %v354
      %v463 = vunpack.c.l.b16 %v355
      %v464 = vpack.c.b16 %v463, %v462
      %v467 = vsel %vm416, %v459, 0
      %469 = vmatprep.subr.bf16.mxu0 0
      %470 = vmatpush1.bf16.msra.mxu0 %v464
      %471 = vmatprep.subr.bf16.mxu0 0
      %472 = vmatpush1.bf16.msra.mxu0 0
      %473 = vmatprep.subr.bf16.mxu0 0
      %474 = vmatpush1.bf16.msra.mxu0 0
      %475 = vmatprep.subr.bf16.mxu0 0
      %476 = vmatpush1.bf16.msra.mxu0 0
      %477 = vmatprep.subr.bf16.mxu0 0
      %478 = vmatpush1.bf16.msra.mxu0 0
      %479 = vmatprep.subr.bf16.mxu0 0
      %480 = vmatpush1.bf16.msra.mxu0 0
      %481 = vmatprep.subr.bf16.mxu0 0
      %482 = vmatpush1.bf16.msra.mxu0 0
      %483 = vmatprep.subr.bf16.mxu0 0
      %484 = vmatpush1.bf16.msra.mxu0 0
      %485 = vmatprep.subr.bf16.mxu0 0
      %486 = vmatpush1.bf16.msra.mxu0 0
      %487 = vmatprep.subr.bf16.mxu0 0
      %488 = vmatpush1.bf16.msra.mxu0 0
      %489 = vmatprep.subr.bf16.mxu0 0
      %490 = vmatpush1.bf16.msra.mxu0 0
      %491 = vmatprep.subr.bf16.mxu0 0
      %492 = vmatpush1.bf16.msra.mxu0 0
      %493 = vmatprep.subr.bf16.mxu0 0
      %494 = vmatpush1.bf16.msra.mxu0 0
      %495 = vmatprep.subr.bf16.mxu0 0
      %496 = vmatpush1.bf16.msra.mxu0 0
      %497 = vmatprep.subr.bf16.mxu0 0
      %498 = vmatpush1.bf16.msra.mxu0 0
      %499 = vmatprep.subr.bf16.mxu0 0
      %500 = vmatpush1.bf16.msra.mxu0 0
      %501 = vmatprep.mubr.bf16.mxu0 0
      %502 = vmatmul.mubr.bf16.gmra.mrb[0].mxu0 %v467
      %v503 = vpop.f32.mrb[0].mxu0
      %v504 = vadd.f32 0.0, %v503
      %v505 = vpop.f32.mrb[0].mxu0
      %v506 = vpop.f32.mrb[0].mxu0
      %v507 = vadd.f32 0.0, %v506
      %v508 = vpop.f32.mrb[0].mxu0
      %509 = vdwg.mxu0
      %511 = vset.pattern.permute.xlu0 0
      %512 = vperm.xlu0 %511, %v428
      %v513 = vpop.permute.xlu0 %512
      %516 = vset.pattern.permute.xlu0 0
      %517 = vperm.xlu0 %516, %v430
      %v518 = vpop.permute.xlu0 %517
      %520 = vrot.lane.b32.xlu0 %v360, 120
      %v521 = vpop.permute.xlu0 %520
      %522 = vrot.lane.b32.xlu0 %v365, 120
      %v523 = vpop.permute.xlu0 %522
      %v525 = vsel %vm366, %v521, 0
      %v528 = vsel %vm366, %v523, 0
      %530 = vmatprep.subr.bf16.mxu0 0
      %531 = vmatpush1.bf16.xpose.msra.mxu0 %v528
      %532 = vmatprep.subr.bf16.mxu0 0
      %533 = vmatpush1.bf16.xpose.msra.mxu0 0
      %534 = vmatprep.subr.bf16.mxu0 0
      %535 = vmatpush1.bf16.xpose.msra.mxu0 0
      %536 = vmatprep.subr.bf16.mxu0 0
      %537 = vmatpush1.bf16.xpose.msra.mxu0 0
      %538 = vmatprep.subr.bf16.mxu0 0
      %539 = vmatpush1.bf16.xpose.msra.mxu0 0
      %540 = vmatprep.subr.bf16.mxu0 0
      %541 = vmatpush1.bf16.xpose.msra.mxu0 0
      %542 = vmatprep.subr.bf16.mxu0 0
      %543 = vmatpush1.bf16.xpose.msra.mxu0 0
      %544 = vmatprep.subr.bf16.mxu0 0
      %545 = vmatpush1.bf16.xpose.msra.mxu0 0
      %546 = vmatprep.subr.bf16.mxu0 0
      %547 = vmatpush1.bf16.xpose.msra.mxu0 0
      %548 = vmatprep.subr.bf16.mxu0 0
      %549 = vmatpush1.bf16.xpose.msra.mxu0 0
      %550 = vmatprep.subr.bf16.mxu0 0
      %551 = vmatpush1.bf16.xpose.msra.mxu0 0
      %552 = vmatprep.subr.bf16.mxu0 0
      %553 = vmatpush1.bf16.xpose.msra.mxu0 0
      %554 = vmatprep.subr.bf16.mxu0 0
      %555 = vmatpush1.bf16.xpose.msra.mxu0 0
      %556 = vmatprep.subr.bf16.mxu0 0
      %557 = vmatpush1.bf16.xpose.msra.mxu0 0
      %558 = vmatprep.subr.bf16.mxu0 0
      %559 = vmatpush1.bf16.xpose.msra.mxu0 0
      %560 = vmatprep.subr.bf16.mxu0 0
      %561 = vmatpush1.bf16.xpose.msra.mxu0 0
      %562 = vmatprep.mubr.bf16.mxu0 0
      %563 = vmatmul.mubr.bf16.gmra.mrb[0].mxu0 %v525
      %v564 = vpop.f32.mrb[0].mxu0
      %v565 = vadd.f32 0.0, %v564
      %v566 = vpop.f32.mrb[0].mxu0
      %v567 = vpop.f32.mrb[0].mxu0
      %v568 = vadd.f32 0.0, %v567
      %v569 = vpop.f32.mrb[0].mxu0
      %570 = vdwg.mxu0
      %v571 = vsel %vm416, %v565, -inf
      %572 = vmax.xlane.f32.xlu0 %v571
      %v573 = vpop.xlane.xlu0 %572
      %v574 = vsel %vm416, %v568, -inf
      %575 = vmax.xlane.f32.xlu0 %v574
      %v576 = vpop.xlane.xlu0 %575
      %v577 = vmax.f32 %v414, %v573
      %v578 = vmax.f32 %v415, %v576
      %v579 = vsub.f32 %v414, %v577
      %v580 = vsub.f32 %v415, %v578
      %v581 = vmul.f32 %v579, 1.442695
      %v582 = vpow.pop %v581
      %v583 = vmul.f32 %v580, 1.442695
      %v584 = vpow.pop %v583
      %586 = vset.pattern.permute.xlu0 1
      %587 = vperm.xlu0 %586, %v577
      %v588 = vpop.permute.xlu0 %587
      %591 = vset.pattern.permute.xlu0 1
      %592 = vperm.xlu0 %591, %v578
      %v593 = vpop.permute.xlu0 %592
      %v595 = vsub.f32 %v565, %v588
      %v596 = vsub.f32 %v568, %v593
      %v597 = vmul.f32 %v595, 1.442695
      %v598 = vpow.pop %v597
      %v599 = vmul.f32 %v596, 1.442695
      %v600 = vpow.pop %v599
      %v601 = vmul.f32 %v582, %v447
      %v602 = vmul.f32 %v584, %v448
      %v603 = vsel %vm416, %v598, 0.0
      %604 = vadd.xlane.f32.xlu0 %v603
      %v605 = vpop.xlane.xlu0 %604
      %v606 = vsel %vm416, %v600, 0.0
      %607 = vadd.xlane.f32.xlu0 %v606
      %v608 = vpop.xlane.xlu0 %607
      %v609 = vadd.f32 %v601, %v605
      %v610 = vadd.f32 %v602, %v608
      %v611 = vpack.c.bf16 %v600, %v598
      %612 = vrot.lane.b32.xlu0 %v464, 120
      %v613 = vpop.permute.xlu0 %612
      %v616 = vsel %vm416, %v611, 0
      %618 = vmatprep.subr.bf16.mxu0 0
      %619 = vmatpush1.bf16.msra.mxu0 %v613
      %620 = vmatprep.subr.bf16.mxu0 0
      %621 = vmatpush1.bf16.msra.mxu0 0
      %622 = vmatprep.subr.bf16.mxu0 0
      %623 = vmatpush1.bf16.msra.mxu0 0
      %624 = vmatprep.subr.bf16.mxu0 0
      %625 = vmatpush1.bf16.msra.mxu0 0
      %626 = vmatprep.subr.bf16.mxu0 0
      %627 = vmatpush1.bf16.msra.mxu0 0
      %628 = vmatprep.subr.bf16.mxu0 0
      %629 = vmatpush1.bf16.msra.mxu0 0
      %630 = vmatprep.subr.bf16.mxu0 0
      %631 = vmatpush1.bf16.msra.mxu0 0
      %632 = vmatprep.subr.bf16.mxu0 0
      %633 = vmatpush1.bf16.msra.mxu0 0
      %634 = vmatprep.subr.bf16.mxu0 0
      %635 = vmatpush1.bf16.msra.mxu0 0
      %636 = vmatprep.subr.bf16.mxu0 0
      %637 = vmatpush1.bf16.msra.mxu0 0
      %638 = vmatprep.subr.bf16.mxu0 0
      %639 = vmatpush1.bf16.msra.mxu0 0
      %640 = vmatprep.subr.bf16.mxu0 0
      %641 = vmatpush1.bf16.msra.mxu0 0
      %642 = vmatprep.subr.bf16.mxu0 0
      %643 = vmatpush1.bf16.msra.mxu0 0
      %644 = vmatprep.subr.bf16.mxu0 0
      %645 = vmatpush1.bf16.msra.mxu0 0
      %646 = vmatprep.subr.bf16.mxu0 0
      %647 = vmatpush1.bf16.msra.mxu0 0
      %648 = vmatprep.subr.bf16.mxu0 0
      %649 = vmatpush1.bf16.msra.mxu0 0
      %650 = vmatprep.mubr.bf16.mxu0 0
      %651 = vmatmul.mubr.bf16.gmra.mrb[0].mxu0 %v616
      %v652 = vpop.f32.mrb[0].mxu0
      %v653 = vadd.f32 0.0, %v652
      %v654 = vpop.f32.mrb[0].mxu0
      %v655 = vpop.f32.mrb[0].mxu0
      %v656 = vadd.f32 0.0, %v655
      %v657 = vpop.f32.mrb[0].mxu0
      %658 = vdwg.mxu0
      %660 = vset.pattern.permute.xlu0 1
      %661 = vperm.xlu0 %660, %v582
      %v662 = vpop.permute.xlu0 %661
      %665 = vset.pattern.permute.xlu0 1
      %666 = vperm.xlu0 %665, %v584
      %v667 = vpop.permute.xlu0 %666
      %669 = vrot.lane.b32.xlu0 %v360, 112
      %v670 = vpop.permute.xlu0 %669
      %671 = vrot.lane.b32.xlu0 %v365, 112
      %v672 = vpop.permute.xlu0 %671
      %v674 = vsel %vm366, %v670, 0
      %v677 = vsel %vm366, %v672, 0
      %679 = vmatprep.subr.bf16.mxu0 0
      %680 = vmatpush1.bf16.xpose.msra.mxu0 %v677
      %681 = vmatprep.subr.bf16.mxu0 0
      %682 = vmatpush1.bf16.xpose.msra.mxu0 0
      %683 = vmatprep.subr.bf16.mxu0 0
      %684 = vmatpush1.bf16.xpose.msra.mxu0 0
      %685 = vmatprep.subr.bf16.mxu0 0
      %686 = vmatpush1.bf16.xpose.msra.mxu0 0
      %687 = vmatprep.subr.bf16.mxu0 0
      %688 = vmatpush1.bf16.xpose.msra.mxu0 0
      %689 = vmatprep.subr.bf16.mxu0 0
      %690 = vmatpush1.bf16.xpose.msra.mxu0 0
      %691 = vmatprep.subr.bf16.mxu0 0
      %692 = vmatpush1.bf16.xpose.msra.mxu0 0
      %693 = vmatprep.subr.bf16.mxu0 0
      %694 = vmatpush1.bf16.xpose.msra.mxu0 0
      %695 = vmatprep.subr.bf16.mxu0 0
      %696 = vmatpush1.bf16.xpose.msra.mxu0 0
      %697 = vmatprep.subr.bf16.mxu0 0
      %698 = vmatpush1.bf16.xpose.msra.mxu0 0
      %699 = vmatprep.subr.bf16.mxu0 0
      %700 = vmatpush1.bf16.xpose.msra.mxu0 0
      %701 = vmatprep.subr.bf16.mxu0 0
      %702 = vmatpush1.bf16.xpose.msra.mxu0 0
      %703 = vmatprep.subr.bf16.mxu0 0
      %704 = vmatpush1.bf16.xpose.msra.mxu0 0
      %705 = vmatprep.subr.bf16.mxu0 0
      %706 = vmatpush1.bf16.xpose.msra.mxu0 0
      %707 = vmatprep.subr.bf16.mxu0 0
      %708 = vmatpush1.bf16.xpose.msra.mxu0 0
      %709 = vmatprep.subr.bf16.mxu0 0
      %710 = vmatpush1.bf16.xpose.msra.mxu0 0
      %711 = vmatprep.mubr.bf16.mxu0 0
      %712 = vmatmul.mubr.bf16.gmra.mrb[0].mxu0 %v674
      %v713 = vpop.f32.mrb[0].mxu0
      %v714 = vadd.f32 0.0, %v713
      %v715 = vpop.f32.mrb[0].mxu0
      %v716 = vpop.f32.mrb[0].mxu0
      %v717 = vadd.f32 0.0, %v716
      %v718 = vpop.f32.mrb[0].mxu0
      %719 = vdwg.mxu0
      %v720 = vsel %vm416, %v714, -inf
      %721 = vmax.xlane.f32.xlu0 %v720
      %v722 = vpop.xlane.xlu0 %721
      %v723 = vsel %vm416, %v717, -inf
      %724 = vmax.xlane.f32.xlu0 %v723
      %v725 = vpop.xlane.xlu0 %724
      %v726 = vmax.f32 %v414, %v722
      %v727 = vmax.f32 %v415, %v725
      %v728 = vsub.f32 %v414, %v726
      %v729 = vsub.f32 %v415, %v727
      %v730 = vmul.f32 %v728, 1.442695
      %v731 = vpow.pop %v730
      %v732 = vmul.f32 %v729, 1.442695
      %v733 = vpow.pop %v732
      %735 = vset.pattern.permute.xlu0 2
      %736 = vperm.xlu0 %735, %v726
      %v737 = vpop.permute.xlu0 %736
      %740 = vset.pattern.permute.xlu0 2
      %741 = vperm.xlu0 %740, %v727
      %v742 = vpop.permute.xlu0 %741
      %v744 = vsub.f32 %v714, %v737
      %v745 = vsub.f32 %v717, %v742
      %v746 = vmul.f32 %v744, 1.442695
      %v747 = vpow.pop %v746
      %v748 = vmul.f32 %v745, 1.442695
      %v749 = vpow.pop %v748
      %v750 = vmul.f32 %v731, %v447
      %v751 = vmul.f32 %v733, %v448
      %v752 = vsel %vm416, %v747, 0.0
      %753 = vadd.xlane.f32.xlu0 %v752
      %v754 = vpop.xlane.xlu0 %753
      %v755 = vsel %vm416, %v749, 0.0
      %756 = vadd.xlane.f32.xlu0 %v755
      %v757 = vpop.xlane.xlu0 %756
      %v758 = vadd.f32 %v750, %v754
      %v759 = vadd.f32 %v751, %v757
      %v760 = vpack.c.bf16 %v749, %v747
      %761 = vrot.lane.b32.xlu0 %v464, 112
      %v762 = vpop.permute.xlu0 %761
      %v765 = vsel %vm416, %v760, 0
      %767 = vmatprep.subr.bf16.mxu0 0
      %768 = vmatpush1.bf16.msra.mxu0 %v762
      %769 = vmatprep.subr.bf16.mxu0 0
      %770 = vmatpush1.bf16.msra.mxu0 0
      %771 = vmatprep.subr.bf16.mxu0 0
      %772 = vmatpush1.bf16.msra.mxu0 0
      %773 = vmatprep.subr.bf16.mxu0 0
      %774 = vmatpush1.bf16.msra.mxu0 0
      %775 = vmatprep.subr.bf16.mxu0 0
      %776 = vmatpush1.bf16.msra.mxu0 0
      %777 = vmatprep.subr.bf16.mxu0 0
      %778 = vmatpush1.bf16.msra.mxu0 0
      %779 = vmatprep.subr.bf16.mxu0 0
      %780 = vmatpush1.bf16.msra.mxu0 0
      %781 = vmatprep.subr.bf16.mxu0 0
      %782 = vmatpush1.bf16.msra.mxu0 0
      %783 = vmatprep.subr.bf16.mxu0 0
      %784 = vmatpush1.bf16.msra.mxu0 0
      %785 = vmatprep.subr.bf16.mxu0 0
      %786 = vmatpush1.bf16.msra.mxu0 0
      %787 = vmatprep.subr.bf16.mxu0 0
      %788 = vmatpush1.bf16.msra.mxu0 0
      %789 = vmatprep.subr.bf16.mxu0 0
      %790 = vmatpush1.bf16.msra.mxu0 0
      %791 = vmatprep.subr.bf16.mxu0 0
      %792 = vmatpush1.bf16.msra.mxu0 0
      %793 = vmatprep.subr.bf16.mxu0 0
      %794 = vmatpush1.bf16.msra.mxu0 0
      %795 = vmatprep.subr.bf16.mxu0 0
      %796 = vmatpush1.bf16.msra.mxu0 0
      %797 = vmatprep.subr.bf16.mxu0 0
      %798 = vmatpush1.bf16.msra.mxu0 0
      %799 = vmatprep.mubr.bf16.mxu0 0
      %800 = vmatmul.mubr.bf16.gmra.mrb[0].mxu0 %v765
      %v801 = vpop.f32.mrb[0].mxu0
      %v802 = vadd.f32 0.0, %v801
      %v803 = vpop.f32.mrb[0].mxu0
      %v804 = vpop.f32.mrb[0].mxu0
      %v805 = vadd.f32 0.0, %v804
      %v806 = vpop.f32.mrb[0].mxu0
      %807 = vdwg.mxu0
      %809 = vset.pattern.permute.xlu0 2
      %810 = vperm.xlu0 %809, %v731
      %v811 = vpop.permute.xlu0 %810
      %814 = vset.pattern.permute.xlu0 2
      %815 = vperm.xlu0 %814, %v733
      %v816 = vpop.permute.xlu0 %815
      %818 = vrot.lane.b32.xlu0 %v360, 104
      %v819 = vpop.permute.xlu0 %818
      %820 = vrot.lane.b32.xlu0 %v365, 104
      %v821 = vpop.permute.xlu0 %820
      %v823 = vsel %vm366, %v819, 0
      %v826 = vsel %vm366, %v821, 0
      %828 = vmatprep.subr.bf16.mxu0 0
      %829 = vmatpush1.bf16.xpose.msra.mxu0 %v826
      %830 = vmatprep.subr.bf16.mxu0 0
      %831 = vmatpush1.bf16.xpose.msra.mxu0 0
      %832 = vmatprep.subr.bf16.mxu0 0
      %833 = vmatpush1.bf16.xpose.msra.mxu0 0
      %834 = vmatprep.subr.bf16.mxu0 0
      %835 = vmatpush1.bf16.xpose.msra.mxu0 0
      %836 = vmatprep.subr.bf16.mxu0 0
      %837 = vmatpush1.bf16.xpose.msra.mxu0 0
      %838 = vmatprep.subr.bf16.mxu0 0
      %839 = vmatpush1.bf16.xpose.msra.mxu0 0
      %840 = vmatprep.subr.bf16.mxu0 0
      %841 = vmatpush1.bf16.xpose.msra.mxu0 0
      %842 = vmatprep.subr.bf16.mxu0 0
      %843 = vmatpush1.bf16.xpose.msra.mxu0 0
      %844 = vmatprep.subr.bf16.mxu0 0
      %845 = vmatpush1.bf16.xpose.msra.mxu0 0
      %846 = vmatprep.subr.bf16.mxu0 0
      %847 = vmatpush1.bf16.xpose.msra.mxu0 0
      %848 = vmatprep.subr.bf16.mxu0 0
      %849 = vmatpush1.bf16.xpose.msra.mxu0 0
      %850 = vmatprep.subr.bf16.mxu0 0
      %851 = vmatpush1.bf16.xpose.msra.mxu0 0
      %852 = vmatprep.subr.bf16.mxu0 0
      %853 = vmatpush1.bf16.xpose.msra.mxu0 0
      %854 = vmatprep.subr.bf16.mxu0 0
      %855 = vmatpush1.bf16.xpose.msra.mxu0 0
      %856 = vmatprep.subr.bf16.mxu0 0
      %857 = vmatpush1.bf16.xpose.msra.mxu0 0
      %858 = vmatprep.subr.bf16.mxu0 0
      %859 = vmatpush1.bf16.xpose.msra.mxu0 0
      %860 = vmatprep.mubr.bf16.mxu0 0
      %861 = vmatmul.mubr.bf16.gmra.mrb[0].mxu0 %v823
      %v862 = vpop.f32.mrb[0].mxu0
      %v863 = vadd.f32 0.0, %v862
      %v864 = vpop.f32.mrb[0].mxu0
      %v865 = vpop.f32.mrb[0].mxu0
      %v866 = vadd.f32 0.0, %v865
      %v867 = vpop.f32.mrb[0].mxu0
      %868 = vdwg.mxu0
      %v869 = vsel %vm416, %v863, -inf
      %870 = vmax.xlane.f32.xlu0 %v869
      %v871 = vpop.xlane.xlu0 %870
      %v872 = vsel %vm416, %v866, -inf
      %873 = vmax.xlane.f32.xlu0 %v872
      %v874 = vpop.xlane.xlu0 %873
      %v875 = vmax.f32 %v414, %v871
      %v876 = vmax.f32 %v415, %v874
      %v877 = vsub.f32 %v414, %v875
      %v878 = vsub.f32 %v415, %v876
      %v879 = vmul.f32 %v877, 1.442695
      %v880 = vpow.pop %v879
      %v881 = vmul.f32 %v878, 1.442695
      %v882 = vpow.pop %v881
      %884 = vset.pattern.permute.xlu0 3
      %885 = vperm.xlu0 %884, %v875
      %v886 = vpop.permute.xlu0 %885
      %889 = vset.pattern.permute.xlu0 3
      %890 = vperm.xlu0 %889, %v876
      %v891 = vpop.permute.xlu0 %890
      %v893 = vsub.f32 %v863, %v886
      %v894 = vsub.f32 %v866, %v891
      %v895 = vmul.f32 %v893, 1.442695
      %v896 = vpow.pop %v895
      %v897 = vmul.f32 %v894, 1.442695
      %v898 = vpow.pop %v897
      %v899 = vmul.f32 %v880, %v447
      %v900 = vmul.f32 %v882, %v448
      %v901 = vsel %vm416, %v896, 0.0
      %902 = vadd.xlane.f32.xlu0 %v901
      %v903 = vpop.xlane.xlu0 %902
      %v904 = vsel %vm416, %v898, 0.0
      %905 = vadd.xlane.f32.xlu0 %v904
      %v906 = vpop.xlane.xlu0 %905
      %v907 = vadd.f32 %v899, %v903
      %v908 = vadd.f32 %v900, %v906
      %v909 = vpack.c.bf16 %v898, %v896
      %910 = vrot.lane.b32.xlu0 %v464, 104
      %v911 = vpop.permute.xlu0 %910
      %v914 = vsel %vm416, %v909, 0
      %916 = vmatprep.subr.bf16.mxu0 0
      %917 = vmatpush1.bf16.msra.mxu0 %v911
      %918 = vmatprep.subr.bf16.mxu0 0
      %919 = vmatpush1.bf16.msra.mxu0 0
      %920 = vmatprep.subr.bf16.mxu0 0
      %921 = vmatpush1.bf16.msra.mxu0 0
      %922 = vmatprep.subr.bf16.mxu0 0
      %923 = vmatpush1.bf16.msra.mxu0 0
      %924 = vmatprep.subr.bf16.mxu0 0
      %925 = vmatpush1.bf16.msra.mxu0 0
      %926 = vmatprep.subr.bf16.mxu0 0
      %927 = vmatpush1.bf16.msra.mxu0 0
      %928 = vmatprep.subr.bf16.mxu0 0
      %929 = vmatpush1.bf16.msra.mxu0 0
      %930 = vmatprep.subr.bf16.mxu0 0
      %931 = vmatpush1.bf16.msra.mxu0 0
      %932 = vmatprep.subr.bf16.mxu0 0
      %933 = vmatpush1.bf16.msra.mxu0 0
      %934 = vmatprep.subr.bf16.mxu0 0
      %935 = vmatpush1.bf16.msra.mxu0 0
      %936 = vmatprep.subr.bf16.mxu0 0
      %937 = vmatpush1.bf16.msra.mxu0 0
      %938 = vmatprep.subr.bf16.mxu0 0
      %939 = vmatpush1.bf16.msra.mxu0 0
      %940 = vmatprep.subr.bf16.mxu0 0
      %941 = vmatpush1.bf16.msra.mxu0 0
      %942 = vmatprep.subr.bf16.mxu0 0
      %943 = vmatpush1.bf16.msra.mxu0 0
      %944 = vmatprep.subr.bf16.mxu0 0
      %945 = vmatpush1.bf16.msra.mxu0 0
      %946 = vmatprep.subr.bf16.mxu0 0
      %947 = vmatpush1.bf16.msra.mxu0 0
      %948 = vmatprep.mubr.bf16.mxu0 0
      %949 = vmatmul.mubr.bf16.gmra.mrb[0].mxu0 %v914
      %v950 = vpop.f32.mrb[0].mxu0
      %v951 = vadd.f32 0.0, %v950
      %v952 = vpop.f32.mrb[0].mxu0
      %v953 = vpop.f32.mrb[0].mxu0
      %v954 = vadd.f32 0.0, %v953
      %v955 = vpop.f32.mrb[0].mxu0
      %956 = vdwg.mxu0
      %958 = vset.pattern.permute.xlu0 3
      %959 = vperm.xlu0 %958, %v880
      %v960 = vpop.permute.xlu0 %959
      %963 = vset.pattern.permute.xlu0 3
      %964 = vperm.xlu0 %963, %v882
      %v965 = vpop.permute.xlu0 %964
      %vm967 = vcmask 7168
      %v968 = vsel %vm967, %v423, %v577
      %v969 = vsel %vm967, %v424, %v578
      %vm970 = vcmask 15360
      %v971 = vsel %vm970, %v968, %v726
      %v972 = vsel %vm970, %v969, %v727
      %vm973 = vcmask 23552
      %v974 = vsel %vm973, %v971, %v875
      %v975 = vsel %vm973, %v972, %v876
      %vm976 = vcmask 31744
      %977 = vst.msk [vmem:[#allocation2] sm:$0xff] %vm976, %v974
      %978 = vst.msk [vmem:[#allocation2 + $0x8] sm:$0xff] %vm976, %v975
      %v979 = vsel %vm967, %v457, %v609
      %v980 = vsel %vm967, %v458, %v610
      %v981 = vsel %vm970, %v979, %v758
      %v982 = vsel %vm970, %v980, %v759
      %v983 = vsel %vm973, %v981, %v907
      %v984 = vsel %vm973, %v982, %v908
      %985 = vst.msk [vmem:[#allocation3] sm:$0xff] %vm976, %v983
      %986 = vst.msk [vmem:[#allocation3 + $0x8] sm:$0xff] %vm976, %v984
      %v987 = vsel %vm366, %v513, %v662
      %v988 = vsel %vm366, %v518, %v667
      %v989 = vsel %vm416, %v987, %v811
      %v990 = vsel %vm416, %v988, %v816
      %vm991 = vcmask 195584
      %v992 = vsel %vm991, %v989, %v960
      %v993 = vsel %vm991, %v990, %v965
      %v994 = vld [vmem:[#allocation4] sm:$0xff]
      %v995 = vld [vmem:[#allocation4 + $0x8] sm:$0xff]
      %v996 = vmul.f32 %v992, %v994
      %v997 = vmul.f32 %v993, %v995
      %1000 = vrot.lane.b32.xlu0 %v653, 8
      %v1001 = vpop.permute.xlu0 %1000
      %1002 = vrot.lane.b32.xlu0 %v656, 8
      %v1003 = vpop.permute.xlu0 %1002
      %1008 = vrot.lane.b32.xlu0 %v802, 16
      %v1009 = vpop.permute.xlu0 %1008
      %1010 = vrot.lane.b32.xlu0 %v805, 16
      %v1011 = vpop.permute.xlu0 %1010
      %1016 = vrot.lane.b32.xlu0 %v951, 24
      %v1017 = vpop.permute.xlu0 %1016
      %1018 = vrot.lane.b32.xlu0 %v954, 24
      %v1019 = vpop.permute.xlu0 %1018
      %v1022 = vsel %vm366, %v504, %v1001
      %v1023 = vsel %vm366, %v507, %v1003
      %v1024 = vsel %vm416, %v1022, %v1009
      %v1025 = vsel %vm416, %v1023, %v1011
      %v1026 = vsel %vm991, %v1024, %v1017
      %v1027 = vsel %vm991, %v1025, %v1019
      %v1028 = vadd.f32 %v996, %v1026
      %v1029 = vadd.f32 %v997, %v1027
      %vm1030 = vcmask 261120
      %1031 = vst.msk [vmem:[#allocation4] sm:$0xff] %vm1030, %v1028
      %1032 = vst.msk [vmem:[#allocation4 + $0x8] sm:$0xff] %vm1030, %v1029
      // Predicated region
      $region37: #{image_encoder_vit.17} parent=31 // pred_check
        %p1033 = pneg %p338
      $region38: #{image_encoder_vit.17} parent=31 // pred_check_branch
        %1035 = sbr.rel (%p1033) target = $region40
      $region39: #{image_encoder_vit.17} parent=31 // pred_region
        %v1036 = vld [vmem:[#allocation3] sm:$0xff]
        %v1037 = vld [vmem:[#allocation3 + $0x8] sm:$0xff]
        %v1038 = vrcp.pop %v1036
        %v1039 = vmul.f32 1.0, %v1038
        %v1040 = vrcp.pop %v1037
        %v1041 = vmul.f32 1.0, %v1040
        %1043 = vset.pattern.permute.xlu0 0
        %1044 = vperm.xlu0 %1043, %v1039
        %v1045 = vpop.permute.xlu0 %1044
        %1048 = vset.pattern.permute.xlu0 0
        %1049 = vperm.xlu0 %1048, %v1041
        %v1050 = vpop.permute.xlu0 %1049
        %1052 = vset.pattern.permute.xlu0 1
        %1053 = vperm.xlu0 %1052, %v1039
        %v1054 = vpop.permute.xlu0 %1053
        %1056 = vset.pattern.permute.xlu0 1
        %1057 = vperm.xlu0 %1056, %v1041
        %v1058 = vpop.permute.xlu0 %1057
        %1060 = vset.pattern.permute.xlu0 2
        %1061 = vperm.xlu0 %1060, %v1039
        %v1062 = vpop.permute.xlu0 %1061
        %1064 = vset.pattern.permute.xlu0 2
        %1065 = vperm.xlu0 %1064, %v1041
        %v1066 = vpop.permute.xlu0 %1065
        %1068 = vset.pattern.permute.xlu0 3
        %1069 = vperm.xlu0 %1068, %v1039
        %v1070 = vpop.permute.xlu0 %1069
        %1072 = vset.pattern.permute.xlu0 3
        %1073 = vperm.xlu0 %1072, %v1041
        %v1074 = vpop.permute.xlu0 %1073
        %v1076 = vsel %vm366, %v1045, %v1054
        %v1077 = vsel %vm366, %v1050, %v1058
        %v1078 = vsel %vm416, %v1076, %v1062
        %v1079 = vsel %vm416, %v1077, %v1066
        %v1080 = vsel %vm991, %v1078, %v1070
        %v1081 = vsel %vm991, %v1079, %v1074
        %v1082 = vld [vmem:[#allocation4] sm:$0xff]
        %v1083 = vld [vmem:[#allocation4 + $0x8] sm:$0xff]
        %v1084 = vmul.f32 %v1082, %v1080
        %v1085 = vmul.f32 %v1083, %v1081
        %v1086 = vpack.c.bf16 %v1085, %v1084
        %v1088 = vunpack.c.l.b16 %v1086
        %v1089 = vunpack.c.h.b16 %v1086
        %v1090 = vpack.c.b16 %v1088, %v1088
        %v1091 = vpack.c.b16 %v1089, %v1089
        %vm1094 = vcmask 257024
        %1095 = vst.msk [vmem:[%s335] sm:$0xf] %vm1094, %v1090
        %1096 = vst.msk [vmem:[%s335 + $0x4] sm:$0xf] %vm1094, %v1091
      $region40: #{image_encoder_vit.17} parent=31 // pred_fallthru
        _
      %s1097 = smul.u32 2, %s22
      %p1098 = scmp.lt.s32.totalorder %s20, 1
      %s1099 = scalar_select %p1098, %s20, 1
      %p1100 = scmp.lt.s32.totalorder %s1097, 1
      %s1101 = scalar_select %p1100, %s1097, 1
      %p1102 = scmp.lt.s32.totalorder %s21, 0
      %s1103 = scalar_select %p1102, %s21, 0
      %s1104 = sadd.s32 %s1103, %s1101
      %s1105 = smul.addr %s1099, 2
      %s1106 = sadd.s32 %s1104, %s1105
      %s1107 = smul.addr %s1106, 4
      %s1108 = scalar_lea.vmem %s3, %s1107
      // Predicated region
      $region41: #{image_encoder_vit.17} parent=31 // pred_check
        %p1109 = pneg %p152
      $region42: #{image_encoder_vit.17} parent=31 // pred_check_branch
        %1111 = sbr.rel (%p1109) target = $region44
      $region43: #{image_encoder_vit.17} parent=31 // pred_region
        %s1112 = smul.u32 2, %s22
      $region44: #{image_encoder_vit.17} parent=31 // pred_fallthru
        _
    $region32: #{image_encoder_vit.17} parent=5 // pred_fallthru
      _
    %p1113 = scmp.le.s32.totalorder 2, %s9
    // Predicated region
    $region45: #{image_encoder_vit.17} parent=5 // pred_check
      %p1114 = pneg %p1113
    $region46: #{image_encoder_vit.17} parent=5 // pred_check_branch
      %1116 = sbr.rel (%p1114) target = $region48
    $region47: #{image_encoder_vit.17} parent=5 // pred_region
      %s1117 = ssub.s32 %s9, 2
      // Predicated region
      $region49: #{image_encoder_vit.17} parent=47 // pred_check
        %p1118 = pneg %p158
      $region50: #{image_encoder_vit.17} parent=47 // pred_check_branch
        %1120 = sbr.rel (%p1118) target = $region52
      $region51: #{image_encoder_vit.17} parent=47 // pred_region
        %s1121 = smul.u32 2, %s26
        %p1122 = scmp.lt.s32.totalorder %s24, 1
        %s1123 = scalar_select %p1122, %s24, 1
        %p1124 = scmp.lt.s32.totalorder %s1121, 1
        %s1125 = scalar_select %p1124, %s1121, 1
        %p1126 = scmp.lt.s32.totalorder %s25, 0
        %s1127 = scalar_select %p1126, %s25, 0
        %s1128 = sadd.s32 %s1127, %s1125
        %s1129 = smul.addr %s1123, 2
        %s1130 = sadd.s32 %s1128, %s1129
        %s1131 = smul.addr %s1130, 4
        %s1132 = scalar_lea.vmem %s3, %s1131
      $region52: #{image_encoder_vit.17} parent=47 // pred_fallthru
        _
    $region48: #{image_encoder_vit.17} parent=5 // pred_fallthru
      _
  $region6: #{image_encoder_vit.17} parent=0 // loop_footer
    %s13 = sadd.s32 1, %s9
  $region7: #{image_encoder_vit.17} parent=0 // loop_footer_branch
    %8 = sbr.rel target = $region3
  $region8: #{image_encoder_vit.17} parent=0 // loop_exit
    _

// kernel: image_encoder_vit.19
$region0: #{image_encoder_vit.19}
  #allocation0 [shape = 'u32[]', space=smem, size = 0x4, offset = 0x4, fixed_abs, tag = 'smem constant byte address 0x4 - core index']
  #allocation1 [shape = 'u32[144,128]{1,0:T(1,128)}', space=vmem, size = 0x12000, scoped, tag = 'internal scratch']
  %s0 = inlined_call_operand.vmem [shape: bf16[32,32], index: 0, kind: input, shape index: {}]
  %s1 = inlined_call_operand.vmem [shape: f32[1,32], index: 1, kind: input, shape index: {}]
  %s2 = inlined_call_operand.vmem [shape: f32[1,32], index: 2, kind: input, shape index: {}]
  %s3 = inlined_call_operand.vmem [shape: bf16[32,128], index: 3, kind: input, shape index: {}]
  %s4 = inlined_call_operand.vmem [shape: f32[1,128], index: 4, kind: input, shape index: {}]
  %s5 = inlined_call_operand.vmem [shape: bf16[32,128], index: 5, kind: output, shape index: {}]
  %s6 = sld [smem:[#allocation0]]
  $region30: #{image_encoder_vit.19} parent=0
    _
  %s8 = ssub.s32 1, %s6
  %s9 = scalar_select 0, %s8, %s6
  // Predicated region
  $region2: #{image_encoder_vit.19} parent=0 // pred_check
    _
  $region3: #{image_encoder_vit.19} parent=0 // pred_check_branch
    %11 = sbr.rel (0) target = $region5
  $region4: #{image_encoder_vit.19} parent=0 // pred_region
    _
  $region5: #{image_encoder_vit.19} parent=0 // pred_fallthru
    _
  // Predicated region
  $region6: #{image_encoder_vit.19} parent=0 // pred_check
    _
  $region7: #{image_encoder_vit.19} parent=0 // pred_check_branch
    %13 = sbr.rel (0) target = $region9
  $region8: #{image_encoder_vit.19} parent=0 // pred_region
    _
  $region9: #{image_encoder_vit.19} parent=0 // pred_fallthru
    _
  // Predicated region
  $region10: #{image_encoder_vit.19} parent=0 // pred_check
    _
  $region11: #{image_encoder_vit.19} parent=0 // pred_check_branch
    %15 = sbr.rel (0) target = $region13
  $region12: #{image_encoder_vit.19} parent=0 // pred_region
    _
  $region13: #{image_encoder_vit.19} parent=0 // pred_fallthru
    _
  // Predicated region
  $region14: #{image_encoder_vit.19} parent=0 // pred_check
    _
  $region15: #{image_encoder_vit.19} parent=0 // pred_check_branch
    %17 = sbr.rel (0) target = $region17
  $region16: #{image_encoder_vit.19} parent=0 // pred_region
    _
  $region17: #{image_encoder_vit.19} parent=0 // pred_fallthru
    _
  // Predicated region
  $region18: #{image_encoder_vit.19} parent=0 // pred_check
    _
  $region19: #{image_encoder_vit.19} parent=0 // pred_check_branch
    %19 = sbr.rel (0) target = $region21
  $region20: #{image_encoder_vit.19} parent=0 // pred_region
    _
  $region21: #{image_encoder_vit.19} parent=0 // pred_fallthru
    _
  %v21 = vld [vmem:[%s0] sm:$0xf]
  %v22 = vld [vmem:[%s0 + $0x4] sm:$0xf]
  %v23 = vld [vmem:[%s0 + $0x8] sm:$0xf]
  %v24 = vld [vmem:[%s0 + $0xc] sm:$0xf]
  %v25 = vunpack.c.l.bf16 %v21
  %v26 = vunpack.c.l.bf16 %v22
  %v27 = vunpack.c.l.bf16 %v23
  %v28 = vunpack.c.l.bf16 %v24
  %v29 = vld [vmem:[%s1] sm:$0x1]
  %v30 = vld [vmem:[%s2] sm:$0x1]
  %vm31 = vcmask 261120
  %v32 = vsel %vm31, %v25, 0.0
  %33 = vadd.xlane.f32.xlu0 %v32
  %v34 = vpop.xlane.xlu0 %33
  %v35 = vsel %vm31, %v26, 0.0
  %36 = vadd.xlane.f32.xlu0 %v35
  %v37 = vpop.xlane.xlu0 %36
  %v38 = vsel %vm31, %v27, 0.0
  %39 = vadd.xlane.f32.xlu0 %v38
  %v40 = vpop.xlane.xlu0 %39
  %v41 = vsel %vm31, %v28, 0.0
  %42 = vadd.xlane.f32.xlu0 %v41
  %v43 = vpop.xlane.xlu0 %42
  %v44 = vrcp.pop 32.0
  %v45 = vmul.f32 %v34, %v44
  %v46 = vmul.f32 %v37, %v44
  %v47 = vmul.f32 %v40, %v44
  %v48 = vmul.f32 %v43, %v44
  %v49 = vsub.f32 %v25, %v45
  %v50 = vsub.f32 %v26, %v46
  %v51 = vsub.f32 %v27, %v47
  %v52 = vsub.f32 %v28, %v48
  %v53 = vmul.f32 %v49, %v49
  %v54 = vmul.f32 %v50, %v50
  %v55 = vmul.f32 %v51, %v51
  %v56 = vmul.f32 %v52, %v52
  %v57 = vsel %vm31, %v53, 0.0
  %58 = vadd.xlane.f32.xlu0 %v57
  %v59 = vpop.xlane.xlu0 %58
  %v60 = vsel %vm31, %v54, 0.0
  %61 = vadd.xlane.f32.xlu0 %v60
  %v62 = vpop.xlane.xlu0 %61
  %v63 = vsel %vm31, %v55, 0.0
  %64 = vadd.xlane.f32.xlu0 %v63
  %v65 = vpop.xlane.xlu0 %64
  %v66 = vsel %vm31, %v56, 0.0
  %67 = vadd.xlane.f32.xlu0 %v66
  %v68 = vpop.xlane.xlu0 %67
  %v69 = vmul.f32 %v59, %v44
  %v70 = vmul.f32 %v62, %v44
  %v71 = vmul.f32 %v65, %v44
  %v72 = vmul.f32 %v68, %v44
  %v73 = vadd.f32 %v69, 1e-05
  %v74 = vadd.f32 %v70, 1e-05
  %v75 = vadd.f32 %v71, 1e-05
  %v76 = vadd.f32 %v72, 1e-05
  %v77 = vrsqrt.pop %v73
  %v78 = vrsqrt.pop %v74
  %v79 = vrsqrt.pop %v75
  %v80 = vrsqrt.pop %v76
  %v81 = vmul.f32 %v49, %v77
  %v82 = vmul.f32 %v50, %v78
  %v83 = vmul.f32 %v51, %v79
  %v84 = vmul.f32 %v52, %v80
  %v86 = vlaneseq
  %v87 = vshrl.u32 %v86, 7
  %v88 = vsub.s32 0, %v87
  %v89 = vrot.slane %v29, %v88
  %v91 = vmul.f32 %v81, %v89
  %v92 = vmul.f32 %v82, %v89
  %v93 = vmul.f32 %v83, %v89
  %v94 = vmul.f32 %v84, %v89
  %v96 = vlaneseq
  %v97 = vshrl.u32 %v96, 7
  %v98 = vsub.s32 0, %v97
  %v99 = vrot.slane %v30, %v98
  %v101 = vadd.f32 %v91, %v99
  %v102 = vadd.f32 %v92, %v99
  %v103 = vadd.f32 %v93, %v99
  %v104 = vadd.f32 %v94, %v99
  %v105 = vpack.c.bf16 %v102, %v101
  %v106 = vpack.c.bf16 %v104, %v103
  %v107 = vld [vmem:[%s3] sm:$0xf]
  %v108 = vld [vmem:[%s3 + $0x4] sm:$0xf]
  %v109 = vld [vmem:[%s3 + $0x8] sm:$0xf]
  %v110 = vld [vmem:[%s3 + $0xc] sm:$0xf]
  %v111 = vld [vmem:[%s4] sm:$0x1]
  %v113 = vlaneseq
  %v114 = vshrl.u32 %v113, 7
  %v115 = vsub.s32 0, %v114
  %v116 = vrot.slane %v111, %v115
  %v122 = vunpack.c.l.b16 %v107
  %v123 = vunpack.c.l.b16 %v108
  %v124 = vunpack.c.l.b16 %v109
  %v125 = vunpack.c.l.b16 %v110
  %v126 = vpack.c.b16 %v123, %v122
  %v127 = vpack.c.b16 %v125, %v124
  %v131 = vsel %vm31, %v105, 0
  %v134 = vsel %vm31, %v106, 0
  %136 = vmatprep.subr.bf16.mxu0 0
  %137 = vmatpush1.bf16.msra.mxu0 %v126
  %138 = vmatprep.subr.bf16.mxu0 0
  %139 = vmatpush1.bf16.msra.mxu0 %v127
  %140 = vmatprep.subr.bf16.mxu0 0
  %141 = vmatpush1.bf16.msra.mxu0 0
  %142 = vmatprep.subr.bf16.mxu0 0
  %143 = vmatpush1.bf16.msra.mxu0 0
  %144 = vmatprep.subr.bf16.mxu0 0
  %145 = vmatpush1.bf16.msra.mxu0 0
  %146 = vmatprep.subr.bf16.mxu0 0
  %147 = vmatpush1.bf16.msra.mxu0 0
  %148 = vmatprep.subr.bf16.mxu0 0
  %149 = vmatpush1.bf16.msra.mxu0 0
  %150 = vmatprep.subr.bf16.mxu0 0
  %151 = vmatpush1.bf16.msra.mxu0 0
  %152 = vmatprep.subr.bf16.mxu0 0
  %153 = vmatpush1.bf16.msra.mxu0 0
  %154 = vmatprep.subr.bf16.mxu0 0
  %155 = vmatpush1.bf16.msra.mxu0 0
  %156 = vmatprep.subr.bf16.mxu0 0
  %157 = vmatpush1.bf16.msra.mxu0 0
  %158 = vmatprep.subr.bf16.mxu0 0
  %159 = vmatpush1.bf16.msra.mxu0 0
  %160 = vmatprep.subr.bf16.mxu0 0
  %161 = vmatpush1.bf16.msra.mxu0 0
  %162 = vmatprep.subr.bf16.mxu0 0
  %163 = vmatpush1.bf16.msra.mxu0 0
  %164 = vmatprep.subr.bf16.mxu0 0
  %165 = vmatpush1.bf16.msra.mxu0 0
  %166 = vmatprep.subr.bf16.mxu0 0
  %167 = vmatpush1.bf16.msra.mxu0 0
  %168 = vmatprep.mubr.bf16.mxu0 0
  %169 = vmatmul.mubr.bf16.gmra.mrb[0].mxu0 %v131
  %v170 = vpop.f32.mrb[0].mxu0
  %v171 = vadd.f32 %v116, %v170
  %v172 = vpop.f32.mrb[0].mxu0
  %v173 = vpop.f32.mrb[0].mxu0
  %v174 = vadd.f32 %v116, %v173
  %v175 = vpop.f32.mrb[0].mxu0
  %176 = vmatprep.mubr.bf16.mxu0 0
  %177 = vmatmul.mubr.bf16.gmra.mrb[0].mxu0 %v134
  %v178 = vpop.f32.mrb[0].mxu0
  %v179 = vadd.f32 %v116, %v178
  %v180 = vpop.f32.mrb[0].mxu0
  %v181 = vpop.f32.mrb[0].mxu0
  %v182 = vadd.f32 %v116, %v181
  %v183 = vpop.f32.mrb[0].mxu0
  %184 = vdwg.mxu0
  %v185 = vmul.f32 %v171, 0.5
  %v186 = vmul.f32 %v174, 0.5
  %v187 = vmul.f32 %v179, 0.5
  %v188 = vmul.f32 %v182, 0.5
  %v189 = vmul.f32 %v171, 0.70710677
  %v190 = vmul.f32 %v174, 0.70710677
  %v191 = vmul.f32 %v179, 0.70710677
  %v192 = vmul.f32 %v182, 0.70710677
  %v193 = verf.f32.pop %v189
  %v194 = verf.f32.pop %v190
  %v195 = verf.f32.pop %v191
  %v196 = verf.f32.pop %v192
  %v197 = vadd.f32 %v193, 1.0
  %v198 = vadd.f32 %v194, 1.0
  %v199 = vadd.f32 %v195, 1.0
  %v200 = vadd.f32 %v196, 1.0
  %v201 = vmul.f32 %v185, %v197
  %v202 = vmul.f32 %v186, %v198
  %v203 = vmul.f32 %v187, %v199
  %v204 = vmul.f32 %v188, %v200
  %v205 = vpack.c.bf16 %v202, %v201
  %v206 = vpack.c.bf16 %v204, %v203
  %v209 = vunpack.c.l.b16 %v205
  %v210 = vunpack.c.h.b16 %v205
  %v211 = vunpack.c.l.b16 %v206
  %v212 = vunpack.c.h.b16 %v206
  %v213 = vpack.c.b16 %v209, %v209
  %v214 = vpack.c.b16 %v210, %v210
  %v215 = vpack.c.b16 %v211, %v211
  %v216 = vpack.c.b16 %v212, %v212
  %221 = vst [vmem:[%s5] sm:$0xf] %v213
  %222 = vst [vmem:[%s5 + $0x4] sm:$0xf] %v214
  %223 = vst [vmem:[%s5 + $0x8] sm:$0xf] %v215
  %224 = vst [vmem:[%s5 + $0xc] sm:$0xf] %v216
  // Predicated region
  $region22: #{image_encoder_vit.19} parent=0 // pred_check
    _
  $region23: #{image_encoder_vit.19} parent=0 // pred_check_branch
    %226 = sbr.rel (0) target = $region25
  $region24: #{image_encoder_vit.19} parent=0 // pred_region
    _
  $region25: #{image_encoder_vit.19} parent=0 // pred_fallthru
    _
  // Predicated region
  $region26: #{image_encoder_vit.19} parent=0 // pred_check
    _
  $region27: #{image_encoder_vit.19} parent=0 // pred_check_branch
    %228 = sbr.rel (0) target = $region29
  $region28: #{image_encoder_vit.19} parent=0 // pred_region
    _
  $region29: #{image_encoder_vit.19} parent=0 // pred_fallthru
    _

// kernel: image_encoder_vit.20
$region0: #{image_encoder_vit.20}
  #allocation0 [shape = 'u32[]', space=smem, size = 0x4, offset = 0x4, fixed_abs, tag = 'smem constant byte address 0x4 - core index']
  #allocation1 [shape = 'u32[144,128]{1,0:T(1,128)}', space=vmem, size = 0x12000, scoped, tag = 'internal scratch']
  %s0 = inlined_call_operand.vmem [shape: bf16[32,128], index: 0, kind: input, shape index: {}]
  %s1 = inlined_call_operand.vmem [shape: bf16[128,32], index: 1, kind: input, shape index: {}]
  %s2 = inlined_call_operand.vmem [shape: f32[1,32], index: 2, kind: input, shape index: {}]
  %s3 = inlined_call_operand.vmem [shape: bf16[32,32], index: 3, kind: input, shape index: {}]
  %s4 = inlined_call_operand.vmem [shape: bf16[32,32], index: 4, kind: output, shape index: {}]
  %s5 = sld [smem:[#allocation0]]
  $region26: #{image_encoder_vit.20} parent=0
    _
  %s7 = ssub.s32 1, %s5
  %s8 = scalar_select 0, %s7, %s5
  // Predicated region
  $region2: #{image_encoder_vit.20} parent=0 // pred_check
    _
  $region3: #{image_encoder_vit.20} parent=0 // pred_check_branch
    %10 = sbr.rel (0) target = $region5
  $region4: #{image_encoder_vit.20} parent=0 // pred_region
    _
  $region5: #{image_encoder_vit.20} parent=0 // pred_fallthru
    _
  // Predicated region
  $region6: #{image_encoder_vit.20} parent=0 // pred_check
    _
  $region7: #{image_encoder_vit.20} parent=0 // pred_check_branch
    %12 = sbr.rel (0) target = $region9
  $region8: #{image_encoder_vit.20} parent=0 // pred_region
    _
  $region9: #{image_encoder_vit.20} parent=0 // pred_fallthru
    _
  // Predicated region
  $region10: #{image_encoder_vit.20} parent=0 // pred_check
    _
  $region11: #{image_encoder_vit.20} parent=0 // pred_check_branch
    %14 = sbr.rel (0) target = $region13
  $region12: #{image_encoder_vit.20} parent=0 // pred_region
    _
  $region13: #{image_encoder_vit.20} parent=0 // pred_fallthru
    _
  // Predicated region
  $region14: #{image_encoder_vit.20} parent=0 // pred_check
    _
  $region15: #{image_encoder_vit.20} parent=0 // pred_check_branch
    %16 = sbr.rel (0) target = $region17
  $region16: #{image_encoder_vit.20} parent=0 // pred_region
    _
  $region17: #{image_encoder_vit.20} parent=0 // pred_fallthru
    _
  %v18 = vld [vmem:[%s0] sm:$0xf]
  %v19 = vld [vmem:[%s0 + $0x4] sm:$0xf]
  %v20 = vld [vmem:[%s0 + $0x8] sm:$0xf]
  %v21 = vld [vmem:[%s0 + $0xc] sm:$0xf]
  %v22 = vld [vmem:[%s1] sm:$0xf]
  %v23 = vld [vmem:[%s1 + $0x4] sm:$0xf]
  %v24 = vld [vmem:[%s1 + $0x8] sm:$0xf]
  %v25 = vld [vmem:[%s1 + $0xc] sm:$0xf]
  %v26 = vld [vmem:[%s1 + $0x10] sm:$0xf]
  %v27 = vld [vmem:[%s1 + $0x14] sm:$0xf]
  %v28 = vld [vmem:[%s1 + $0x18] sm:$0xf]
  %v29 = vld [vmem:[%s1 + $0x1c] sm:$0xf]
  %v30 = vld [vmem:[%s1 + $0x20] sm:$0xf]
  %v31 = vld [vmem:[%s1 + $0x24] sm:$0xf]
  %v32 = vld [vmem:[%s1 + $0x28] sm:$0xf]
  %v33 = vld [vmem:[%s1 + $0x2c] sm:$0xf]
  %v34 = vld [vmem:[%s1 + $0x30] sm:$0xf]
  %v35 = vld [vmem:[%s1 + $0x34] sm:$0xf]
  %v36 = vld [vmem:[%s1 + $0x38] sm:$0xf]
  %v37 = vld [vmem:[%s1 + $0x3c] sm:$0xf]
  %v38 = vld [vmem:[%s2] sm:$0x1]
  %v40 = vlaneseq
  %v41 = vshrl.u32 %v40, 7
  %v42 = vsub.s32 0, %v41
  %v43 = vrot.slane %v38, %v42
  %v49 = vunpack.c.l.b16 %v18
  %v50 = vunpack.c.l.b16 %v19
  %v51 = vunpack.c.l.b16 %v20
  %v52 = vunpack.c.l.b16 %v21
  %v53 = vpack.c.b16 %v50, %v49
  %v54 = vpack.c.b16 %v52, %v51
  %v73 = vunpack.c.l.b16 %v22
  %v74 = vunpack.c.l.b16 %v23
  %v75 = vunpack.c.l.b16 %v24
  %v76 = vunpack.c.l.b16 %v25
  %v77 = vunpack.c.l.b16 %v26
  %v78 = vunpack.c.l.b16 %v27
  %v79 = vunpack.c.l.b16 %v28
  %v80 = vunpack.c.l.b16 %v29
  %v81 = vunpack.c.l.b16 %v30
  %v82 = vunpack.c.l.b16 %v31
  %v83 = vunpack.c.l.b16 %v32
  %v84 = vunpack.c.l.b16 %v33
  %v85 = vunpack.c.l.b16 %v34
  %v86 = vunpack.c.l.b16 %v35
  %v87 = vunpack.c.l.b16 %v36
  %v88 = vunpack.c.l.b16 %v37
  %v89 = vpack.c.b16 %v74, %v73
  %v90 = vpack.c.b16 %v76, %v75
  %v91 = vpack.c.b16 %v78, %v77
  %v92 = vpack.c.b16 %v80, %v79
  %v93 = vpack.c.b16 %v82, %v81
  %v94 = vpack.c.b16 %v84, %v83
  %v95 = vpack.c.b16 %v86, %v85
  %v96 = vpack.c.b16 %v88, %v87
  %105 = vmatprep.subr.bf16.mxu0 0
  %106 = vmatpush1.bf16.msra.mxu0 %v89
  %107 = vmatprep.subr.bf16.mxu0 0
  %108 = vmatpush1.bf16.msra.mxu0 %v90
  %109 = vmatprep.subr.bf16.mxu0 0
  %110 = vmatpush1.bf16.msra.mxu0 %v91
  %111 = vmatprep.subr.bf16.mxu0 0
  %112 = vmatpush1.bf16.msra.mxu0 %v92
  %113 = vmatprep.subr.bf16.mxu0 0
  %114 = vmatpush1.bf16.msra.mxu0 %v93
  %115 = vmatprep.subr.bf16.mxu0 0
  %116 = vmatpush1.bf16.msra.mxu0 %v94
  %117 = vmatprep.subr.bf16.mxu0 0
  %118 = vmatpush1.bf16.msra.mxu0 %v95
  %119 = vmatprep.subr.bf16.mxu0 0
  %120 = vmatpush1.bf16.msra.mxu0 %v96
  %121 = vmatprep.subr.bf16.mxu0 0
  %122 = vmatpush1.bf16.msra.mxu0 0
  %123 = vmatprep.subr.bf16.mxu0 0
  %124 = vmatpush1.bf16.msra.mxu0 0
  %125 = vmatprep.subr.bf16.mxu0 0
  %126 = vmatpush1.bf16.msra.mxu0 0
  %127 = vmatprep.subr.bf16.mxu0 0
  %128 = vmatpush1.bf16.msra.mxu0 0
  %129 = vmatprep.subr.bf16.mxu0 0
  %130 = vmatpush1.bf16.msra.mxu0 0
  %131 = vmatprep.subr.bf16.mxu0 0
  %132 = vmatpush1.bf16.msra.mxu0 0
  %133 = vmatprep.subr.bf16.mxu0 0
  %134 = vmatpush1.bf16.msra.mxu0 0
  %135 = vmatprep.subr.bf16.mxu0 0
  %136 = vmatpush1.bf16.msra.mxu0 0
  %137 = vmatprep.mubr.bf16.mxu0 0
  %138 = vmatmul.mubr.bf16.gmra.mrb[0].mxu0 %v53
  %v139 = vpop.f32.mrb[0].mxu0
  %v140 = vadd.f32 %v43, %v139
  %v141 = vpop.f32.mrb[0].mxu0
  %v142 = vpop.f32.mrb[0].mxu0
  %v143 = vadd.f32 %v43, %v142
  %v144 = vpop.f32.mrb[0].mxu0
  %145 = vmatprep.mubr.bf16.mxu0 0
  %146 = vmatmul.mubr.bf16.gmra.mrb[0].mxu0 %v54
  %v147 = vpop.f32.mrb[0].mxu0
  %v148 = vadd.f32 %v43, %v147
  %v149 = vpop.f32.mrb[0].mxu0
  %v150 = vpop.f32.mrb[0].mxu0
  %v151 = vadd.f32 %v43, %v150
  %v152 = vpop.f32.mrb[0].mxu0
  %153 = vdwg.mxu0
  %v154 = vld [vmem:[%s3] sm:$0xf]
  %v155 = vld [vmem:[%s3 + $0x4] sm:$0xf]
  %v156 = vld [vmem:[%s3 + $0x8] sm:$0xf]
  %v157 = vld [vmem:[%s3 + $0xc] sm:$0xf]
  %v158 = vunpack.c.l.bf16 %v154
  %v159 = vunpack.c.l.bf16 %v155
  %v160 = vunpack.c.l.bf16 %v156
  %v161 = vunpack.c.l.bf16 %v157
  %v162 = vadd.f32 %v140, %v158
  %v163 = vadd.f32 %v143, %v159
  %v164 = vadd.f32 %v148, %v160
  %v165 = vadd.f32 %v151, %v161
  %v166 = vpack.c.bf16 %v163, %v162
  %v167 = vpack.c.bf16 %v165, %v164
  %v170 = vunpack.c.l.b16 %v166
  %v171 = vunpack.c.h.b16 %v166
  %v172 = vunpack.c.l.b16 %v167
  %v173 = vunpack.c.h.b16 %v167
  %v174 = vpack.c.b16 %v170, %v170
  %v175 = vpack.c.b16 %v171, %v171
  %v176 = vpack.c.b16 %v172, %v172
  %v177 = vpack.c.b16 %v173, %v173
  %vm182 = vcmask 257024
  %183 = vst.msk [vmem:[%s4] sm:$0xf] %vm182, %v174
  %184 = vst.msk [vmem:[%s4 + $0x4] sm:$0xf] %vm182, %v175
  %185 = vst.msk [vmem:[%s4 + $0x8] sm:$0xf] %vm182, %v176
  %186 = vst.msk [vmem:[%s4 + $0xc] sm:$0xf] %vm182, %v177
  // Predicated region
  $region18: #{image_encoder_vit.20} parent=0 // pred_check
    _
  $region19: #{image_encoder_vit.20} parent=0 // pred_check_branch
    %188 = sbr.rel (0) target = $region21
  $region20: #{image_encoder_vit.20} parent=0 // pred_region
    _
  $region21: #{image_encoder_vit.20} parent=0 // pred_fallthru
    _
  // Predicated region
  $region22: #{image_encoder_vit.20} parent=0 // pred_check
    _
  $region23: #{image_encoder_vit.20} parent=0 // pred_check_branch
    %190 = sbr.rel (0) target = $region25
  $region24: #{image_encoder_vit.20} parent=0 // pred_region
    _
  $region25: #{image_encoder_vit.20} parent=0 // pred_fallthru
    _

// kernel: image_encoder_vit.26
$region0: #{image_encoder_vit.26}
  #allocation0 [shape = 'u32[]', space=smem, size = 0x4, offset = 0x4, fixed_abs, tag = 'smem constant byte address 0x4 - core index']
  #allocation1 [shape = 'u32[144,128]{1,0:T(1,128)}', space=vmem, size = 0x12000, scoped, tag = 'internal scratch']
  %s0 = inlined_call_operand.vmem [shape: bf16[32,32], index: 0, kind: input, shape index: {}]
  %s1 = inlined_call_operand.vmem [shape: bf16[32,32], index: 1, kind: input, shape index: {}]
  %s2 = inlined_call_operand.vmem [shape: f32[1,32], index: 2, kind: input, shape index: {}]
  %s3 = inlined_call_operand.vmem [shape: bf16[32,32], index: 3, kind: output, shape index: {}]
  %s4 = sld [smem:[#allocation0]]
  $region22: #{image_encoder_vit.26} parent=0
    _
  %s6 = ssub.s32 1, %s4
  %s7 = scalar_select 0, %s6, %s4
  // Predicated region
  $region2: #{image_encoder_vit.26} parent=0 // pred_check
    _
  $region3: #{image_encoder_vit.26} parent=0 // pred_check_branch
    %9 = sbr.rel (0) target = $region5
  $region4: #{image_encoder_vit.26} parent=0 // pred_region
    _
  $region5: #{image_encoder_vit.26} parent=0 // pred_fallthru
    _
  // Predicated region
  $region6: #{image_encoder_vit.26} parent=0 // pred_check
    _
  $region7: #{image_encoder_vit.26} parent=0 // pred_check_branch
    %11 = sbr.rel (0) target = $region9
  $region8: #{image_encoder_vit.26} parent=0 // pred_region
    _
  $region9: #{image_encoder_vit.26} parent=0 // pred_fallthru
    _
  // Predicated region
  $region10: #{image_encoder_vit.26} parent=0 // pred_check
    _
  $region11: #{image_encoder_vit.26} parent=0 // pred_check_branch
    %13 = sbr.rel (0) target = $region13
  $region12: #{image_encoder_vit.26} parent=0 // pred_region
    _
  $region13: #{image_encoder_vit.26} parent=0 // pred_fallthru
    _
  %v15 = vld [vmem:[%s0] sm:$0xf]
  %v16 = vld [vmem:[%s0 + $0x4] sm:$0xf]
  %v17 = vld [vmem:[%s0 + $0x8] sm:$0xf]
  %v18 = vld [vmem:[%s0 + $0xc] sm:$0xf]
  %v19 = vld [vmem:[%s1] sm:$0xf]
  %v20 = vld [vmem:[%s1 + $0x4] sm:$0xf]
  %v21 = vld [vmem:[%s1 + $0x8] sm:$0xf]
  %v22 = vld [vmem:[%s1 + $0xc] sm:$0xf]
  %v23 = vld [vmem:[%s2] sm:$0x1]
  %v25 = vlaneseq
  %v26 = vshrl.u32 %v25, 7
  %v27 = vsub.s32 0, %v26
  %v28 = vrot.slane %v23, %v27
  %v34 = vunpack.c.l.b16 %v15
  %v35 = vunpack.c.l.b16 %v16
  %v36 = vunpack.c.l.b16 %v17
  %v37 = vunpack.c.l.b16 %v18
  %v38 = vpack.c.b16 %v35, %v34
  %v39 = vpack.c.b16 %v37, %v36
  %v44 = vunpack.c.l.b16 %v19
  %v45 = vunpack.c.l.b16 %v20
  %v46 = vunpack.c.l.b16 %v21
  %v47 = vunpack.c.l.b16 %v22
  %v48 = vpack.c.b16 %v45, %v44
  %v49 = vpack.c.b16 %v47, %v46
  %vm52 = vcmask 261120
  %v54 = vsel %vm52, %v38, 0
  %v57 = vsel %vm52, %v39, 0
  %59 = vmatprep.subr.bf16.mxu0 0
  %60 = vmatpush1.bf16.msra.mxu0 %v48
  %61 = vmatprep.subr.bf16.mxu0 0
  %62 = vmatpush1.bf16.msra.mxu0 %v49
  %63 = vmatprep.subr.bf16.mxu0 0
  %64 = vmatpush1.bf16.msra.mxu0 0
  %65 = vmatprep.subr.bf16.mxu0 0
  %66 = vmatpush1.bf16.msra.mxu0 0
  %67 = vmatprep.subr.bf16.mxu0 0
  %68 = vmatpush1.bf16.msra.mxu0 0
  %69 = vmatprep.subr.bf16.mxu0 0
  %70 = vmatpush1.bf16.msra.mxu0 0
  %71 = vmatprep.subr.bf16.mxu0 0
  %72 = vmatpush1.bf16.msra.mxu0 0
  %73 = vmatprep.subr.bf16.mxu0 0
  %74 = vmatpush1.bf16.msra.mxu0 0
  %75 = vmatprep.subr.bf16.mxu0 0
  %76 = vmatpush1.bf16.msra.mxu0 0
  %77 = vmatprep.subr.bf16.mxu0 0
  %78 = vmatpush1.bf16.msra.mxu0 0
  %79 = vmatprep.subr.bf16.mxu0 0
  %80 = vmatpush1.bf16.msra.mxu0 0
  %81 = vmatprep.subr.bf16.mxu0 0
  %82 = vmatpush1.bf16.msra.mxu0 0
  %83 = vmatprep.subr.bf16.mxu0 0
  %84 = vmatpush1.bf16.msra.mxu0 0
  %85 = vmatprep.subr.bf16.mxu0 0
  %86 = vmatpush1.bf16.msra.mxu0 0
  %87 = vmatprep.subr.bf16.mxu0 0
  %88 = vmatpush1.bf16.msra.mxu0 0
  %89 = vmatprep.subr.bf16.mxu0 0
  %90 = vmatpush1.bf16.msra.mxu0 0
  %91 = vmatprep.mubr.bf16.mxu0 0
  %92 = vmatmul.mubr.bf16.gmra.mrb[0].mxu0 %v54
  %v93 = vpop.f32.mrb[0].mxu0
  %v94 = vadd.f32 %v28, %v93
  %v95 = vpop.f32.mrb[0].mxu0
  %v96 = vpop.f32.mrb[0].mxu0
  %v97 = vadd.f32 %v28, %v96
  %v98 = vpop.f32.mrb[0].mxu0
  %99 = vmatprep.mubr.bf16.mxu0 0
  %100 = vmatmul.mubr.bf16.gmra.mrb[0].mxu0 %v57
  %v101 = vpop.f32.mrb[0].mxu0
  %v102 = vadd.f32 %v28, %v101
  %v103 = vpop.f32.mrb[0].mxu0
  %v104 = vpop.f32.mrb[0].mxu0
  %v105 = vadd.f32 %v28, %v104
  %v106 = vpop.f32.mrb[0].mxu0
  %107 = vdwg.mxu0
  %v108 = vpack.c.bf16 %v97, %v94
  %v109 = vpack.c.bf16 %v105, %v102
  %v112 = vunpack.c.l.b16 %v108
  %v113 = vunpack.c.h.b16 %v108
  %v114 = vunpack.c.l.b16 %v109
  %v115 = vunpack.c.h.b16 %v109
  %v116 = vpack.c.b16 %v112, %v112
  %v117 = vpack.c.b16 %v113, %v113
  %v118 = vpack.c.b16 %v114, %v114
  %v119 = vpack.c.b16 %v115, %v115
  %vm124 = vcmask 257024
  %125 = vst.msk [vmem:[%s3] sm:$0xf] %vm124, %v116
  %126 = vst.msk [vmem:[%s3 + $0x4] sm:$0xf] %vm124, %v117
  %127 = vst.msk [vmem:[%s3 + $0x8] sm:$0xf] %vm124, %v118
  %128 = vst.msk [vmem:[%s3 + $0xc] sm:$0xf] %vm124, %v119
  // Predicated region
  $region14: #{image_encoder_vit.26} parent=0 // pred_check
    _
  $region15: #{image_encoder_vit.26} parent=0 // pred_check_branch
    %130 = sbr.rel (0) target = $region17
  $region16: #{image_encoder_vit.26} parent=0 // pred_region
    _
  $region17: #{image_encoder_vit.26} parent=0 // pred_fallthru
    _
  // Predicated region
  $region18: #{image_encoder_vit.26} parent=0 // pred_check
    _
  $region19: #{image_encoder_vit.26} parent=0 // pred_check_branch
    %132 = sbr.rel (0) target = $region21
  $region20: #{image_encoder_vit.26} parent=0 // pred_region
    _
  $region21: #{image_encoder_vit.26} parent=0 // pred_fallthru
    _

// kernel: image_encoder_vit.27
$region0: #{image_encoder_vit.27}
  #allocation0 [shape = 'u32[]', space=smem, size = 0x4, offset = 0x4, fixed_abs, tag = 'smem constant byte address 0x4 - core index']
  #allocation1 [shape = 'u32[144,128]{1,0:T(1,128)}', space=vmem, size = 0x12000, scoped, tag = 'internal scratch']
  %s0 = inlined_call_operand.vmem [shape: bf16[32,32], index: 0, kind: input, shape index: {}]
  %s1 = inlined_call_operand.vmem [shape: f32[1,32], index: 1, kind: input, shape index: {}]
  %s2 = inlined_call_operand.vmem [shape: f32[1,32], index: 2, kind: input, shape index: {}]
  %s3 = inlined_call_operand.vmem [shape: bf16[32,32], index: 3, kind: output, shape index: {}]
  %s4 = sld [smem:[#allocation0]]
  $region22: #{image_encoder_vit.27} parent=0
    _
  %s6 = ssub.s32 1, %s4
  %s7 = scalar_select 0, %s6, %s4
  // Predicated region
  $region2: #{image_encoder_vit.27} parent=0 // pred_check
    _
  $region3: #{image_encoder_vit.27} parent=0 // pred_check_branch
    %9 = sbr.rel (0) target = $region5
  $region4: #{image_encoder_vit.27} parent=0 // pred_region
    _
  $region5: #{image_encoder_vit.27} parent=0 // pred_fallthru
    _
  // Predicated region
  $region6: #{image_encoder_vit.27} parent=0 // pred_check
    _
  $region7: #{image_encoder_vit.27} parent=0 // pred_check_branch
    %11 = sbr.rel (0) target = $region9
  $region8: #{image_encoder_vit.27} parent=0 // pred_region
    _
  $region9: #{image_encoder_vit.27} parent=0 // pred_fallthru
    _
  // Predicated region
  $region10: #{image_encoder_vit.27} parent=0 // pred_check
    _
  $region11: #{image_encoder_vit.27} parent=0 // pred_check_branch
    %13 = sbr.rel (0) target = $region13
  $region12: #{image_encoder_vit.27} parent=0 // pred_region
    _
  $region13: #{image_encoder_vit.27} parent=0 // pred_fallthru
    _
  %v14 = vld [vmem:[%s0] sm:$0xf]
  %v15 = vld [vmem:[%s0 + $0x4] sm:$0xf]
  %v16 = vld [vmem:[%s0 + $0x8] sm:$0xf]
  %v17 = vld [vmem:[%s0 + $0xc] sm:$0xf]
  %v18 = vunpack.c.l.bf16 %v14
  %v19 = vunpack.c.l.bf16 %v15
  %v20 = vunpack.c.l.bf16 %v16
  %v21 = vunpack.c.l.bf16 %v17
  %v22 = vld [vmem:[%s1] sm:$0x1]
  %v23 = vld [vmem:[%s2] sm:$0x1]
  %vm24 = vcmask 261120
  %v25 = vsel %vm24, %v18, 0.0
  %26 = vadd.xlane.f32.xlu0 %v25
  %v27 = vpop.xlane.xlu0 %26
  %v28 = vsel %vm24, %v19, 0.0
  %29 = vadd.xlane.f32.xlu0 %v28
  %v30 = vpop.xlane.xlu0 %29
  %v31 = vsel %vm24, %v20, 0.0
  %32 = vadd.xlane.f32.xlu0 %v31
  %v33 = vpop.xlane.xlu0 %32
  %v34 = vsel %vm24, %v21, 0.0
  %35 = vadd.xlane.f32.xlu0 %v34
  %v36 = vpop.xlane.xlu0 %35
  %v37 = vrcp.pop 32.0
  %v38 = vmul.f32 %v27, %v37
  %v39 = vmul.f32 %v30, %v37
  %v40 = vmul.f32 %v33, %v37
  %v41 = vmul.f32 %v36, %v37
  %v42 = vsub.f32 %v18, %v38
  %v43 = vsub.f32 %v19, %v39
  %v44 = vsub.f32 %v20, %v40
  %v45 = vsub.f32 %v21, %v41
  %v46 = vmul.f32 %v42, %v42
  %v47 = vmul.f32 %v43, %v43
  %v48 = vmul.f32 %v44, %v44
  %v49 = vmul.f32 %v45, %v45
  %v50 = vsel %vm24, %v46, 0.0
  %51 = vadd.xlane.f32.xlu0 %v50
  %v52 = vpop.xlane.xlu0 %51
  %v53 = vsel %vm24, %v47, 0.0
  %54 = vadd.xlane.f32.xlu0 %v53
  %v55 = vpop.xlane.xlu0 %54
  %v56 = vsel %vm24, %v48, 0.0
  %57 = vadd.xlane.f32.xlu0 %v56
  %v58 = vpop.xlane.xlu0 %57
  %v59 = vsel %vm24, %v49, 0.0
  %60 = vadd.xlane.f32.xlu0 %v59
  %v61 = vpop.xlane.xlu0 %60
  %v62 = vmul.f32 %v52, %v37
  %v63 = vmul.f32 %v55, %v37
  %v64 = vmul.f32 %v58, %v37
  %v65 = vmul.f32 %v61, %v37
  %v66 = vadd.f32 %v62, 1e-06
  %v67 = vadd.f32 %v63, 1e-06
  %v68 = vadd.f32 %v64, 1e-06
  %v69 = vadd.f32 %v65, 1e-06
  %v70 = vrsqrt.pop %v66
  %v71 = vrsqrt.pop %v67
  %v72 = vrsqrt.pop %v68
  %v73 = vrsqrt.pop %v69
  %v74 = vmul.f32 %v42, %v70
  %v75 = vmul.f32 %v43, %v71
  %v76 = vmul.f32 %v44, %v72
  %v77 = vmul.f32 %v45, %v73
  %v79 = vlaneseq
  %v80 = vshrl.u32 %v79, 7
  %v81 = vsub.s32 0, %v80
  %v82 = vrot.slane %v22, %v81
  %v84 = vmul.f32 %v74, %v82
  %v85 = vmul.f32 %v75, %v82
  %v86 = vmul.f32 %v76, %v82
  %v87 = vmul.f32 %v77, %v82
  %v89 = vlaneseq
  %v90 = vshrl.u32 %v89, 7
  %v91 = vsub.s32 0, %v90
  %v92 = vrot.slane %v23, %v91
  %v94 = vadd.f32 %v84, %v92
  %v95 = vadd.f32 %v85, %v92
  %v96 = vadd.f32 %v86, %v92
  %v97 = vadd.f32 %v87, %v92
  %v98 = vpack.c.bf16 %v95, %v94
  %v99 = vpack.c.bf16 %v97, %v96
  %v102 = vunpack.c.l.b16 %v98
  %v103 = vunpack.c.h.b16 %v98
  %v104 = vunpack.c.l.b16 %v99
  %v105 = vunpack.c.h.b16 %v99
  %v106 = vpack.c.b16 %v102, %v102
  %v107 = vpack.c.b16 %v103, %v103
  %v108 = vpack.c.b16 %v104, %v104
  %v109 = vpack.c.b16 %v105, %v105
  %vm114 = vcmask 257024
  %115 = vst.msk [vmem:[%s3] sm:$0xf] %vm114, %v106
  %116 = vst.msk [vmem:[%s3 + $0x4] sm:$0xf] %vm114, %v107
  %117 = vst.msk [vmem:[%s3 + $0x8] sm:$0xf] %vm114, %v108
  %118 = vst.msk [vmem:[%s3 + $0xc] sm:$0xf] %vm114, %v109
  // Predicated region
  $region14: #{image_encoder_vit.27} parent=0 // pred_check
    _
  $region15: #{image_encoder_vit.27} parent=0 // pred_check_branch
    %120 = sbr.rel (0) target = $region17
  $region16: #{image_encoder_vit.27} parent=0 // pred_region
    _
  $region17: #{image_encoder_vit.27} parent=0 // pred_fallthru
    _
  // Predicated region
  $region18: #{image_encoder_vit.27} parent=0 // pred_check
    _
  $region19: #{image_encoder_vit.27} parent=0 // pred_check_branch
    %122 = sbr.rel (0) target = $region21
  $region20: #{image_encoder_vit.27} parent=0 // pred_region
    _
  $region21: #{image_encoder_vit.27} parent=0 // pred_fallthru
    _

// kernel: image_encoder_vit.29
$region0: #{image_encoder_vit.29}
  #allocation0 [shape = 'u32[]', space=smem, size = 0x4, offset = 0x4, fixed_abs, tag = 'smem constant byte address 0x4 - core index']
  #allocation1 [shape = 'u32[144,128]{1,0:T(1,128)}', space=vmem, size = 0x12000, scoped, tag = 'internal scratch']
  %s0 = inlined_call_operand.vmem [shape: bf16[32,32], index: 0, kind: input, shape index: {}]
  %s1 = inlined_call_operand.vmem [shape: f32[1,32], index: 1, kind: input, shape index: {}]
  %s2 = inlined_call_operand.vmem [shape: f32[1,32], index: 2, kind: input, shape index: {}]
  %s3 = inlined_call_operand.hbm [shape: f32[32,32], index: 3, kind: output, shape index: {}]
  %s4 = sld [smem:[#allocation0]]
  $region22: #{image_encoder_vit.29} parent=0
    _
  %s6 = ssub.s32 1, %s4
  %s7 = scalar_select 0, %s6, %s4
  $region1: #{image_encoder_vit.29} parent=0
    #allocation2 [shape = 'u8[16384]{0}', space=vmem, size = 0x4000, scoped, tag = 'output window, operand 0, single buffered']
    #allocation3 [shape = 's32[1]{0}', space=sflag, size = 0x4, scoped, tag = 'scoped memory for image_encoder_vit.29']
    %8 = vsyncpa [#allocation3], 0
    // Predicated region
    $region2: #{image_encoder_vit.29} parent=1 // pred_check
      _
    $region3: #{image_encoder_vit.29} parent=1 // pred_check_branch
      %10 = sbr.rel (0) target = $region5
    $region4: #{image_encoder_vit.29} parent=1 // pred_region
      _
    $region5: #{image_encoder_vit.29} parent=1 // pred_fallthru
      _
    // Predicated region
    $region6: #{image_encoder_vit.29} parent=1 // pred_check
      _
    $region7: #{image_encoder_vit.29} parent=1 // pred_check_branch
      %12 = sbr.rel (0) target = $region9
    $region8: #{image_encoder_vit.29} parent=1 // pred_region
      _
    $region9: #{image_encoder_vit.29} parent=1 // pred_fallthru
      _
    // Predicated region
    $region10: #{image_encoder_vit.29} parent=1 // pred_check
      _
    $region11: #{image_encoder_vit.29} parent=1 // pred_check_branch
      %14 = sbr.rel (0) target = $region13
    $region12: #{image_encoder_vit.29} parent=1 // pred_region
      _
    $region13: #{image_encoder_vit.29} parent=1 // pred_fallthru
      _
    %v15 = vld [vmem:[%s0] sm:$0xf]
    %v16 = vld [vmem:[%s0 + $0x4] sm:$0xf]
    %v17 = vld [vmem:[%s0 + $0x8] sm:$0xf]
    %v18 = vld [vmem:[%s0 + $0xc] sm:$0xf]
    %v19 = vunpack.c.l.bf16 %v15
    %v20 = vunpack.c.l.bf16 %v16
    %v21 = vunpack.c.l.bf16 %v17
    %v22 = vunpack.c.l.bf16 %v18
    %v23 = vld [vmem:[%s1] sm:$0x1]
    %v24 = vld [vmem:[%s2] sm:$0x1]
    %vm25 = vcmask 261120
    %v26 = vsel %vm25, %v19, 0.0
    %27 = vadd.xlane.f32.xlu0 %v26
    %v28 = vpop.xlane.xlu0 %27
    %v29 = vsel %vm25, %v20, 0.0
    %30 = vadd.xlane.f32.xlu0 %v29
    %v31 = vpop.xlane.xlu0 %30
    %v32 = vsel %vm25, %v21, 0.0
    %33 = vadd.xlane.f32.xlu0 %v32
    %v34 = vpop.xlane.xlu0 %33
    %v35 = vsel %vm25, %v22, 0.0
    %36 = vadd.xlane.f32.xlu0 %v35
    %v37 = vpop.xlane.xlu0 %36
    %v38 = vrcp.pop 32.0
    %v39 = vmul.f32 %v28, %v38
    %v40 = vmul.f32 %v31, %v38
    %v41 = vmul.f32 %v34, %v38
    %v42 = vmul.f32 %v37, %v38
    %v43 = vsub.f32 %v19, %v39
    %v44 = vsub.f32 %v20, %v40
    %v45 = vsub.f32 %v21, %v41
    %v46 = vsub.f32 %v22, %v42
    %v47 = vmul.f32 %v43, %v43
    %v48 = vmul.f32 %v44, %v44
    %v49 = vmul.f32 %v45, %v45
    %v50 = vmul.f32 %v46, %v46
    %v51 = vsel %vm25, %v47, 0.0
    %52 = vadd.xlane.f32.xlu0 %v51
    %v53 = vpop.xlane.xlu0 %52
    %v54 = vsel %vm25, %v48, 0.0
    %55 = vadd.xlane.f32.xlu0 %v54
    %v56 = vpop.xlane.xlu0 %55
    %v57 = vsel %vm25, %v49, 0.0
    %58 = vadd.xlane.f32.xlu0 %v57
    %v59 = vpop.xlane.xlu0 %58
    %v60 = vsel %vm25, %v50, 0.0
    %61 = vadd.xlane.f32.xlu0 %v60
    %v62 = vpop.xlane.xlu0 %61
    %v63 = vmul.f32 %v53, %v38
    %v64 = vmul.f32 %v56, %v38
    %v65 = vmul.f32 %v59, %v38
    %v66 = vmul.f32 %v62, %v38
    %v67 = vadd.f32 %v63, 1e-06
    %v68 = vadd.f32 %v64, 1e-06
    %v69 = vadd.f32 %v65, 1e-06
    %v70 = vadd.f32 %v66, 1e-06
    %v71 = vrsqrt.pop %v67
    %v72 = vrsqrt.pop %v68
    %v73 = vrsqrt.pop %v69
    %v74 = vrsqrt.pop %v70
    %v75 = vmul.f32 %v43, %v71
    %v76 = vmul.f32 %v44, %v72
    %v77 = vmul.f32 %v45, %v73
    %v78 = vmul.f32 %v46, %v74
    %v80 = vlaneseq
    %v81 = vshrl.u32 %v80, 7
    %v82 = vsub.s32 0, %v81
    %v83 = vrot.slane %v23, %v82
    %v85 = vmul.f32 %v75, %v83
    %v86 = vmul.f32 %v76, %v83
    %v87 = vmul.f32 %v77, %v83
    %v88 = vmul.f32 %v78, %v83
    %v90 = vlaneseq
    %v91 = vshrl.u32 %v90, 7
    %v92 = vsub.s32 0, %v91
    %v93 = vrot.slane %v24, %v92
    %v95 = vadd.f32 %v85, %v93
    %v96 = vadd.f32 %v86, %v93
    %v97 = vadd.f32 %v87, %v93
    %v98 = vadd.f32 %v88, %v93
    %99 = vst.msk [vmem:[#allocation2] sm:$0xff] %vm25, %v95
    %100 = vst.msk [vmem:[#allocation2 + $0x8] sm:$0xff] %vm25, %v96
    %101 = vst.msk [vmem:[#allocation2 + $0x10] sm:$0xff] %vm25, %v97
    %102 = vst.msk [vmem:[#allocation2 + $0x18] sm:$0xff] %vm25, %v98
    // Predicated region
    $region14: #{image_encoder_vit.29} parent=1 // pred_check
      _
    $region15: #{image_encoder_vit.29} parent=1 // pred_check_branch
      %104 = sbr.rel (0) target = $region17
    $region16: #{image_encoder_vit.29} parent=1 // pred_region
      %s106 = ssub.s32 512, 512
      %107 = vsyncadd [#allocation3], %s106
      %s108 = sshll.u32 [#allocation2], 4
      %s109 = int_to_ptr.vmem [resolvable:$true] %s108
      %114 = dma.vmem_to_hbm [thread:$0]  %s109, 512, %s3, [#allocation3], 128, 128, 8
    $region17: #{image_encoder_vit.29} parent=1 // pred_fallthru
      _
    // Predicated region
    $region18: #{image_encoder_vit.29} parent=1 // pred_check
      _
    $region19: #{image_encoder_vit.29} parent=1 // pred_check_branch
      %116 = sbr.rel (0) target = $region21
    $region20: #{image_encoder_vit.29} parent=1 // pred_region
      %117 = dma.done [#allocation3], 512
    $region21: #{image_encoder_vit.29} parent=1 // pred_fallthru
      _
    %118 = vsyncpa [#allocation3], 1

// kernel: image_encoder_vit.28
$region0: #{image_encoder_vit.28}
  #allocation0 [shape = 'u32[]', space=smem, size = 0x4, offset = 0x4, fixed_abs, tag = 'smem constant byte address 0x4 - core index']
  #allocation1 [shape = 'u32[144,128]{1,0:T(1,128)}', space=vmem, size = 0x12000, scoped, tag = 'internal scratch']
  %s0 = inlined_call_operand.vmem [shape: bf16[2,6,6,32], index: 0, kind: input, shape index: {}]
  %s1 = inlined_call_operand.vmem [shape: bf16[3,3,32,32], index: 1, kind: input, shape index: {}]
  %s2 = inlined_call_operand.vmem [shape: bf16[2,16,32], index: 2, kind: output, shape index: {}]
  %s3 = sld [smem:[#allocation0]]
  $region41: #{image_encoder_vit.28} parent=0
    _
  %s5 = ssub.s32 1, %s3
  %s6 = scalar_select 0, %s5, %s3
  loop: start=0, step=1, limit=4
  $region2: #{image_encoder_vit.28} parent=0 // loop_pre_header
    _
  $region3: #{image_encoder_vit.28} parent=0 // loop_header
    %s8 = sphi 0, %s12
    %p9 = scmp.ge.s32.totalorder %s8, 4
    %s18 = sphi 0, %s20
    %s21 = sphi 0, %s18
    %s22 = sphi 0, %s21
    %s38 = sphi 0, %s22
    %s42 = sphi 0, %s42
    %s44 = sphi 0, %s42
    %s45 = sphi 0, %s44
    %s59 = sphi 0, %s45
    %s65 = sphi 0, %s67
    %s68 = sphi 0, %s65
    %s69 = sphi 0, %s68
    %s85 = sphi 0, %s69
  $region4: #{image_encoder_vit.28} parent=0 // loop_header_branch
    %11 = sbr.rel (%p9) target = $region8
  $region5: #{image_encoder_vit.28} parent=0 // loop_body
    %s13 = ssub.s32 %s8, 1
    %s14 = ssub.s32 %s8, 2
    %s15 = sadd.s32 %s8, 1
    %s16 = ssub.s32 %s8, %s15
    %p17 = scmp.eq.s32.totalorder %s16, 0
    %s19 = sadd.s32 %s18, 1
    %s20 = scalar_select %p17, %s18, %s19
    %p23 = pneg %p17
    %p24 = scmp.eq.s32.totalorder %s8, 1
    %p25 = por %p23, %p24
    %p26 = scmp.ne.s32.totalorder %s18, %s21
    %p27 = scmp.eq.s32.totalorder %s8, 0
    %p28 = por %p26, %p27
    %p29 = scmp.ne.s32.totalorder %s18, %s21
    %p30 = scmp.eq.s32.totalorder %s13, 1
    %p31 = por %p29, %p30
    %p32 = scmp.ne.s32.totalorder %s21, %s22
    %p33 = scmp.eq.s32.totalorder %s13, 0
    %p34 = por %p32, %p33
    %p35 = scmp.ne.s32.totalorder %s21, %s22
    %p36 = scmp.eq.s32.totalorder %s14, 1
    %p37 = por %p35, %p36
    %p39 = scmp.ne.s32.totalorder %s22, %s38
    %p40 = scmp.eq.s32.totalorder %s14, 0
    %p41 = por %p39, %p40
    %s43 = sadd.s32 %s42, 1
    %p46 = scmp.eq.s32.totalorder %s8, 1
    %p47 = scmp.ne.s32.totalorder %s42, %s44
    %p48 = scmp.eq.s32.totalorder %s8, 0
    %p49 = por %p47, %p48
    %p50 = scmp.ne.s32.totalorder %s42, %s44
    %p51 = scmp.eq.s32.totalorder %s13, 1
    %p52 = por %p50, %p51
    %p53 = scmp.ne.s32.totalorder %s44, %s45
    %p54 = scmp.eq.s32.totalorder %s13, 0
    %p55 = por %p53, %p54
    %p56 = scmp.ne.s32.totalorder %s44, %s45
    %p57 = scmp.eq.s32.totalorder %s14, 1
    %p58 = por %p56, %p57
    %p60 = scmp.ne.s32.totalorder %s45, %s59
    %p61 = scmp.eq.s32.totalorder %s14, 0
    %p62 = por %p60, %p61
    %s63 = ssub.s32 %s8, %s15
    %p64 = scmp.eq.s32.totalorder %s63, 0
    %s66 = sadd.s32 %s65, 1
    %s67 = scalar_select %p64, %s65, %s66
    %p70 = pneg %p64
    %p71 = scmp.eq.s32.totalorder %s8, 1
    %p72 = por %p70, %p71
    %p73 = scmp.ne.s32.totalorder %s65, %s68
    %p74 = scmp.eq.s32.totalorder %s8, 0
    %p75 = por %p73, %p74
    %p76 = scmp.ne.s32.totalorder %s65, %s68
    %p77 = scmp.eq.s32.totalorder %s13, 1
    %p78 = por %p76, %p77
    %p79 = scmp.ne.s32.totalorder %s68, %s69
    %p80 = scmp.eq.s32.totalorder %s13, 0
    %p81 = por %p79, %p80
    %p82 = scmp.ne.s32.totalorder %s68, %s69
    %p83 = scmp.eq.s32.totalorder %s14, 1
    %p84 = por %p82, %p83
    %p86 = scmp.ne.s32.totalorder %s69, %s85
    %p87 = scmp.eq.s32.totalorder %s14, 0
    %p88 = por %p86, %p87
    %p89 = scmp.le.s32.totalorder 1, %s8
    %p90 = scmp.lt.s32.totalorder %s8, 3
    %p91 = pnand %p89, %p90
    %p92 = pneg %p91
    // Predicated region
    $region9: #{image_encoder_vit.28} parent=5 // pred_check
      _
    $region10: #{image_encoder_vit.28} parent=5 // pred_check_branch
      %94 = sbr.rel (%p91) target = $region12
    $region11: #{image_encoder_vit.28} parent=5 // pred_region
      %s95 = ssub.s32 %s8, 1
      // Predicated region
      $region13: #{image_encoder_vit.28} parent=11 // pred_check
        %p96 = pneg %p55
      $region14: #{image_encoder_vit.28} parent=11 // pred_check_branch
        %98 = sbr.rel (%p96) target = $region16
      $region15: #{image_encoder_vit.28} parent=11 // pred_region
        _
      $region16: #{image_encoder_vit.28} parent=11 // pred_fallthru
        _
    $region12: #{image_encoder_vit.28} parent=5 // pred_fallthru
      _
    %p99 = scmp.lt.s32.totalorder %s8, 2
    // Predicated region
    $region17: #{image_encoder_vit.28} parent=5 // pred_check
      %p100 = pneg %p99
    $region18: #{image_encoder_vit.28} parent=5 // pred_check_branch
      %102 = sbr.rel (%p100) target = $region20
    $region19: #{image_encoder_vit.28} parent=5 // pred_region
      // Predicated region
      $region21: #{image_encoder_vit.28} parent=19 // pred_check
        %p103 = pneg %p28
      $region22: #{image_encoder_vit.28} parent=19 // pred_check_branch
        %105 = sbr.rel (%p103) target = $region24
      $region23: #{image_encoder_vit.28} parent=19 // pred_region
        %p106 = scmp.lt.s32.totalorder %s8, 1
        %s107 = scalar_select %p106, %s8, 1
        %s108 = smul.addr %s107, 6
        %s109 = smul.addr %s108, 4
        %s110 = scalar_lea.vmem %s0, %s109
      $region24: #{image_encoder_vit.28} parent=19 // pred_fallthru
        _
    $region20: #{image_encoder_vit.28} parent=5 // pred_fallthru
      _
    %p111 = scmp.le.s32.totalorder 1, %s8
    %p112 = scmp.lt.s32.totalorder %s8, 3
    %p113 = pnand %p111, %p112
    %p114 = pneg %p113
    // Predicated region
    $region25: #{image_encoder_vit.28} parent=5 // pred_check
      _
    $region26: #{image_encoder_vit.28} parent=5 // pred_check_branch
      %116 = sbr.rel (%p113) target = $region28
    $region27: #{image_encoder_vit.28} parent=5 // pred_region
      %s117 = ssub.s32 %s8, 1
      %p118 = scmp.lt.s32.totalorder %s13, 1
      %s119 = scalar_select %p118, %s13, 1
      %s120 = smul.addr %s119, 6
      %s121 = smul.addr %s120, 4
      %s122 = scalar_lea.vmem %s0, %s121
      %p123 = pneg %p34
      %p124 = pneg %p31
      %p125 = pneg %p55
      %p126 = pneg %p52
      %p127 = pneg %p81
      %p128 = pneg %p78
      %p129 = scmp.lt.s32.totalorder %s13, 1
      %s130 = scalar_select %p129, %s13, 1
      %s131 = smul.addr %s130, 2
      %s132 = smul.addr %s131, 4
      %s133 = scalar_lea.vmem %s2, %s132
      %p134 = scmp.lt.s32.totalorder %s13, 1
      %s135 = scalar_select %p134, %s13, 1
      %s136 = smul.addr %s135, 6
      %s137 = smul.addr %s136, 4
      %s138 = scalar_lea.vmem %s0, %s137
      %p139 = scmp.lt.s32.totalorder %s13, 1
      %s140 = scalar_select %p139, %s13, 1
      %s141 = smul.addr %s140, 2
      %s142 = smul.addr %s141, 4
      %s143 = scalar_lea.vmem %s2, %s142
      %v145 = vld [vmem:[%s138] sm:$0x3]
      %v146 = vld [vmem:[%s138 + $0x4] sm:$0x3]
      %v147 = vld [vmem:[%s138 + $0x8] sm:$0x3]
      %v148 = vld [vmem:[%s138 + $0xc] sm:$0x3]
      %v149 = vld [vmem:[%s1] sm:$0xf]
      %v150 = vld [vmem:[%s1 + $0x4] sm:$0xf]
      %v151 = vld [vmem:[%s1 + $0x8] sm:$0xf]
      %v152 = vld [vmem:[%s1 + $0xc] sm:$0xf]
      %v153 = vld [vmem:[%s138] sm:$0x7]
      %v154 = vld [vmem:[%s138 + $0x4] sm:$0x7]
      %v155 = vld [vmem:[%s138 + $0x8] sm:$0x7]
      %v156 = vld [vmem:[%s138 + $0xc] sm:$0x7]
      %v162 = vunpack.c.l.s4 1983009808
      %v163 = vunpack.c.0.s8 %v162
      %v164 = vlaneseq
      %v165 = vshrl.u32 %v164, 7
      %v166 = vsub.s32 %v163, %v165
      %v167 = vrot.slane %v153, %v166
      %v168 = vcombine.high %v167, %v167
      %v170 = vunpack.c.l.s4 1983009808
      %v171 = vunpack.c.0.s8 %v170
      %v172 = vlaneseq
      %v173 = vshrl.u32 %v172, 7
      %v174 = vsub.s32 %v171, %v173
      %v175 = vrot.slane %v154, %v174
      %v176 = vcombine.high %v175, %v175
      %v178 = vunpack.c.l.s4 1983009808
      %v179 = vunpack.c.0.s8 %v178
      %v180 = vlaneseq
      %v181 = vshrl.u32 %v180, 7
      %v182 = vsub.s32 %v179, %v181
      %v183 = vrot.slane %v155, %v182
      %v184 = vcombine.high %v183, %v183
      %v186 = vunpack.c.l.s4 1983009808
      %v187 = vunpack.c.0.s8 %v186
      %v188 = vlaneseq
      %v189 = vshrl.u32 %v188, 7
      %v190 = vsub.s32 %v187, %v189
      %v191 = vrot.slane %v156, %v190
      %v192 = vcombine.high %v191, %v191
      %vm193 = vsmask.f32 1280
      %vm194 = vsmask.f32 3336
      %vm195 = vmor %vm193, %vm194
      %vm196 = vsmask.f32 5392
      %vm197 = vmor %vm195, %vm196
      %vm198 = vsmask.f32 7448
      %vm199 = vmor %vm197, %vm198
      %v201 = vshrl.u32 %v167, 16
      %v203 = vrot.slane %v201, 6
      %v204 = vshll.u32 %v167, 16
      %v206 = vrot.slane %v204, 7
      %v207 = vor.u32 %v203, %v206
      %v208 = vrot.slane %v207, 2
      %v210 = vshll.u32 %v168, 16
      %v212 = vrot.slane %v210, 7
      %v213 = vsel %vm199, %v208, %v212
      %v215 = vshrl.u32 %v175, 16
      %v217 = vrot.slane %v215, 6
      %v218 = vshll.u32 %v175, 16
      %v220 = vrot.slane %v218, 7
      %v221 = vor.u32 %v217, %v220
      %v222 = vrot.slane %v221, 2
      %v224 = vshll.u32 %v176, 16
      %v226 = vrot.slane %v224, 7
      %v227 = vsel %vm199, %v222, %v226
      %v229 = vshrl.u32 %v183, 16
      %v231 = vrot.slane %v229, 6
      %v232 = vshll.u32 %v183, 16
      %v234 = vrot.slane %v232, 7
      %v235 = vor.u32 %v231, %v234
      %v236 = vrot.slane %v235, 2
      %v238 = vshll.u32 %v184, 16
      %v240 = vrot.slane %v238, 7
      %v241 = vsel %vm199, %v236, %v240
      %v243 = vshrl.u32 %v191, 16
      %v245 = vrot.slane %v243, 6
      %v246 = vshll.u32 %v191, 16
      %v248 = vrot.slane %v246, 7
      %v249 = vor.u32 %v245, %v248
      %v250 = vrot.slane %v249, 2
      %v252 = vshll.u32 %v192, 16
      %v254 = vrot.slane %v252, 7
      %v255 = vsel %vm199, %v250, %v254
      %s256 = scalar_lea.vmem %s1, 16
      %v257 = vld [vmem:[%s256] sm:$0xf]
      %v258 = vld [vmem:[%s256 + $0x4] sm:$0xf]
      %v259 = vld [vmem:[%s256 + $0x8] sm:$0xf]
      %v260 = vld [vmem:[%s256 + $0xc] sm:$0xf]
      %v261 = vcombine.low %v213, %v227
      %v262 = vcombine.low %v241, %v255
      %v264 = vunpack.c.l.s4 1983009808
      %v265 = vunpack.c.0.s8 %v264
      %v266 = vlaneseq
      %v267 = vshrl.u32 %v266, 7
      %v268 = vsub.s32 %v265, %v267
      %v269 = vrot.slane %v261, %v268
      %v271 = vunpack.c.l.s4 1983009808
      %v272 = vunpack.c.0.s8 %v271
      %v273 = vlaneseq
      %v274 = vshrl.u32 %v273, 7
      %v275 = vsub.s32 %v272, %v274
      %v276 = vrot.slane %v262, %v275
      %v277 = vcombine.low %v269, %v276
      %v282 = vunpack.c.l.b16 %v257
      %v283 = vunpack.c.l.b16 %v258
      %v284 = vunpack.c.l.b16 %v259
      %v285 = vunpack.c.l.b16 %v260
      %v286 = vpack.c.b16 %v283, %v282
      %v287 = vpack.c.b16 %v285, %v284
      %vm290 = vcmask 261120
      %v292 = vsel %vm290, %v277, 0
      %294 = vmatprep.subr.bf16.mxu0 0
      %295 = vmatpush1.bf16.msra.mxu0 %v286
      %296 = vmatprep.subr.bf16.mxu0 0
      %297 = vmatpush1.bf16.msra.mxu0 %v287
      %298 = vmatprep.subr.bf16.mxu0 0
      %299 = vmatpush1.bf16.msra.mxu0 0
      %300 = vmatprep.subr.bf16.mxu0 0
      %301 = vmatpush1.bf16.msra.mxu0 0
      %302 = vmatprep.subr.bf16.mxu0 0
      %303 = vmatpush1.bf16.msra.mxu0 0
      %304 = vmatprep.subr.bf16.mxu0 0
      %305 = vmatpush1.bf16.msra.mxu0 0
      %306 = vmatprep.subr.bf16.mxu0 0
      %307 = vmatpush1.bf16.msra.mxu0 0
      %308 = vmatprep.subr.bf16.mxu0 0
      %309 = vmatpush1.bf16.msra.mxu0 0
      %310 = vmatprep.subr.bf16.mxu0 0
      %311 = vmatpush1.bf16.msra.mxu0 0
      %312 = vmatprep.subr.bf16.mxu0 0
      %313 = vmatpush1.bf16.msra.mxu0 0
      %314 = vmatprep.subr.bf16.mxu0 0
      %315 = vmatpush1.bf16.msra.mxu0 0
      %316 = vmatprep.subr.bf16.mxu0 0
      %317 = vmatpush1.bf16.msra.mxu0 0
      %318 = vmatprep.subr.bf16.mxu0 0
      %319 = vmatpush1.bf16.msra.mxu0 0
      %320 = vmatprep.subr.bf16.mxu0 0
      %321 = vmatpush1.bf16.msra.mxu0 0
      %322 = vmatprep.subr.bf16.mxu0 0
      %323 = vmatpush1.bf16.msra.mxu0 0
      %324 = vmatprep.subr.bf16.mxu0 0
      %325 = vmatpush1.bf16.msra.mxu0 0
      %326 = vmatprep.mubr.bf16.mxu0 0
      %327 = vmatmul.mubr.bf16.gmra.mrb[0].mxu0 %v292
      %v328 = vpop.f32.mrb[0].mxu0
      %v329 = vadd.f32 0.0, %v328
      %v330 = vpop.f32.mrb[0].mxu0
      %v331 = vpop.f32.mrb[0].mxu0
      %v332 = vadd.f32 0.0, %v331
      %v333 = vpop.f32.mrb[0].mxu0
      %334 = vdwg.mxu0
      %v339 = vcombine.low %v145, %v146
      %v340 = vcombine.low %v147, %v148
      %v342 = vunpack.c.l.s4 1983009808
      %v343 = vunpack.c.0.s8 %v342
      %v344 = vlaneseq
      %v345 = vshrl.u32 %v344, 7
      %v346 = vsub.s32 %v343, %v345
      %v347 = vrot.slane %v339, %v346
      %v349 = vunpack.c.l.s4 1983009808
      %v350 = vunpack.c.0.s8 %v349
      %v351 = vlaneseq
      %v352 = vshrl.u32 %v351, 7
      %v353 = vsub.s32 %v350, %v352
      %v354 = vrot.slane %v340, %v353
      %v355 = vcombine.low %v347, %v354
      %v360 = vunpack.c.l.b16 %v149
      %v361 = vunpack.c.l.b16 %v150
      %v362 = vunpack.c.l.b16 %v151
      %v363 = vunpack.c.l.b16 %v152
      %v364 = vpack.c.b16 %v361, %v360
      %v365 = vpack.c.b16 %v363, %v362
      %v369 = vsel %vm290, %v355, 0
      %371 = vmatprep.subr.bf16.mxu0 0
      %372 = vmatpush1.bf16.msra.mxu0 %v364
      %373 = vmatprep.subr.bf16.mxu0 0
      %374 = vmatpush1.bf16.msra.mxu0 %v365
      %375 = vmatprep.subr.bf16.mxu0 0
      %376 = vmatpush1.bf16.msra.mxu0 0
      %377 = vmatprep.subr.bf16.mxu0 0
      %378 = vmatpush1.bf16.msra.mxu0 0
      %379 = vmatprep.subr.bf16.mxu0 0
      %380 = vmatpush1.bf16.msra.mxu0 0
      %381 = vmatprep.subr.bf16.mxu0 0
      %382 = vmatpush1.bf16.msra.mxu0 0
      %383 = vmatprep.subr.bf16.mxu0 0
      %384 = vmatpush1.bf16.msra.mxu0 0
      %385 = vmatprep.subr.bf16.mxu0 0
      %386 = vmatpush1.bf16.msra.mxu0 0
      %387 = vmatprep.subr.bf16.mxu0 0
      %388 = vmatpush1.bf16.msra.mxu0 0
      %389 = vmatprep.subr.bf16.mxu0 0
      %390 = vmatpush1.bf16.msra.mxu0 0
      %391 = vmatprep.subr.bf16.mxu0 0
      %392 = vmatpush1.bf16.msra.mxu0 0
      %393 = vmatprep.subr.bf16.mxu0 0
      %394 = vmatpush1.bf16.msra.mxu0 0
      %395 = vmatprep.subr.bf16.mxu0 0
      %396 = vmatpush1.bf16.msra.mxu0 0
      %397 = vmatprep.subr.bf16.mxu0 0
      %398 = vmatpush1.bf16.msra.mxu0 0
      %399 = vmatprep.subr.bf16.mxu0 0
      %400 = vmatpush1.bf16.msra.mxu0 0
      %401 = vmatprep.subr.bf16.mxu0 0
      %402 = vmatpush1.bf16.msra.mxu0 0
      %403 = vmatprep.mubr.bf16.mxu0 0
      %404 = vmatmul.mubr.bf16.gmra.mrb[0].mxu0 %v369
      %v405 = vpop.f32.mrb[0].mxu0
      %v406 = vadd.f32 %v329, %v405
      %v407 = vpop.f32.mrb[0].mxu0
      %v408 = vpop.f32.mrb[0].mxu0
      %v409 = vadd.f32 %v332, %v408
      %v410 = vpop.f32.mrb[0].mxu0
      %411 = vdwg.mxu0
      %v412 = vld [vmem:[%s138] sm:$0x6]
      %v413 = vld [vmem:[%s138 + $0x4] sm:$0x6]
      %v414 = vld [vmem:[%s138 + $0x8] sm:$0x6]
      %v415 = vld [vmem:[%s138 + $0xc] sm:$0x6]
      %v421 = vunpack.c.l.s4 1983009808
      %v422 = vunpack.c.0.s8 %v421
      %v423 = vlaneseq
      %v424 = vshrl.u32 %v423, 7
      %v425 = vsub.s32 %v422, %v424
      %v426 = vrot.slane %v412, %v425
      %v427 = vcombine.high %v426, %v426
      %v429 = vunpack.c.l.s4 1983009808
      %v430 = vunpack.c.0.s8 %v429
      %v431 = vlaneseq
      %v432 = vshrl.u32 %v431, 7
      %v433 = vsub.s32 %v430, %v432
      %v434 = vrot.slane %v413, %v433
      %v435 = vcombine.high %v434, %v434
      %v437 = vunpack.c.l.s4 1983009808
      %v438 = vunpack.c.0.s8 %v437
      %v439 = vlaneseq
      %v440 = vshrl.u32 %v439, 7
      %v441 = vsub.s32 %v438, %v440
      %v442 = vrot.slane %v414, %v441
      %v443 = vcombine.high %v442, %v442
      %v445 = vunpack.c.l.s4 1983009808
      %v446 = vunpack.c.0.s8 %v445
      %v447 = vlaneseq
      %v448 = vshrl.u32 %v447, 7
      %v449 = vsub.s32 %v446, %v448
      %v450 = vrot.slane %v415, %v449
      %v451 = vcombine.high %v450, %v450
      %vm452 = vcmask 1040384
      %vm453 = vcmask 1042434
      %vm454 = vmor %vm452, %vm453
      %vm455 = vcmask 1044484
      %vm456 = vmor %vm454, %vm455
      %vm457 = vcmask 1046534
      %vm458 = vmor %vm456, %vm457
      %v459 = vrot.slane %v426, 7
      %v460 = vrot.slane %v459, 2
      %v461 = vrot.slane %v427, 7
      %v462 = vsel %vm458, %v460, %v461
      %v463 = vrot.slane %v434, 7
      %v464 = vrot.slane %v463, 2
      %v465 = vrot.slane %v435, 7
      %v466 = vsel %vm458, %v464, %v465
      %v467 = vrot.slane %v442, 7
      %v468 = vrot.slane %v467, 2
      %v469 = vrot.slane %v443, 7
      %v470 = vsel %vm458, %v468, %v469
      %v471 = vrot.slane %v450, 7
      %v472 = vrot.slane %v471, 2
      %v473 = vrot.slane %v451, 7
      %v474 = vsel %vm458, %v472, %v473
      %s475 = scalar_lea.vmem %s1, 32
      %v476 = vld [vmem:[%s475] sm:$0xf]
      %v477 = vld [vmem:[%s475 + $0x4] sm:$0xf]
      %v478 = vld [vmem:[%s475 + $0x8] sm:$0xf]
      %v479 = vld [vmem:[%s475 + $0xc] sm:$0xf]
      %v480 = vcombine.low %v462, %v466
      %v481 = vcombine.low %v470, %v474
      %v483 = vunpack.c.l.s4 1983009808
      %v484 = vunpack.c.0.s8 %v483
      %v485 = vlaneseq
      %v486 = vshrl.u32 %v485, 7
      %v487 = vsub.s32 %v484, %v486
      %v488 = vrot.slane %v480, %v487
      %v490 = vunpack.c.l.s4 1983009808
      %v491 = vunpack.c.0.s8 %v490
      %v492 = vlaneseq
      %v493 = vshrl.u32 %v492, 7
      %v494 = vsub.s32 %v491, %v493
      %v495 = vrot.slane %v481, %v494
      %v496 = vcombine.low %v488, %v495
      %v501 = vunpack.c.l.b16 %v476
      %v502 = vunpack.c.l.b16 %v477
      %v503 = vunpack.c.l.b16 %v478
      %v504 = vunpack.c.l.b16 %v479
      %v505 = vpack.c.b16 %v502, %v501
      %v506 = vpack.c.b16 %v504, %v503
      %v510 = vsel %vm290, %v496, 0
      %512 = vmatprep.subr.bf16.mxu0 0
      %513 = vmatpush1.bf16.msra.mxu0 %v505
      %514 = vmatprep.subr.bf16.mxu0 0
      %515 = vmatpush1.bf16.msra.mxu0 %v506
      %516 = vmatprep.subr.bf16.mxu0 0
      %517 = vmatpush1.bf16.msra.mxu0 0
      %518 = vmatprep.subr.bf16.mxu0 0
      %519 = vmatpush1.bf16.msra.mxu0 0
      %520 = vmatprep.subr.bf16.mxu0 0
      %521 = vmatpush1.bf16.msra.mxu0 0
      %522 = vmatprep.subr.bf16.mxu0 0
      %523 = vmatpush1.bf16.msra.mxu0 0
      %524 = vmatprep.subr.bf16.mxu0 0
      %525 = vmatpush1.bf16.msra.mxu0 0
      %526 = vmatprep.subr.bf16.mxu0 0
      %527 = vmatpush1.bf16.msra.mxu0 0
      %528 = vmatprep.subr.bf16.mxu0 0
      %529 = vmatpush1.bf16.msra.mxu0 0
      %530 = vmatprep.subr.bf16.mxu0 0
      %531 = vmatpush1.bf16.msra.mxu0 0
      %532 = vmatprep.subr.bf16.mxu0 0
      %533 = vmatpush1.bf16.msra.mxu0 0
      %534 = vmatprep.subr.bf16.mxu0 0
      %535 = vmatpush1.bf16.msra.mxu0 0
      %536 = vmatprep.subr.bf16.mxu0 0
      %537 = vmatpush1.bf16.msra.mxu0 0
      %538 = vmatprep.subr.bf16.mxu0 0
      %539 = vmatpush1.bf16.msra.mxu0 0
      %540 = vmatprep.subr.bf16.mxu0 0
      %541 = vmatpush1.bf16.msra.mxu0 0
      %542 = vmatprep.subr.bf16.mxu0 0
      %543 = vmatpush1.bf16.msra.mxu0 0
      %544 = vmatprep.mubr.bf16.mxu0 0
      %545 = vmatmul.mubr.bf16.gmra.mrb[0].mxu0 %v510
      %v546 = vpop.f32.mrb[0].mxu0
      %v547 = vadd.f32 0.0, %v546
      %v548 = vpop.f32.mrb[0].mxu0
      %v549 = vpop.f32.mrb[0].mxu0
      %v550 = vadd.f32 0.0, %v549
      %v551 = vpop.f32.mrb[0].mxu0
      %552 = vdwg.mxu0
      %v553 = vadd.f32 %v406, %v547
      %v554 = vadd.f32 %v409, %v550
      %s555 = scalar_lea.vmem %s138, 4
      %v556 = vld [vmem:[%s555] sm:$0x3]
      %v557 = vld [vmem:[%s555 + $0x4] sm:$0x3]
      %v558 = vld [vmem:[%s555 + $0x8] sm:$0x3]
      %v559 = vld [vmem:[%s555 + $0xc] sm:$0x3]
      %s560 = scalar_lea.vmem %s1, 48
      %v561 = vld [vmem:[%s560] sm:$0xf]
      %v562 = vld [vmem:[%s560 + $0x4] sm:$0xf]
      %v563 = vld [vmem:[%s560 + $0x8] sm:$0xf]
      %v564 = vld [vmem:[%s560 + $0xc] sm:$0xf]
      %v569 = vcombine.low %v556, %v557
      %v570 = vcombine.low %v558, %v559
      %v572 = vunpack.c.l.s4 1983009808
      %v573 = vunpack.c.0.s8 %v572
      %v574 = vlaneseq
      %v575 = vshrl.u32 %v574, 7
      %v576 = vsub.s32 %v573, %v575
      %v577 = vrot.slane %v569, %v576
      %v579 = vunpack.c.l.s4 1983009808
      %v580 = vunpack.c.0.s8 %v579
      %v581 = vlaneseq
      %v582 = vshrl.u32 %v581, 7
      %v583 = vsub.s32 %v580, %v582
      %v584 = vrot.slane %v570, %v583
      %v585 = vcombine.low %v577, %v584
      %v590 = vunpack.c.l.b16 %v561
      %v591 = vunpack.c.l.b16 %v562
      %v592 = vunpack.c.l.b16 %v563
      %v593 = vunpack.c.l.b16 %v564
      %v594 = vpack.c.b16 %v591, %v590
      %v595 = vpack.c.b16 %v593, %v592
      %v599 = vsel %vm290, %v585, 0
      %601 = vmatprep.subr.bf16.mxu0 0
      %602 = vmatpush1.bf16.msra.mxu0 %v594
      %603 = vmatprep.subr.bf16.mxu0 0
      %604 = vmatpush1.bf16.msra.mxu0 %v595
      %605 = vmatprep.subr.bf16.mxu0 0
      %606 = vmatpush1.bf16.msra.mxu0 0
      %607 = vmatprep.subr.bf16.mxu0 0
      %608 = vmatpush1.bf16.msra.mxu0 0
      %609 = vmatprep.subr.bf16.mxu0 0
      %610 = vmatpush1.bf16.msra.mxu0 0
      %611 = vmatprep.subr.bf16.mxu0 0
      %612 = vmatpush1.bf16.msra.mxu0 0
      %613 = vmatprep.subr.bf16.mxu0 0
      %614 = vmatpush1.bf16.msra.mxu0 0
      %615 = vmatprep.subr.bf16.mxu0 0
      %616 = vmatpush1.bf16.msra.mxu0 0
      %617 = vmatprep.subr.bf16.mxu0 0
      %618 = vmatpush1.bf16.msra.mxu0 0
      %619 = vmatprep.subr.bf16.mxu0 0
      %620 = vmatpush1.bf16.msra.mxu0 0
      %621 = vmatprep.subr.bf16.mxu0 0
      %622 = vmatpush1.bf16.msra.mxu0 0
      %623 = vmatprep.subr.bf16.mxu0 0
      %624 = vmatpush1.bf16.msra.mxu0 0
      %625 = vmatprep.subr.bf16.mxu0 0
      %626 = vmatpush1.bf16.msra.mxu0 0
      %627 = vmatprep.subr.bf16.mxu0 0
      %628 = vmatpush1.bf16.msra.mxu0 0
      %629 = vmatprep.subr.bf16.mxu0 0
      %630 = vmatpush1.bf16.msra.mxu0 0
      %631 = vmatprep.subr.bf16.mxu0 0
      %632 = vmatpush1.bf16.msra.mxu0 0
      %633 = vmatprep.mubr.bf16.mxu0 0
      %634 = vmatmul.mubr.bf16.gmra.mrb[0].mxu0 %v599
      %v635 = vpop.f32.mrb[0].mxu0
      %v636 = vadd.f32 0.0, %v635
      %v637 = vpop.f32.mrb[0].mxu0
      %v638 = vpop.f32.mrb[0].mxu0
      %v639 = vadd.f32 0.0, %v638
      %v640 = vpop.f32.mrb[0].mxu0
      %641 = vdwg.mxu0
      %v642 = vadd.f32 %v553, %v636
      %v643 = vadd.f32 %v554, %v639
      %v644 = vld [vmem:[%s555] sm:$0x7]
      %v645 = vld [vmem:[%s555 + $0x4] sm:$0x7]
      %v646 = vld [vmem:[%s555 + $0x8] sm:$0x7]
      %v647 = vld [vmem:[%s555 + $0xc] sm:$0x7]
      %v653 = vunpack.c.l.s4 1983009808
      %v654 = vunpack.c.0.s8 %v653
      %v655 = vlaneseq
      %v656 = vshrl.u32 %v655, 7
      %v657 = vsub.s32 %v654, %v656
      %v658 = vrot.slane %v644, %v657
      %v659 = vcombine.high %v658, %v658
      %v661 = vunpack.c.l.s4 1983009808
      %v662 = vunpack.c.0.s8 %v661
      %v663 = vlaneseq
      %v664 = vshrl.u32 %v663, 7
      %v665 = vsub.s32 %v662, %v664
      %v666 = vrot.slane %v645, %v665
      %v667 = vcombine.high %v666, %v666
      %v669 = vunpack.c.l.s4 1983009808
      %v670 = vunpack.c.0.s8 %v669
      %v671 = vlaneseq
      %v672 = vshrl.u32 %v671, 7
      %v673 = vsub.s32 %v670, %v672
      %v674 = vrot.slane %v646, %v673
      %v675 = vcombine.high %v674, %v674
      %v677 = vunpack.c.l.s4 1983009808
      %v678 = vunpack.c.0.s8 %v677
      %v679 = vlaneseq
      %v680 = vshrl.u32 %v679, 7
      %v681 = vsub.s32 %v678, %v680
      %v682 = vrot.slane %v647, %v681
      %v683 = vcombine.high %v682, %v682
      %v685 = vshrl.u32 %v658, 16
      %v687 = vrot.slane %v685, 6
      %v688 = vshll.u32 %v658, 16
      %v690 = vrot.slane %v688, 7
      %v691 = vor.u32 %v687, %v690
      %v692 = vrot.slane %v691, 2
      %v694 = vshll.u32 %v659, 16
      %v696 = vrot.slane %v694, 7
      %v697 = vsel %vm199, %v692, %v696
      %v699 = vshrl.u32 %v666, 16
      %v701 = vrot.slane %v699, 6
      %v702 = vshll.u32 %v666, 16
      %v704 = vrot.slane %v702, 7
      %v705 = vor.u32 %v701, %v704
      %v706 = vrot.slane %v705, 2
      %v708 = vshll.u32 %v667, 16
      %v710 = vrot.slane %v708, 7
      %v711 = vsel %vm199, %v706, %v710
      %v713 = vshrl.u32 %v674, 16
      %v715 = vrot.slane %v713, 6
      %v716 = vshll.u32 %v674, 16
      %v718 = vrot.slane %v716, 7
      %v719 = vor.u32 %v715, %v718
      %v720 = vrot.slane %v719, 2
      %v722 = vshll.u32 %v675, 16
      %v724 = vrot.slane %v722, 7
      %v725 = vsel %vm199, %v720, %v724
      %v727 = vshrl.u32 %v682, 16
      %v729 = vrot.slane %v727, 6
      %v730 = vshll.u32 %v682, 16
      %v732 = vrot.slane %v730, 7
      %v733 = vor.u32 %v729, %v732
      %v734 = vrot.slane %v733, 2
      %v736 = vshll.u32 %v683, 16
      %v738 = vrot.slane %v736, 7
      %v739 = vsel %vm199, %v734, %v738
      %s740 = scalar_lea.vmem %s1, 64
      %v741 = vld [vmem:[%s740] sm:$0xf]
      %v742 = vld [vmem:[%s740 + $0x4] sm:$0xf]
      %v743 = vld [vmem:[%s740 + $0x8] sm:$0xf]
      %v744 = vld [vmem:[%s740 + $0xc] sm:$0xf]
      %v745 = vcombine.low %v697, %v711
      %v746 = vcombine.low %v725, %v739
      %v748 = vunpack.c.l.s4 1983009808
      %v749 = vunpack.c.0.s8 %v748
      %v750 = vlaneseq
      %v751 = vshrl.u32 %v750, 7
      %v752 = vsub.s32 %v749, %v751
      %v753 = vrot.slane %v745, %v752
      %v755 = vunpack.c.l.s4 1983009808
      %v756 = vunpack.c.0.s8 %v755
      %v757 = vlaneseq
      %v758 = vshrl.u32 %v757, 7
      %v759 = vsub.s32 %v756, %v758
      %v760 = vrot.slane %v746, %v759
      %v761 = vcombine.low %v753, %v760
      %v766 = vunpack.c.l.b16 %v741
      %v767 = vunpack.c.l.b16 %v742
      %v768 = vunpack.c.l.b16 %v743
      %v769 = vunpack.c.l.b16 %v744
      %v770 = vpack.c.b16 %v767, %v766
      %v771 = vpack.c.b16 %v769, %v768
      %v775 = vsel %vm290, %v761, 0
      %777 = vmatprep.subr.bf16.mxu0 0
      %778 = vmatpush1.bf16.msra.mxu0 %v770
      %779 = vmatprep.subr.bf16.mxu0 0
      %780 = vmatpush1.bf16.msra.mxu0 %v771
      %781 = vmatprep.subr.bf16.mxu0 0
      %782 = vmatpush1.bf16.msra.mxu0 0
      %783 = vmatprep.subr.bf16.mxu0 0
      %784 = vmatpush1.bf16.msra.mxu0 0
      %785 = vmatprep.subr.bf16.mxu0 0
      %786 = vmatpush1.bf16.msra.mxu0 0
      %787 = vmatprep.subr.bf16.mxu0 0
      %788 = vmatpush1.bf16.msra.mxu0 0
      %789 = vmatprep.subr.bf16.mxu0 0
      %790 = vmatpush1.bf16.msra.mxu0 0
      %791 = vmatprep.subr.bf16.mxu0 0
      %792 = vmatpush1.bf16.msra.mxu0 0
      %793 = vmatprep.subr.bf16.mxu0 0
      %794 = vmatpush1.bf16.msra.mxu0 0
      %795 = vmatprep.subr.bf16.mxu0 0
      %796 = vmatpush1.bf16.msra.mxu0 0
      %797 = vmatprep.subr.bf16.mxu0 0
      %798 = vmatpush1.bf16.msra.mxu0 0
      %799 = vmatprep.subr.bf16.mxu0 0
      %800 = vmatpush1.bf16.msra.mxu0 0
      %801 = vmatprep.subr.bf16.mxu0 0
      %802 = vmatpush1.bf16.msra.mxu0 0
      %803 = vmatprep.subr.bf16.mxu0 0
      %804 = vmatpush1.bf16.msra.mxu0 0
      %805 = vmatprep.subr.bf16.mxu0 0
      %806 = vmatpush1.bf16.msra.mxu0 0
      %807 = vmatprep.subr.bf16.mxu0 0
      %808 = vmatpush1.bf16.msra.mxu0 0
      %809 = vmatprep.mubr.bf16.mxu0 0
      %810 = vmatmul.mubr.bf16.gmra.mrb[0].mxu0 %v775
      %v811 = vpop.f32.mrb[0].mxu0
      %v812 = vadd.f32 0.0, %v811
      %v813 = vpop.f32.mrb[0].mxu0
      %v814 = vpop.f32.mrb[0].mxu0
      %v815 = vadd.f32 0.0, %v814
      %v816 = vpop.f32.mrb[0].mxu0
      %817 = vdwg.mxu0
      %v818 = vadd.f32 %v642, %v812
      %v819 = vadd.f32 %v643, %v815
      %v820 = vld [vmem:[%s555] sm:$0x6]
      %v821 = vld [vmem:[%s555 + $0x4] sm:$0x6]
      %v822 = vld [vmem:[%s555 + $0x8] sm:$0x6]
      %v823 = vld [vmem:[%s555 + $0xc] sm:$0x6]
      %v829 = vunpack.c.l.s4 1983009808
      %v830 = vunpack.c.0.s8 %v829
      %v831 = vlaneseq
      %v832 = vshrl.u32 %v831, 7
      %v833 = vsub.s32 %v830, %v832
      %v834 = vrot.slane %v820, %v833
      %v835 = vcombine.high %v834, %v834
      %v837 = vunpack.c.l.s4 1983009808
      %v838 = vunpack.c.0.s8 %v837
      %v839 = vlaneseq
      %v840 = vshrl.u32 %v839, 7
      %v841 = vsub.s32 %v838, %v840
      %v842 = vrot.slane %v821, %v841
      %v843 = vcombine.high %v842, %v842
      %v845 = vunpack.c.l.s4 1983009808
      %v846 = vunpack.c.0.s8 %v845
      %v847 = vlaneseq
      %v848 = vshrl.u32 %v847, 7
      %v849 = vsub.s32 %v846, %v848
      %v850 = vrot.slane %v822, %v849
      %v851 = vcombine.high %v850, %v850
      %v853 = vunpack.c.l.s4 1983009808
      %v854 = vunpack.c.0.s8 %v853
      %v855 = vlaneseq
      %v856 = vshrl.u32 %v855, 7
      %v857 = vsub.s32 %v854, %v856
      %v858 = vrot.slane %v823, %v857
      %v859 = vcombine.high %v858, %v858
      %v860 = vrot.slane %v834, 7
      %v861 = vrot.slane %v860, 2
      %v862 = vrot.slane %v835, 7
      %v863 = vsel %vm458, %v861, %v862
      %v864 = vrot.slane %v842, 7
      %v865 = vrot.slane %v864, 2
      %v866 = vrot.slane %v843, 7
      %v867 = vsel %vm458, %v865, %v866
      %v868 = vrot.slane %v850, 7
      %v869 = vrot.slane %v868, 2
      %v870 = vrot.slane %v851, 7
      %v871 = vsel %vm458, %v869, %v870
      %v872 = vrot.slane %v858, 7
      %v873 = vrot.slane %v872, 2
      %v874 = vrot.slane %v859, 7
      %v875 = vsel %vm458, %v873, %v874
      %s876 = scalar_lea.vmem %s1, 80
      %v877 = vld [vmem:[%s876] sm:$0xf]
      %v878 = vld [vmem:[%s876 + $0x4] sm:$0xf]
      %v879 = vld [vmem:[%s876 + $0x8] sm:$0xf]
      %v880 = vld [vmem:[%s876 + $0xc] sm:$0xf]
      %v881 = vcombine.low %v863, %v867
      %v882 = vcombine.low %v871, %v875
      %v884 = vunpack.c.l.s4 1983009808
      %v885 = vunpack.c.0.s8 %v884
      %v886 = vlaneseq
      %v887 = vshrl.u32 %v886, 7
      %v888 = vsub.s32 %v885, %v887
      %v889 = vrot.slane %v881, %v888
      %v891 = vunpack.c.l.s4 1983009808
      %v892 = vunpack.c.0.s8 %v891
      %v893 = vlaneseq
      %v894 = vshrl.u32 %v893, 7
      %v895 = vsub.s32 %v892, %v894
      %v896 = vrot.slane %v882, %v895
      %v897 = vcombine.low %v889, %v896
      %v902 = vunpack.c.l.b16 %v877
      %v903 = vunpack.c.l.b16 %v878
      %v904 = vunpack.c.l.b16 %v879
      %v905 = vunpack.c.l.b16 %v880
      %v906 = vpack.c.b16 %v903, %v902
      %v907 = vpack.c.b16 %v905, %v904
      %v911 = vsel %vm290, %v897, 0
      %913 = vmatprep.subr.bf16.mxu0 0
      %914 = vmatpush1.bf16.msra.mxu0 %v906
      %915 = vmatprep.subr.bf16.mxu0 0
      %916 = vmatpush1.bf16.msra.mxu0 %v907
      %917 = vmatprep.subr.bf16.mxu0 0
      %918 = vmatpush1.bf16.msra.mxu0 0
      %919 = vmatprep.subr.bf16.mxu0 0
      %920 = vmatpush1.bf16.msra.mxu0 0
      %921 = vmatprep.subr.bf16.mxu0 0
      %922 = vmatpush1.bf16.msra.mxu0 0
      %923 = vmatprep.subr.bf16.mxu0 0
      %924 = vmatpush1.bf16.msra.mxu0 0
      %925 = vmatprep.subr.bf16.mxu0 0
      %926 = vmatpush1.bf16.msra.mxu0 0
      %927 = vmatprep.subr.bf16.mxu0 0
      %928 = vmatpush1.bf16.msra.mxu0 0
      %929 = vmatprep.subr.bf16.mxu0 0
      %930 = vmatpush1.bf16.msra.mxu0 0
      %931 = vmatprep.subr.bf16.mxu0 0
      %932 = vmatpush1.bf16.msra.mxu0 0
      %933 = vmatprep.subr.bf16.mxu0 0
      %934 = vmatpush1.bf16.msra.mxu0 0
      %935 = vmatprep.subr.bf16.mxu0 0
      %936 = vmatpush1.bf16.msra.mxu0 0
      %937 = vmatprep.subr.bf16.mxu0 0
      %938 = vmatpush1.bf16.msra.mxu0 0
      %939 = vmatprep.subr.bf16.mxu0 0
      %940 = vmatpush1.bf16.msra.mxu0 0
      %941 = vmatprep.subr.bf16.mxu0 0
      %942 = vmatpush1.bf16.msra.mxu0 0
      %943 = vmatprep.subr.bf16.mxu0 0
      %944 = vmatpush1.bf16.msra.mxu0 0
      %945 = vmatprep.mubr.bf16.mxu0 0
      %946 = vmatmul.mubr.bf16.gmra.mrb[0].mxu0 %v911
      %v947 = vpop.f32.mrb[0].mxu0
      %v948 = vadd.f32 0.0, %v947
      %v949 = vpop.f32.mrb[0].mxu0
      %v950 = vpop.f32.mrb[0].mxu0
      %v951 = vadd.f32 0.0, %v950
      %v952 = vpop.f32.mrb[0].mxu0
      %953 = vdwg.mxu0
      %v954 = vadd.f32 %v818, %v948
      %v955 = vadd.f32 %v819, %v951
      %s956 = scalar_lea.vmem %s138, 8
      %v957 = vld [vmem:[%s956] sm:$0x3]
      %v958 = vld [vmem:[%s956 + $0x4] sm:$0x3]
      %v959 = vld [vmem:[%s956 + $0x8] sm:$0x3]
      %v960 = vld [vmem:[%s956 + $0xc] sm:$0x3]
      %s961 = scalar_lea.vmem %s1, 96
      %v962 = vld [vmem:[%s961] sm:$0xf]
      %v963 = vld [vmem:[%s961 + $0x4] sm:$0xf]
      %v964 = vld [vmem:[%s961 + $0x8] sm:$0xf]
      %v965 = vld [vmem:[%s961 + $0xc] sm:$0xf]
      %v970 = vcombine.low %v957, %v958
      %v971 = vcombine.low %v959, %v960
      %v973 = vunpack.c.l.s4 1983009808
      %v974 = vunpack.c.0.s8 %v973
      %v975 = vlaneseq
      %v976 = vshrl.u32 %v975, 7
      %v977 = vsub.s32 %v974, %v976
      %v978 = vrot.slane %v970, %v977
      %v980 = vunpack.c.l.s4 1983009808
      %v981 = vunpack.c.0.s8 %v980
      %v982 = vlaneseq
      %v983 = vshrl.u32 %v982, 7
      %v984 = vsub.s32 %v981, %v983
      %v985 = vrot.slane %v971, %v984
      %v986 = vcombine.low %v978, %v985
      %v991 = vunpack.c.l.b16 %v962
      %v992 = vunpack.c.l.b16 %v963
      %v993 = vunpack.c.l.b16 %v964
      %v994 = vunpack.c.l.b16 %v965
      %v995 = vpack.c.b16 %v992, %v991
      %v996 = vpack.c.b16 %v994, %v993
      %v1000 = vsel %vm290, %v986, 0
      %1002 = vmatprep.subr.bf16.mxu0 0
      %1003 = vmatpush1.bf16.msra.mxu0 %v995
      %1004 = vmatprep.subr.bf16.mxu0 0
      %1005 = vmatpush1.bf16.msra.mxu0 %v996
      %1006 = vmatprep.subr.bf16.mxu0 0
      %1007 = vmatpush1.bf16.msra.mxu0 0
      %1008 = vmatprep.subr.bf16.mxu0 0
      %1009 = vmatpush1.bf16.msra.mxu0 0
      %1010 = vmatprep.subr.bf16.mxu0 0
      %1011 = vmatpush1.bf16.msra.mxu0 0
      %1012 = vmatprep.subr.bf16.mxu0 0
      %1013 = vmatpush1.bf16.msra.mxu0 0
      %1014 = vmatprep.subr.bf16.mxu0 0
      %1015 = vmatpush1.bf16.msra.mxu0 0
      %1016 = vmatprep.subr.bf16.mxu0 0
      %1017 = vmatpush1.bf16.msra.mxu0 0
      %1018 = vmatprep.subr.bf16.mxu0 0
      %1019 = vmatpush1.bf16.msra.mxu0 0
      %1020 = vmatprep.subr.bf16.mxu0 0
      %1021 = vmatpush1.bf16.msra.mxu0 0
      %1022 = vmatprep.subr.bf16.mxu0 0
      %1023 = vmatpush1.bf16.msra.mxu0 0
      %1024 = vmatprep.subr.bf16.mxu0 0
      %1025 = vmatpush1.bf16.msra.mxu0 0
      %1026 = vmatprep.subr.bf16.mxu0 0
      %1027 = vmatpush1.bf16.msra.mxu0 0
      %1028 = vmatprep.subr.bf16.mxu0 0
      %1029 = vmatpush1.bf16.msra.mxu0 0
      %1030 = vmatprep.subr.bf16.mxu0 0
      %1031 = vmatpush1.bf16.msra.mxu0 0
      %1032 = vmatprep.subr.bf16.mxu0 0
      %1033 = vmatpush1.bf16.msra.mxu0 0
      %1034 = vmatprep.mubr.bf16.mxu0 0
      %1035 = vmatmul.mubr.bf16.gmra.mrb[0].mxu0 %v1000
      %v1036 = vpop.f32.mrb[0].mxu0
      %v1037 = vadd.f32 0.0, %v1036
      %v1038 = vpop.f32.mrb[0].mxu0
      %v1039 = vpop.f32.mrb[0].mxu0
      %v1040 = vadd.f32 0.0, %v1039
      %v1041 = vpop.f32.mrb[0].mxu0
      %1042 = vdwg.mxu0
      %v1043 = vadd.f32 %v954, %v1037
      %v1044 = vadd.f32 %v955, %v1040
      %v1045 = vld [vmem:[%s956] sm:$0x7]
      %v1046 = vld [vmem:[%s956 + $0x4] sm:$0x7]
      %v1047 = vld [vmem:[%s956 + $0x8] sm:$0x7]
      %v1048 = vld [vmem:[%s956 + $0xc] sm:$0x7]
      %v1054 = vunpack.c.l.s4 1983009808
      %v1055 = vunpack.c.0.s8 %v1054
      %v1056 = vlaneseq
      %v1057 = vshrl.u32 %v1056, 7
      %v1058 = vsub.s32 %v1055, %v1057
      %v1059 = vrot.slane %v1045, %v1058
      %v1060 = vcombine.high %v1059, %v1059
      %v1062 = vunpack.c.l.s4 1983009808
      %v1063 = vunpack.c.0.s8 %v1062
      %v1064 = vlaneseq
      %v1065 = vshrl.u32 %v1064, 7
      %v1066 = vsub.s32 %v1063, %v1065
      %v1067 = vrot.slane %v1046, %v1066
      %v1068 = vcombine.high %v1067, %v1067
      %v1070 = vunpack.c.l.s4 1983009808
      %v1071 = vunpack.c.0.s8 %v1070
      %v1072 = vlaneseq
      %v1073 = vshrl.u32 %v1072, 7
      %v1074 = vsub.s32 %v1071, %v1073
      %v1075 = vrot.slane %v1047, %v1074
      %v1076 = vcombine.high %v1075, %v1075
      %v1078 = vunpack.c.l.s4 1983009808
      %v1079 = vunpack.c.0.s8 %v1078
      %v1080 = vlaneseq
      %v1081 = vshrl.u32 %v1080, 7
      %v1082 = vsub.s32 %v1079, %v1081
      %v1083 = vrot.slane %v1048, %v1082
      %v1084 = vcombine.high %v1083, %v1083
      %v1086 = vshrl.u32 %v1059, 16
      %v1088 = vrot.slane %v1086, 6
      %v1089 = vshll.u32 %v1059, 16
      %v1091 = vrot.slane %v1089, 7
      %v1092 = vor.u32 %v1088, %v1091
      %v1093 = vrot.slane %v1092, 2
      %v1095 = vshll.u32 %v1060, 16
      %v1097 = vrot.slane %v1095, 7
      %v1098 = vsel %vm199, %v1093, %v1097
      %v1100 = vshrl.u32 %v1067, 16
      %v1102 = vrot.slane %v1100, 6
      %v1103 = vshll.u32 %v1067, 16
      %v1105 = vrot.slane %v1103, 7
      %v1106 = vor.u32 %v1102, %v1105
      %v1107 = vrot.slane %v1106, 2
      %v1109 = vshll.u32 %v1068, 16
      %v1111 = vrot.slane %v1109, 7
      %v1112 = vsel %vm199, %v1107, %v1111
      %v1114 = vshrl.u32 %v1075, 16
      %v1116 = vrot.slane %v1114, 6
      %v1117 = vshll.u32 %v1075, 16
      %v1119 = vrot.slane %v1117, 7
      %v1120 = vor.u32 %v1116, %v1119
      %v1121 = vrot.slane %v1120, 2
      %v1123 = vshll.u32 %v1076, 16
      %v1125 = vrot.slane %v1123, 7
      %v1126 = vsel %vm199, %v1121, %v1125
      %v1128 = vshrl.u32 %v1083, 16
      %v1130 = vrot.slane %v1128, 6
      %v1131 = vshll.u32 %v1083, 16
      %v1133 = vrot.slane %v1131, 7
      %v1134 = vor.u32 %v1130, %v1133
      %v1135 = vrot.slane %v1134, 2
      %v1137 = vshll.u32 %v1084, 16
      %v1139 = vrot.slane %v1137, 7
      %v1140 = vsel %vm199, %v1135, %v1139
      %s1141 = scalar_lea.vmem %s1, 112
      %v1142 = vld [vmem:[%s1141] sm:$0xf]
      %v1143 = vld [vmem:[%s1141 + $0x4] sm:$0xf]
      %v1144 = vld [vmem:[%s1141 + $0x8] sm:$0xf]
      %v1145 = vld [vmem:[%s1141 + $0xc] sm:$0xf]
      %v1146 = vcombine.low %v1098, %v1112
      %v1147 = vcombine.low %v1126, %v1140
      %v1149 = vunpack.c.l.s4 1983009808
      %v1150 = vunpack.c.0.s8 %v1149
      %v1151 = vlaneseq
      %v1152 = vshrl.u32 %v1151, 7
      %v1153 = vsub.s32 %v1150, %v1152
      %v1154 = vrot.slane %v1146, %v1153
      %v1156 = vunpack.c.l.s4 1983009808
      %v1157 = vunpack.c.0.s8 %v1156
      %v1158 = vlaneseq
      %v1159 = vshrl.u32 %v1158, 7
      %v1160 = vsub.s32 %v1157, %v1159
      %v1161 = vrot.slane %v1147, %v1160
      %v1162 = vcombine.low %v1154, %v1161
      %v1167 = vunpack.c.l.b16 %v1142
      %v1168 = vunpack.c.l.b16 %v1143
      %v1169 = vunpack.c.l.b16 %v1144
      %v1170 = vunpack.c.l.b16 %v1145
      %v1171 = vpack.c.b16 %v1168, %v1167
      %v1172 = vpack.c.b16 %v1170, %v1169
      %v1176 = vsel %vm290, %v1162, 0
      %1178 = vmatprep.subr.bf16.mxu0 0
      %1179 = vmatpush1.bf16.msra.mxu0 %v1171
      %1180 = vmatprep.subr.bf16.mxu0 0
      %1181 = vmatpush1.bf16.msra.mxu0 %v1172
      %1182 = vmatprep.subr.bf16.mxu0 0
      %1183 = vmatpush1.bf16.msra.mxu0 0
      %1184 = vmatprep.subr.bf16.mxu0 0
      %1185 = vmatpush1.bf16.msra.mxu0 0
      %1186 = vmatprep.subr.bf16.mxu0 0
      %1187 = vmatpush1.bf16.msra.mxu0 0
      %1188 = vmatprep.subr.bf16.mxu0 0
      %1189 = vmatpush1.bf16.msra.mxu0 0
      %1190 = vmatprep.subr.bf16.mxu0 0
      %1191 = vmatpush1.bf16.msra.mxu0 0
      %1192 = vmatprep.subr.bf16.mxu0 0
      %1193 = vmatpush1.bf16.msra.mxu0 0
      %1194 = vmatprep.subr.bf16.mxu0 0
      %1195 = vmatpush1.bf16.msra.mxu0 0
      %1196 = vmatprep.subr.bf16.mxu0 0
      %1197 = vmatpush1.bf16.msra.mxu0 0
      %1198 = vmatprep.subr.bf16.mxu0 0
      %1199 = vmatpush1.bf16.msra.mxu0 0
      %1200 = vmatprep.subr.bf16.mxu0 0
      %1201 = vmatpush1.bf16.msra.mxu0 0
      %1202 = vmatprep.subr.bf16.mxu0 0
      %1203 = vmatpush1.bf16.msra.mxu0 0
      %1204 = vmatprep.subr.bf16.mxu0 0
      %1205 = vmatpush1.bf16.msra.mxu0 0
      %1206 = vmatprep.subr.bf16.mxu0 0
      %1207 = vmatpush1.bf16.msra.mxu0 0
      %1208 = vmatprep.subr.bf16.mxu0 0
      %1209 = vmatpush1.bf16.msra.mxu0 0
      %1210 = vmatprep.mubr.bf16.mxu0 0
      %1211 = vmatmul.mubr.bf16.gmra.mrb[0].mxu0 %v1176
      %v1212 = vpop.f32.mrb[0].mxu0
      %v1213 = vadd.f32 0.0, %v1212
      %v1214 = vpop.f32.mrb[0].mxu0
      %v1215 = vpop.f32.mrb[0].mxu0
      %v1216 = vadd.f32 0.0, %v1215
      %v1217 = vpop.f32.mrb[0].mxu0
      %1218 = vdwg.mxu0
      %v1219 = vadd.f32 %v1043, %v1213
      %v1220 = vadd.f32 %v1044, %v1216
      %v1221 = vld [vmem:[%s956] sm:$0x6]
      %v1222 = vld [vmem:[%s956 + $0x4] sm:$0x6]
      %v1223 = vld [vmem:[%s956 + $0x8] sm:$0x6]
      %v1224 = vld [vmem:[%s956 + $0xc] sm:$0x6]
      %v1230 = vunpack.c.l.s4 1983009808
      %v1231 = vunpack.c.0.s8 %v1230
      %v1232 = vlaneseq
      %v1233 = vshrl.u32 %v1232, 7
      %v1234 = vsub.s32 %v1231, %v1233
      %v1235 = vrot.slane %v1221, %v1234
      %v1236 = vcombine.high %v1235, %v1235
      %v1238 = vunpack.c.l.s4 1983009808
      %v1239 = vunpack.c.0.s8 %v1238
      %v1240 = vlaneseq
      %v1241 = vshrl.u32 %v1240, 7
      %v1242 = vsub.s32 %v1239, %v1241
      %v1243 = vrot.slane %v1222, %v1242
      %v1244 = vcombine.high %v1243, %v1243
      %v1246 = vunpack.c.l.s4 1983009808
      %v1247 = vunpack.c.0.s8 %v1246
      %v1248 = vlaneseq
      %v1249 = vshrl.u32 %v1248, 7
      %v1250 = vsub.s32 %v1247, %v1249
      %v1251 = vrot.slane %v1223, %v1250
      %v1252 = vcombine.high %v1251, %v1251
      %v1254 = vunpack.c.l.s4 1983009808
      %v1255 = vunpack.c.0.s8 %v1254
      %v1256 = vlaneseq
      %v1257 = vshrl.u32 %v1256, 7
      %v1258 = vsub.s32 %v1255, %v1257
      %v1259 = vrot.slane %v1224, %v1258
      %v1260 = vcombine.high %v1259, %v1259
      %v1261 = vrot.slane %v1235, 7
      %v1262 = vrot.slane %v1261, 2
      %v1263 = vrot.slane %v1236, 7
      %v1264 = vsel %vm458, %v1262, %v1263
      %v1265 = vrot.slane %v1243, 7
      %v1266 = vrot.slane %v1265, 2
      %v1267 = vrot.slane %v1244, 7
      %v1268 = vsel %vm458, %v1266, %v1267
      %v1269 = vrot.slane %v1251, 7
      %v1270 = vrot.slane %v1269, 2
      %v1271 = vrot.slane %v1252, 7
      %v1272 = vsel %vm458, %v1270, %v1271
      %v1273 = vrot.slane %v1259, 7
      %v1274 = vrot.slane %v1273, 2
      %v1275 = vrot.slane %v1260, 7
      %v1276 = vsel %vm458, %v1274, %v1275
      %s1277 = scalar_lea.vmem %s1, 128
      %v1278 = vld [vmem:[%s1277] sm:$0xf]
      %v1279 = vld [vmem:[%s1277 + $0x4] sm:$0xf]
      %v1280 = vld [vmem:[%s1277 + $0x8] sm:$0xf]
      %v1281 = vld [vmem:[%s1277 + $0xc] sm:$0xf]
      %v1282 = vcombine.low %v1264, %v1268
      %v1283 = vcombine.low %v1272, %v1276
      %v1285 = vunpack.c.l.s4 1983009808
      %v1286 = vunpack.c.0.s8 %v1285
      %v1287 = vlaneseq
      %v1288 = vshrl.u32 %v1287, 7
      %v1289 = vsub.s32 %v1286, %v1288
      %v1290 = vrot.slane %v1282, %v1289
      %v1292 = vunpack.c.l.s4 1983009808
      %v1293 = vunpack.c.0.s8 %v1292
      %v1294 = vlaneseq
      %v1295 = vshrl.u32 %v1294, 7
      %v1296 = vsub.s32 %v1293, %v1295
      %v1297 = vrot.slane %v1283, %v1296
      %v1298 = vcombine.low %v1290, %v1297
      %v1303 = vunpack.c.l.b16 %v1278
      %v1304 = vunpack.c.l.b16 %v1279
      %v1305 = vunpack.c.l.b16 %v1280
      %v1306 = vunpack.c.l.b16 %v1281
      %v1307 = vpack.c.b16 %v1304, %v1303
      %v1308 = vpack.c.b16 %v1306, %v1305
      %v1312 = vsel %vm290, %v1298, 0
      %1314 = vmatprep.subr.bf16.mxu0 0
      %1315 = vmatpush1.bf16.msra.mxu0 %v1307
      %1316 = vmatprep.subr.bf16.mxu0 0
      %1317 = vmatpush1.bf16.msra.mxu0 %v1308
      %1318 = vmatprep.subr.bf16.mxu0 0
      %1319 = vmatpush1.bf16.msra.mxu0 0
      %1320 = vmatprep.subr.bf16.mxu0 0
      %1321 = vmatpush1.bf16.msra.mxu0 0
      %1322 = vmatprep.subr.bf16.mxu0 0
      %1323 = vmatpush1.bf16.msra.mxu0 0
      %1324 = vmatprep.subr.bf16.mxu0 0
      %1325 = vmatpush1.bf16.msra.mxu0 0
      %1326 = vmatprep.subr.bf16.mxu0 0
      %1327 = vmatpush1.bf16.msra.mxu0 0
      %1328 = vmatprep.subr.bf16.mxu0 0
      %1329 = vmatpush1.bf16.msra.mxu0 0
      %1330 = vmatprep.subr.bf16.mxu0 0
      %1331 = vmatpush1.bf16.msra.mxu0 0
      %1332 = vmatprep.subr.bf16.mxu0 0
      %1333 = vmatpush1.bf16.msra.mxu0 0
      %1334 = vmatprep.subr.bf16.mxu0 0
      %1335 = vmatpush1.bf16.msra.mxu0 0
      %1336 = vmatprep.subr.bf16.mxu0 0
      %1337 = vmatpush1.bf16.msra.mxu0 0
      %1338 = vmatprep.subr.bf16.mxu0 0
      %1339 = vmatpush1.bf16.msra.mxu0 0
      %1340 = vmatprep.subr.bf16.mxu0 0
      %1341 = vmatpush1.bf16.msra.mxu0 0
      %1342 = vmatprep.subr.bf16.mxu0 0
      %1343 = vmatpush1.bf16.msra.mxu0 0
      %1344 = vmatprep.subr.bf16.mxu0 0
      %1345 = vmatpush1.bf16.msra.mxu0 0
      %1346 = vmatprep.mubr.bf16.mxu0 0
      %1347 = vmatmul.mubr.bf16.gmra.mrb[0].mxu0 %v1312
      %v1348 = vpop.f32.mrb[0].mxu0
      %v1349 = vadd.f32 0.0, %v1348
      %v1350 = vpop.f32.mrb[0].mxu0
      %v1351 = vpop.f32.mrb[0].mxu0
      %v1352 = vadd.f32 0.0, %v1351
      %v1353 = vpop.f32.mrb[0].mxu0
      %1354 = vdwg.mxu0
      %v1355 = vadd.f32 %v1219, %v1349
      %v1356 = vadd.f32 %v1220, %v1352
      %v1357 = vpack.c.bf16 %v1356, %v1355
      %v1359 = vunpack.c.l.b16 %v1357
      %v1360 = vunpack.c.h.b16 %v1357
      %v1361 = vpack.c.b16 %v1359, %v1359
      %v1362 = vpack.c.b16 %v1360, %v1360
      %vm1365 = vcmask 257024
      %1366 = vst.msk [vmem:[%s143] sm:$0xf] %vm1365, %v1361
      %1367 = vst.msk [vmem:[%s143 + $0x4] sm:$0xf] %vm1365, %v1362
      %p1368 = scmp.lt.s32.totalorder %s13, 1
      %s1369 = scalar_select %p1368, %s13, 1
      %s1370 = smul.addr %s1369, 2
      %s1371 = smul.addr %s1370, 4
      %s1372 = scalar_lea.vmem %s2, %s1371
      // Predicated region
      $region29: #{image_encoder_vit.28} parent=27 // pred_check
        %p1373 = pneg %p78
      $region30: #{image_encoder_vit.28} parent=27 // pred_check_branch
        %1375 = sbr.rel (%p1373) target = $region32
      $region31: #{image_encoder_vit.28} parent=27 // pred_region
        _
      $region32: #{image_encoder_vit.28} parent=27 // pred_fallthru
        _
    $region28: #{image_encoder_vit.28} parent=5 // pred_fallthru
      _
    %p1376 = scmp.le.s32.totalorder 2, %s8
    // Predicated region
    $region33: #{image_encoder_vit.28} parent=5 // pred_check
      %p1377 = pneg %p1376
    $region34: #{image_encoder_vit.28} parent=5 // pred_check_branch
      %1379 = sbr.rel (%p1377) target = $region36
    $region35: #{image_encoder_vit.28} parent=5 // pred_region
      %s1380 = ssub.s32 %s8, 2
      // Predicated region
      $region37: #{image_encoder_vit.28} parent=35 // pred_check
        %p1381 = pneg %p84
      $region38: #{image_encoder_vit.28} parent=35 // pred_check_branch
        %1383 = sbr.rel (%p1381) target = $region40
      $region39: #{image_encoder_vit.28} parent=35 // pred_region
        %p1384 = scmp.lt.s32.totalorder %s14, 1
        %s1385 = scalar_select %p1384, %s14, 1
        %s1386 = smul.addr %s1385, 2
        %s1387 = smul.addr %s1386, 4
        %s1388 = scalar_lea.vmem %s2, %s1387
      $region40: #{image_encoder_vit.28} parent=35 // pred_fallthru
        _
    $region36: #{image_encoder_vit.28} parent=5 // pred_fallthru
      _
  $region6: #{image_encoder_vit.28} parent=0 // loop_footer
    %s12 = sadd.s32 1, %s8
  $region7: #{image_encoder_vit.28} parent=0 // loop_footer_branch
    %7 = sbr.rel target = $region3
  $region8: #{image_encoder_vit.28} parent=0 // loop_exit
    _

</llo_original>
